<compile_context>
chip_gen: v7x
topology: tpu7x:2x2x1
jax: 0.10.0
libtpu: 0.0.40
codegen_flags: <defaults>
</compile_context>

<pallas_src>
import functools

import jax
import jax.numpy as jnp
from jax import lax
from jax.experimental import pallas as pl
from jax.experimental.pallas import tpu as pltpu

EPS_BN = 1e-5      # PyTorch BatchNorm1d default eps
EPS_NORM = 1e-12   # F.normalize default eps
C_IN = 8           # 3 data channels + 1 ones (bias) channel + 4 zero pad


def _round_up(x, m):
    return ((x + m - 1) // m) * m


def _protein_ssl_kernel(x_ref,
                        w1_ref, w2_ref, b2_ref,
                        w3_ref, b3_ref, w4_ref, b4_ref,
                        out_ref, pool_ref, *, seq_len, mask_needed):
    li = pl.program_id(1)
    nl = pl.num_programs(1)
    tb = x_ref.shape[0]
    tl = x_ref.shape[2]

    @pl.when(li == 0)
    def _init():
        # Post-ReLU activations are >= 0, so 0 is an exact identity for max.
        pool_ref[...] = jnp.zeros_like(pool_ref)

    # Hoisted once per grid step (JAX does not CSE broadcast_in_dim).
    b2b = jnp.broadcast_to(b2_ref[...], (128, tl))            # (128, TL) f32

    def tile_max(apply_mask):
        """Per-batch conv1 -> conv2 -> (mask) -> lane max; returns (TB,128)."""
        if apply_mask:
            lane = lax.broadcasted_iota(jnp.int32, (128, tl), 1)
            valid = (li * tl + lane) < seq_len
        rows = []
        for b in range(tb):
            xb = x_ref[b]                                      # (8, TL)
            # Conv1d(3,64,1)+BN folded; bias rides in the ones channel (K=8).
            h = jnp.dot(w1_ref[...], xb,
                        preferred_element_type=jnp.float32)    # (64, TL)
            h = jnp.maximum(h, 0.0)
            # Conv1d(64,128,1)+BN folded, on the MXU (N=TL lane-dense).
            h = jnp.dot(w2_ref[...], h.astype(w2_ref.dtype),
                        preferred_element_type=jnp.float32) + b2b  # (128, TL)
            h = jnp.maximum(h, 0.0)
            if apply_mask:
                # Exact: real post-ReLU values are >= 0, so 0 never wins max.
                h = jnp.where(valid, h, 0.0)
            rows.append(jnp.max(h, axis=1).reshape(1, 128))
        return jnp.concatenate(rows, axis=0)                   # (TB, 128)

    if mask_needed:
        @pl.when(li < nl - 1)
        def _interior():
            pool_ref[...] = jnp.maximum(pool_ref[...], tile_max(False))

        @pl.when(li == nl - 1)
        def _last():
            pool_ref[...] = jnp.maximum(pool_ref[...], tile_max(True))
    else:
        pool_ref[...] = jnp.maximum(pool_ref[...], tile_max(False))

    # Head: Linear(128,64) -> ReLU -> Linear(64,4 padded to 128) -> normalize.
    @pl.when(li == nl - 1)
    def _finalize():
        pooled = pool_ref[...]                                 # (TB, 128) f32
        z = jnp.dot(pooled, w3_ref[...],
                    preferred_element_type=jnp.float32) + b3_ref[...]
        z = jnp.maximum(z, 0.0)
        y = jnp.dot(z, w4_ref[...],
                    preferred_element_type=jnp.float32) + b4_ref[...]
        # Columns 4..127 of w4/b4 are zero, so they add nothing to the row
        # norm and the stored (TB, 128) slab stays lane-dense.
        nrm = jnp.sqrt(jnp.sum(y * y, axis=1, keepdims=True))
        out_ref[...] = y / jnp.maximum(nrm, EPS_NORM)


def protein_ssl_forward(x, params, *, block_b=8, block_l=512,
                        matmul_dtype=jnp.bfloat16):
    """x: (B, L, 3) float32 -> (B, 4) float32, L2-normalized rows."""
    B, L, cin = x.shape
    assert cin == 3

    (w1, b1, g1, be1, m1, v1,
     w2, b2, g2, be2, m2, v2,
     w3, b3, w4, b4) = params

    # ---- Fold BatchNorm (inference mode) into conv weights/bias. -----------
    s1 = g1 * lax.rsqrt(v1 + EPS_BN)                           # (1, 64)
    w1f = w1 * s1                                              # (3, 64)
    b1f = (b1 - m1) * s1 + be1                                 # (1, 64)
    s2 = g2 * lax.rsqrt(v2 + EPS_BN)                           # (1, 128)
    w2f = w2 * s2                                              # (64, 128)
    b2f = (b2 - m2) * s2 + be2                                 # (1, 128)

    # Channel-major conv weights; conv1 bias folded into the ones channel.
    w1cm = jnp.zeros((64, C_IN), jnp.float32)
    w1cm = w1cm.at[:, :3].set(w1f.T).at[:, 3].set(b1f[0])
    w1cm = w1cm.astype(matmul_dtype)                           # (64, 8)
    w2cm = w2f.T.astype(matmul_dtype)                          # (128, 64)
    b2cm = b2f.reshape(128, 1).astype(jnp.float32)             # (128, 1)

    # Zero-pad Linear(64, 4) to 128 output lanes (lane-dense output slab).
    w4p = jnp.zeros((64, 128), jnp.float32).at[:, :4].set(w4)
    b4p = jnp.zeros((1, 128), jnp.float32).at[:, :4].set(b4)

    # ---- Tiling (length is the lane axis -> blocks aligned to 128). --------
    block_b = _round_up(max(block_b, 1), 8)
    block_b = min(block_b, _round_up(B, 8))
    block_l = _round_up(min(max(block_l, 1), _round_up(L, 128)), 128)
    B_pad = _round_up(B, block_b)
    L_pad = _round_up(L, block_l)
    mask_needed = (L_pad != L)

    # x -> (B_pad, 8, L_pad): channels 0..2 = data, 3 = 1.0 (bias), 4..7 = 0.
    x_cm = jnp.transpose(x, (0, 2, 1)).astype(matmul_dtype)    # (B, 3, L)
    x_p = jnp.zeros((B_pad, C_IN, L_pad), matmul_dtype)
    x_p = x_p.at[:B, :3, :L].set(x_cm)
    x_p = x_p.at[:, 3, :].set(jnp.asarray(1.0, matmul_dtype))

    grid = (B_pad // block_b, L_pad // block_l)

    def const_spec(a):
        nd = a.ndim
        return pl.BlockSpec(a.shape, lambda bi, li, _nd=nd: (0,) * _nd)

    weight_args = (w1cm, w2cm, b2cm, w3, b3, w4p, b4p)
    in_specs = [pl.BlockSpec((block_b, C_IN, block_l),
                             lambda bi, li: (bi, 0, li))]
    in_specs += [const_spec(a) for a in weight_args]

    flops = (2 * B_pad * L_pad * (C_IN * 64 + 64 * 128)
             + 2 * B_pad * (128 * 64 + 64 * 128))
    bytes_accessed = (int(x_p.size) * int(x_p.dtype.itemsize)
                      + B_pad * 128 * 4
                      + sum(int(a.size) * 4 for a in weight_args))

    kernel = functools.partial(_protein_ssl_kernel, seq_len=L,
                               mask_needed=mask_needed)

    out = pl.pallas_call(
        kernel,
        out_shape=jax.ShapeDtypeStruct((B_pad, 128), jnp.float32),
        grid=grid,
        in_specs=in_specs,
        out_specs=pl.BlockSpec((block_b, 128), lambda bi, li: (bi, 0)),
        scratch_shapes=[pltpu.VMEM((block_b, 128), jnp.float32)],
        compiler_params=pltpu.CompilerParams(
            dimension_semantics=("parallel", "arbitrary")),
        cost_estimate=pl.CostEstimate(flops=flops, transcendentals=0,
                                      bytes_accessed=bytes_accessed),
    )(x_p, *weight_args)
    return out[:B, :4]


def _reference_forward(x, params):
    """Pure-JAX (f32, unfolded) reference of the PyTorch forward."""
    (w1, b1, g1, be1, m1, v1,
     w2, b2, g2, be2, m2, v2,
     w3, b3, w4, b4) = params
    h = jnp.einsum('blc,cd->bld', x, w1) + b1
    h = (h - m1) * (g1 / jnp.sqrt(v1 + EPS_BN)) + be1
    h = jnp.maximum(h, 0.0)
    h = jnp.einsum('bld,de->ble', h, w2) + b2
    h = (h - m2) * (g2 / jnp.sqrt(v2 + EPS_BN)) + be2
    h = jnp.maximum(h, 0.0)
    p = jnp.max(h, axis=1)                                     # (B, 128)
    z = jnp.maximum(p @ w3 + b3, 0.0)
    y = z @ w4 + b4
    nrm = jnp.sqrt(jnp.sum(y * y, axis=1, keepdims=True))
    return y / jnp.maximum(nrm, EPS_NORM)


def init_params(key):
    """Deterministic synthetic parameters matching the module's shapes.

    Conv/Linear weights stored as (in, out); 1-D per-channel params stored as
    (1, C) so they broadcast against (rows, C) activations.
    """
    ks = jax.random.split(key, 16)

    def rn(k, shape, scale):
        return scale * jax.random.normal(k, shape, dtype=jnp.float32)

    # encoder: Conv1d(3, 64, 1)
    w1 = rn(ks[0], (3, 64), 0.5)
    b1 = rn(ks[1], (1, 64), 0.1)
    # BatchNorm1d(64): gamma, beta, running_mean, running_var
    g1 = 1.0 + rn(ks[2], (1, 64), 0.1)
    be1 = rn(ks[3], (1, 64), 0.1)
    m1 = rn(ks[4], (1, 64), 0.1)
    v1 = 0.5 + jax.random.uniform(ks[5], (1, 64), dtype=jnp.float32)

    # encoder: Conv1d(64, 128, 1)
    w2 = rn(ks[6], (64, 128), 0.2)
    b2 = rn(ks[7], (1, 128), 0.1)
    # BatchNorm1d(128)
    g2 = 1.0 + rn(ks[8], (1, 128), 0.1)
    be2 = rn(ks[9], (1, 128), 0.1)
    m2 = rn(ks[10], (1, 128), 0.1)
    v2 = 0.5 + jax.random.uniform(ks[11], (1, 128), dtype=jnp.float32)

    # head: Linear(128, 64), Linear(64, 4)
    w3 = rn(ks[12], (128, 64), 0.1)
    b3 = rn(ks[13], (1, 64), 0.1)
    w4 = rn(ks[14], (64, 4), 0.1)
    b4 = rn(ks[15], (1, 4), 0.1)

    return (w1, b1, g1, be1, m1, v1,
            w2, b2, g2, be2, m2, v2,
            w3, b3, w4, b4)


if __name__ == "__main__":
    key = jax.random.PRNGKey(0)
    kx, kp, kx2 = jax.random.split(key, 3)

    # ---- Test 1: module shapes (B=2, L=8), default bf16 MXU path. ----------
    B, L = 2, 8
    x = jax.random.normal(kx, (B, L, 3), dtype=jnp.float32)
    params = init_params(kp)

    out = jax.block_until_ready(protein_ssl_forward(x, params))
    assert out.shape == (B, 4), out.shape
    norms = jnp.sqrt(jnp.sum(out * out, axis=1))
    assert bool(jnp.all(jnp.abs(norms - 1.0) < 1e-3)), norms
    ref = _reference_forward(x, params)
    assert bool(jnp.max(jnp.abs(out - ref)) < 0.1), (out, ref)

    # ---- Test 2: same shapes, f32 matmuls -> tight check vs reference. -----
    out_f32 = jax.block_until_ready(
        protein_ssl_forward(x, params, matmul_dtype=jnp.float32))
    assert bool(jnp.max(jnp.abs(out_f32 - ref)) < 2e-3), (out_f32, ref)

    # ---- Test 3: multiple batch/seq tiles + ragged L (running max, last-
    # ---- tile masking, interior unmasked path). -----------------------------
    B2, L2 = 10, 200
    x2 = jax.random.normal(kx2, (B2, L2, 3), dtype=jnp.float32)
    out2 = jax.block_until_ready(
        protein_ssl_forward(x2, params, block_b=8, block_l=128,
                            matmul_dtype=jnp.float32))
    ref2 = _reference_forward(x2, params)
    assert out2.shape == (B2, 4), out2.shape
    assert bool(jnp.max(jnp.abs(out2 - ref2)) < 2e-3), (out2, ref2)

    print("KERNEL_OK")
</pallas_src>

<mosaic_0001>
module attributes {stable_mosaic.version = 11 : i64} {
  func.func @_protein_ssl_kernel(%arg0: i32, %arg1: i32, %arg2: memref<8x8x128xbf16, #tpu.memory_space<vmem>>, %arg3: memref<64x8xbf16, #tpu.memory_space<vmem>>, %arg4: memref<128x64xbf16, #tpu.memory_space<vmem>>, %arg5: memref<128x1xf32, #tpu.memory_space<vmem>>, %arg6: memref<128x64xf32, #tpu.memory_space<vmem>>, %arg7: memref<1x64xf32, #tpu.memory_space<vmem>>, %arg8: memref<64x128xf32, #tpu.memory_space<vmem>>, %arg9: memref<1x128xf32, #tpu.memory_space<vmem>>, %arg10: memref<8x128xf32, #tpu.memory_space<vmem>>, %arg11: memref<8x128xf32, #tpu.memory_space<vmem>>) attributes {dimension_semantics = [#tpu.dimension_semantics<parallel>, #tpu.dimension_semantics<arbitrary>], iteration_bounds = array<i64: 1, 1>, scalar_prefetch = 0 : i64, scratch_operands = 1 : i64, tpu.core_type = #tpu.core_type<tc>, window_params = [{transform_indices = @transform_0, window_bounds = array<i64: 8, 8, 128>}, {pipeline_mode = #tpu.pipeline_mode<synchronous>, transform_indices = @transform_1, window_bounds = array<i64: 64, 8>}, {pipeline_mode = #tpu.pipeline_mode<synchronous>, transform_indices = @transform_2, window_bounds = array<i64: 128, 64>}, {pipeline_mode = #tpu.pipeline_mode<synchronous>, transform_indices = @transform_3, window_bounds = array<i64: 128, 1>}, {pipeline_mode = #tpu.pipeline_mode<synchronous>, transform_indices = @transform_4, window_bounds = array<i64: 128, 64>}, {pipeline_mode = #tpu.pipeline_mode<synchronous>, transform_indices = @transform_5, window_bounds = array<i64: 1, 64>}, {pipeline_mode = #tpu.pipeline_mode<synchronous>, transform_indices = @transform_6, window_bounds = array<i64: 64, 128>}, {pipeline_mode = #tpu.pipeline_mode<synchronous>, transform_indices = @transform_7, window_bounds = array<i64: 1, 128>}, {transform_indices = @transform_8, window_bounds = array<i64: 8, 128>}]} {
    %c0_i32 = arith.constant 0 : i32
    %0 = arith.cmpi eq, %arg1, %c0_i32 : i32
    %1 = arith.extui %0 : i1 to i32
    %c0_i32_0 = arith.constant 0 : i32
    %2 = arith.cmpi ne, %1, %c0_i32_0 : i32
    scf.if %2 {
      %cst = arith.constant 0.000000e+00 : f32
      %15 = vector.broadcast %cst : f32 to vector<8x128xf32>
      %c0_8 = arith.constant 0 : index
      %c0_9 = arith.constant 0 : index
      %16 = vector.load %arg11[%c0_8, %c0_9] : memref<8x128xf32, #tpu.memory_space<vmem>>, vector<8x128xf32>
      tpu.vector_store %arg11[%c0_8, %c0_9], %15 {strides = array<i32>} : memref<8x128xf32, #tpu.memory_space<vmem>>, vector<8x128xf32>,
    } else {
    }
    %c0 = arith.constant 0 : index
    %c0_1 = arith.constant 0 : index
    %3 = vector.load %arg5[%c0, %c0_1] : memref<128x1xf32, #tpu.memory_space<vmem>>, vector<128x1xf32>
    %4 = vector.shape_cast %3 : vector<128x1xf32> to vector<128x1xf32>
    %5 = vector.broadcast %4 : vector<128x1xf32> to vector<128x128xf32>
    %c0_i32_2 = arith.constant 0 : i32
    %6 = arith.cmpi slt, %arg1, %c0_i32_2 : i32
    %7 = arith.extui %6 : i1 to i32
    %c0_i32_3 = arith.constant 0 : i32
    %8 = arith.cmpi ne, %7, %c0_i32_3 : i32
    scf.if %8 {
      %c0_8 = arith.constant 0 : index
      %c0_9 = arith.constant 0 : index
      %15 = vector.load %arg11[%c0_8, %c0_9] : memref<8x128xf32, #tpu.memory_space<vmem>>, vector<8x128xf32>
      %c0_10 = arith.constant 0 : index
      %c0_11 = arith.constant 0 : index
      %c0_12 = arith.constant 0 : index
      %16 = vector.load %arg2[%c0_10, %c0_11, %c0_12] : memref<8x8x128xbf16, #tpu.memory_space<vmem>>, vector<1x8x128xbf16>
      %17 = vector.shape_cast %16 : vector<1x8x128xbf16> to vector<8x128xbf16>
      %c0_13 = arith.constant 0 : index
      %c0_14 = arith.constant 0 : index
      %18 = vector.load %arg3[%c0_13, %c0_14] : memref<64x8xbf16, #tpu.memory_space<vmem>>, vector<64x8xbf16>
      %cst = arith.constant dense<0.000000e+00> : vector<64x128xf32>
      %19 = tpu.matmul %18, %17, %cst {dimension_numbers = #tpu.dot_dimension_numbers<[1], [0], [0], [1], [0, 0, 1, 1], [], []>} : vector<64x8xbf16>, vector<8x128xbf16>, vector<64x128xf32> -> vector<64x128xf32>
      %cst_15 = arith.constant 0.000000e+00 : f32
      %20 = vector.broadcast %cst_15 : f32 to vector<64x128xf32>
      %21 = arith.maximumf %19, %20 : vector<64x128xf32>
      %c0_16 = arith.constant 0 : index
      %c0_17 = arith.constant 0 : index
      %22 = vector.load %arg4[%c0_16, %c0_17] : memref<128x64xbf16, #tpu.memory_space<vmem>>, vector<128x64xbf16>
      %23 = arith.truncf %21 : vector<64x128xf32> to vector<64x128xbf16>
      %cst_18 = arith.constant dense<0.000000e+00> : vector<128x128xf32>
      %24 = tpu.matmul %22, %23, %cst_18 {dimension_numbers = #tpu.dot_dimension_numbers<[1], [0], [0], [1], [0, 0, 1, 1], [], []>} : vector<128x64xbf16>, vector<64x128xbf16>, vector<128x128xf32> -> vector<128x128xf32>
      %25 = arith.addf %24, %5 : vector<128x128xf32>
      %cst_19 = arith.constant 0.000000e+00 : f32
      %26 = vector.broadcast %cst_19 : f32 to vector<128x128xf32>
      %27 = arith.maximumf %25, %26 : vector<128x128xf32>
      %cst_20 = arith.constant dense<0xFF800000> : vector<128xf32>
      %28 = vector.multi_reduction <maximumf>, %27, %cst_20 [1] : vector<128x128xf32> to vector<128xf32>
      %29 = vector.shape_cast %28 : vector<128xf32> to vector<1x128xf32>
      %c1 = arith.constant 1 : index
      %c0_21 = arith.constant 0 : index
      %c0_22 = arith.constant 0 : index
      %30 = vector.load %arg2[%c1, %c0_21, %c0_22] : memref<8x8x128xbf16, #tpu.memory_space<vmem>>, vector<1x8x128xbf16>
      %31 = vector.shape_cast %30 : vector<1x8x128xbf16> to vector<8x128xbf16>
      %c0_23 = arith.constant 0 : index
      %c0_24 = arith.constant 0 : index
      %32 = vector.load %arg3[%c0_23, %c0_24] : memref<64x8xbf16, #tpu.memory_space<vmem>>, vector<64x8xbf16>
      %cst_25 = arith.constant dense<0.000000e+00> : vector<64x128xf32>
      %33 = tpu.matmul %32, %31, %cst_25 {dimension_numbers = #tpu.dot_dimension_numbers<[1], [0], [0], [1], [0, 0, 1, 1], [], []>} : vector<64x8xbf16>, vector<8x128xbf16>, vector<64x128xf32> -> vector<64x128xf32>
      %cst_26 = arith.constant 0.000000e+00 : f32
      %34 = vector.broadcast %cst_26 : f32 to vector<64x128xf32>
      %35 = arith.maximumf %33, %34 : vector<64x128xf32>
      %c0_27 = arith.constant 0 : index
      %c0_28 = arith.constant 0 : index
      %36 = vector.load %arg4[%c0_27, %c0_28] : memref<128x64xbf16, #tpu.memory_space<vmem>>, vector<128x64xbf16>
      %37 = arith.truncf %35 : vector<64x128xf32> to vector<64x128xbf16>
      %cst_29 = arith.constant dense<0.000000e+00> : vector<128x128xf32>
      %38 = tpu.matmul %36, %37, %cst_29 {dimension_numbers = #tpu.dot_dimension_numbers<[1], [0], [0], [1], [0, 0, 1, 1], [], []>} : vector<128x64xbf16>, vector<64x128xbf16>, vector<128x128xf32> -> vector<128x128xf32>
      %39 = arith.addf %38, %5 : vector<128x128xf32>
      %cst_30 = arith.constant 0.000000e+00 : f32
      %40 = vector.broadcast %cst_30 : f32 to vector<128x128xf32>
      %41 = arith.maximumf %39, %40 : vector<128x128xf32>
      %cst_31 = arith.constant dense<0xFF800000> : vector<128xf32>
      %42 = vector.multi_reduction <maximumf>, %41, %cst_31 [1] : vector<128x128xf32> to vector<128xf32>
      %43 = vector.shape_cast %42 : vector<128xf32> to vector<1x128xf32>
      %c2 = arith.constant 2 : index
      %c0_32 = arith.constant 0 : index
      %c0_33 = arith.constant 0 : index
      %44 = vector.load %arg2[%c2, %c0_32, %c0_33] : memref<8x8x128xbf16, #tpu.memory_space<vmem>>, vector<1x8x128xbf16>
      %45 = vector.shape_cast %44 : vector<1x8x128xbf16> to vector<8x128xbf16>
      %c0_34 = arith.constant 0 : index
      %c0_35 = arith.constant 0 : index
      %46 = vector.load %arg3[%c0_34, %c0_35] : memref<64x8xbf16, #tpu.memory_space<vmem>>, vector<64x8xbf16>
      %cst_36 = arith.constant dense<0.000000e+00> : vector<64x128xf32>
      %47 = tpu.matmul %46, %45, %cst_36 {dimension_numbers = #tpu.dot_dimension_numbers<[1], [0], [0], [1], [0, 0, 1, 1], [], []>} : vector<64x8xbf16>, vector<8x128xbf16>, vector<64x128xf32> -> vector<64x128xf32>
      %cst_37 = arith.constant 0.000000e+00 : f32
      %48 = vector.broadcast %cst_37 : f32 to vector<64x128xf32>
      %49 = arith.maximumf %47, %48 : vector<64x128xf32>
      %c0_38 = arith.constant 0 : index
      %c0_39 = arith.constant 0 : index
      %50 = vector.load %arg4[%c0_38, %c0_39] : memref<128x64xbf16, #tpu.memory_space<vmem>>, vector<128x64xbf16>
      %51 = arith.truncf %49 : vector<64x128xf32> to vector<64x128xbf16>
      %cst_40 = arith.constant dense<0.000000e+00> : vector<128x128xf32>
      %52 = tpu.matmul %50, %51, %cst_40 {dimension_numbers = #tpu.dot_dimension_numbers<[1], [0], [0], [1], [0, 0, 1, 1], [], []>} : vector<128x64xbf16>, vector<64x128xbf16>, vector<128x128xf32> -> vector<128x128xf32>
      %53 = arith.addf %52, %5 : vector<128x128xf32>
      %cst_41 = arith.constant 0.000000e+00 : f32
      %54 = vector.broadcast %cst_41 : f32 to vector<128x128xf32>
      %55 = arith.maximumf %53, %54 : vector<128x128xf32>
      %cst_42 = arith.constant dense<0xFF800000> : vector<128xf32>
      %56 = vector.multi_reduction <maximumf>, %55, %cst_42 [1] : vector<128x128xf32> to vector<128xf32>
      %57 = vector.shape_cast %56 : vector<128xf32> to vector<1x128xf32>
      %c3 = arith.constant 3 : index
      %c0_43 = arith.constant 0 : index
      %c0_44 = arith.constant 0 : index
      %58 = vector.load %arg2[%c3, %c0_43, %c0_44] : memref<8x8x128xbf16, #tpu.memory_space<vmem>>, vector<1x8x128xbf16>
      %59 = vector.shape_cast %58 : vector<1x8x128xbf16> to vector<8x128xbf16>
      %c0_45 = arith.constant 0 : index
      %c0_46 = arith.constant 0 : index
      %60 = vector.load %arg3[%c0_45, %c0_46] : memref<64x8xbf16, #tpu.memory_space<vmem>>, vector<64x8xbf16>
      %cst_47 = arith.constant dense<0.000000e+00> : vector<64x128xf32>
      %61 = tpu.matmul %60, %59, %cst_47 {dimension_numbers = #tpu.dot_dimension_numbers<[1], [0], [0], [1], [0, 0, 1, 1], [], []>} : vector<64x8xbf16>, vector<8x128xbf16>, vector<64x128xf32> -> vector<64x128xf32>
      %cst_48 = arith.constant 0.000000e+00 : f32
      %62 = vector.broadcast %cst_48 : f32 to vector<64x128xf32>
      %63 = arith.maximumf %61, %62 : vector<64x128xf32>
      %c0_49 = arith.constant 0 : index
      %c0_50 = arith.constant 0 : index
      %64 = vector.load %arg4[%c0_49, %c0_50] : memref<128x64xbf16, #tpu.memory_space<vmem>>, vector<128x64xbf16>
      %65 = arith.truncf %63 : vector<64x128xf32> to vector<64x128xbf16>
      %cst_51 = arith.constant dense<0.000000e+00> : vector<128x128xf32>
      %66 = tpu.matmul %64, %65, %cst_51 {dimension_numbers = #tpu.dot_dimension_numbers<[1], [0], [0], [1], [0, 0, 1, 1], [], []>} : vector<128x64xbf16>, vector<64x128xbf16>, vector<128x128xf32> -> vector<128x128xf32>
      %67 = arith.addf %66, %5 : vector<128x128xf32>
      %cst_52 = arith.constant 0.000000e+00 : f32
      %68 = vector.broadcast %cst_52 : f32 to vector<128x128xf32>
      %69 = arith.maximumf %67, %68 : vector<128x128xf32>
      %cst_53 = arith.constant dense<0xFF800000> : vector<128xf32>
      %70 = vector.multi_reduction <maximumf>, %69, %cst_53 [1] : vector<128x128xf32> to vector<128xf32>
      %71 = vector.shape_cast %70 : vector<128xf32> to vector<1x128xf32>
      %c4 = arith.constant 4 : index
      %c0_54 = arith.constant 0 : index
      %c0_55 = arith.constant 0 : index
      %72 = vector.load %arg2[%c4, %c0_54, %c0_55] : memref<8x8x128xbf16, #tpu.memory_space<vmem>>, vector<1x8x128xbf16>
      %73 = vector.shape_cast %72 : vector<1x8x128xbf16> to vector<8x128xbf16>
      %c0_56 = arith.constant 0 : index
      %c0_57 = arith.constant 0 : index
      %74 = vector.load %arg3[%c0_56, %c0_57] : memref<64x8xbf16, #tpu.memory_space<vmem>>, vector<64x8xbf16>
      %cst_58 = arith.constant dense<0.000000e+00> : vector<64x128xf32>
      %75 = tpu.matmul %74, %73, %cst_58 {dimension_numbers = #tpu.dot_dimension_numbers<[1], [0], [0], [1], [0, 0, 1, 1], [], []>} : vector<64x8xbf16>, vector<8x128xbf16>, vector<64x128xf32> -> vector<64x128xf32>
      %cst_59 = arith.constant 0.000000e+00 : f32
      %76 = vector.broadcast %cst_59 : f32 to vector<64x128xf32>
      %77 = arith.maximumf %75, %76 : vector<64x128xf32>
      %c0_60 = arith.constant 0 : index
      %c0_61 = arith.constant 0 : index
      %78 = vector.load %arg4[%c0_60, %c0_61] : memref<128x64xbf16, #tpu.memory_space<vmem>>, vector<128x64xbf16>
      %79 = arith.truncf %77 : vector<64x128xf32> to vector<64x128xbf16>
      %cst_62 = arith.constant dense<0.000000e+00> : vector<128x128xf32>
      %80 = tpu.matmul %78, %79, %cst_62 {dimension_numbers = #tpu.dot_dimension_numbers<[1], [0], [0], [1], [0, 0, 1, 1], [], []>} : vector<128x64xbf16>, vector<64x128xbf16>, vector<128x128xf32> -> vector<128x128xf32>
      %81 = arith.addf %80, %5 : vector<128x128xf32>
      %cst_63 = arith.constant 0.000000e+00 : f32
      %82 = vector.broadcast %cst_63 : f32 to vector<128x128xf32>
      %83 = arith.maximumf %81, %82 : vector<128x128xf32>
      %cst_64 = arith.constant dense<0xFF800000> : vector<128xf32>
      %84 = vector.multi_reduction <maximumf>, %83, %cst_64 [1] : vector<128x128xf32> to vector<128xf32>
      %85 = vector.shape_cast %84 : vector<128xf32> to vector<1x128xf32>
      %c5 = arith.constant 5 : index
      %c0_65 = arith.constant 0 : index
      %c0_66 = arith.constant 0 : index
      %86 = vector.load %arg2[%c5, %c0_65, %c0_66] : memref<8x8x128xbf16, #tpu.memory_space<vmem>>, vector<1x8x128xbf16>
      %87 = vector.shape_cast %86 : vector<1x8x128xbf16> to vector<8x128xbf16>
      %c0_67 = arith.constant 0 : index
      %c0_68 = arith.constant 0 : index
      %88 = vector.load %arg3[%c0_67, %c0_68] : memref<64x8xbf16, #tpu.memory_space<vmem>>, vector<64x8xbf16>
      %cst_69 = arith.constant dense<0.000000e+00> : vector<64x128xf32>
      %89 = tpu.matmul %88, %87, %cst_69 {dimension_numbers = #tpu.dot_dimension_numbers<[1], [0], [0], [1], [0, 0, 1, 1], [], []>} : vector<64x8xbf16>, vector<8x128xbf16>, vector<64x128xf32> -> vector<64x128xf32>
      %cst_70 = arith.constant 0.000000e+00 : f32
      %90 = vector.broadcast %cst_70 : f32 to vector<64x128xf32>
      %91 = arith.maximumf %89, %90 : vector<64x128xf32>
      %c0_71 = arith.constant 0 : index
      %c0_72 = arith.constant 0 : index
      %92 = vector.load %arg4[%c0_71, %c0_72] : memref<128x64xbf16, #tpu.memory_space<vmem>>, vector<128x64xbf16>
      %93 = arith.truncf %91 : vector<64x128xf32> to vector<64x128xbf16>
      %cst_73 = arith.constant dense<0.000000e+00> : vector<128x128xf32>
      %94 = tpu.matmul %92, %93, %cst_73 {dimension_numbers = #tpu.dot_dimension_numbers<[1], [0], [0], [1], [0, 0, 1, 1], [], []>} : vector<128x64xbf16>, vector<64x128xbf16>, vector<128x128xf32> -> vector<128x128xf32>
      %95 = arith.addf %94, %5 : vector<128x128xf32>
      %cst_74 = arith.constant 0.000000e+00 : f32
      %96 = vector.broadcast %cst_74 : f32 to vector<128x128xf32>
      %97 = arith.maximumf %95, %96 : vector<128x128xf32>
      %cst_75 = arith.constant dense<0xFF800000> : vector<128xf32>
      %98 = vector.multi_reduction <maximumf>, %97, %cst_75 [1] : vector<128x128xf32> to vector<128xf32>
      %99 = vector.shape_cast %98 : vector<128xf32> to vector<1x128xf32>
      %c6 = arith.constant 6 : index
      %c0_76 = arith.constant 0 : index
      %c0_77 = arith.constant 0 : index
      %100 = vector.load %arg2[%c6, %c0_76, %c0_77] : memref<8x8x128xbf16, #tpu.memory_space<vmem>>, vector<1x8x128xbf16>
      %101 = vector.shape_cast %100 : vector<1x8x128xbf16> to vector<8x128xbf16>
      %c0_78 = arith.constant 0 : index
      %c0_79 = arith.constant 0 : index
      %102 = vector.load %arg3[%c0_78, %c0_79] : memref<64x8xbf16, #tpu.memory_space<vmem>>, vector<64x8xbf16>
      %cst_80 = arith.constant dense<0.000000e+00> : vector<64x128xf32>
      %103 = tpu.matmul %102, %101, %cst_80 {dimension_numbers = #tpu.dot_dimension_numbers<[1], [0], [0], [1], [0, 0, 1, 1], [], []>} : vector<64x8xbf16>, vector<8x128xbf16>, vector<64x128xf32> -> vector<64x128xf32>
      %cst_81 = arith.constant 0.000000e+00 : f32
      %104 = vector.broadcast %cst_81 : f32 to vector<64x128xf32>
      %105 = arith.maximumf %103, %104 : vector<64x128xf32>
      %c0_82 = arith.constant 0 : index
      %c0_83 = arith.constant 0 : index
      %106 = vector.load %arg4[%c0_82, %c0_83] : memref<128x64xbf16, #tpu.memory_space<vmem>>, vector<128x64xbf16>
      %107 = arith.truncf %105 : vector<64x128xf32> to vector<64x128xbf16>
      %cst_84 = arith.constant dense<0.000000e+00> : vector<128x128xf32>
      %108 = tpu.matmul %106, %107, %cst_84 {dimension_numbers = #tpu.dot_dimension_numbers<[1], [0], [0], [1], [0, 0, 1, 1], [], []>} : vector<128x64xbf16>, vector<64x128xbf16>, vector<128x128xf32> -> vector<128x128xf32>
      %109 = arith.addf %108, %5 : vector<128x128xf32>
      %cst_85 = arith.constant 0.000000e+00 : f32
      %110 = vector.broadcast %cst_85 : f32 to vector<128x128xf32>
      %111 = arith.maximumf %109, %110 : vector<128x128xf32>
      %cst_86 = arith.constant dense<0xFF800000> : vector<128xf32>
      %112 = vector.multi_reduction <maximumf>, %111, %cst_86 [1] : vector<128x128xf32> to vector<128xf32>
      %113 = vector.shape_cast %112 : vector<128xf32> to vector<1x128xf32>
      %c7 = arith.constant 7 : index
      %c0_87 = arith.constant 0 : index
      %c0_88 = arith.constant 0 : index
      %114 = vector.load %arg2[%c7, %c0_87, %c0_88] : memref<8x8x128xbf16, #tpu.memory_space<vmem>>, vector<1x8x128xbf16>
      %115 = vector.shape_cast %114 : vector<1x8x128xbf16> to vector<8x128xbf16>
      %c0_89 = arith.constant 0 : index
      %c0_90 = arith.constant 0 : index
      %116 = vector.load %arg3[%c0_89, %c0_90] : memref<64x8xbf16, #tpu.memory_space<vmem>>, vector<64x8xbf16>
      %cst_91 = arith.constant dense<0.000000e+00> : vector<64x128xf32>
      %117 = tpu.matmul %116, %115, %cst_91 {dimension_numbers = #tpu.dot_dimension_numbers<[1], [0], [0], [1], [0, 0, 1, 1], [], []>} : vector<64x8xbf16>, vector<8x128xbf16>, vector<64x128xf32> -> vector<64x128xf32>
      %cst_92 = arith.constant 0.000000e+00 : f32
      %118 = vector.broadcast %cst_92 : f32 to vector<64x128xf32>
      %119 = arith.maximumf %117, %118 : vector<64x128xf32>
      %c0_93 = arith.constant 0 : index
      %c0_94 = arith.constant 0 : index
      %120 = vector.load %arg4[%c0_93, %c0_94] : memref<128x64xbf16, #tpu.memory_space<vmem>>, vector<128x64xbf16>
      %121 = arith.truncf %119 : vector<64x128xf32> to vector<64x128xbf16>
      %cst_95 = arith.constant dense<0.000000e+00> : vector<128x128xf32>
      %122 = tpu.matmul %120, %121, %cst_95 {dimension_numbers = #tpu.dot_dimension_numbers<[1], [0], [0], [1], [0, 0, 1, 1], [], []>} : vector<128x64xbf16>, vector<64x128xbf16>, vector<128x128xf32> -> vector<128x128xf32>
      %123 = arith.addf %122, %5 : vector<128x128xf32>
      %cst_96 = arith.constant 0.000000e+00 : f32
      %124 = vector.broadcast %cst_96 : f32 to vector<128x128xf32>
      %125 = arith.maximumf %123, %124 : vector<128x128xf32>
      %cst_97 = arith.constant dense<0xFF800000> : vector<128xf32>
      %126 = vector.multi_reduction <maximumf>, %125, %cst_97 [1] : vector<128x128xf32> to vector<128xf32>
      %127 = vector.shape_cast %126 : vector<128xf32> to vector<1x128xf32>
      %128 = tpu.concatenate %29, %43, %57, %71, %85, %99, %113, %127 in 0 : vector<1x128xf32>, vector<1x128xf32>, vector<1x128xf32>, vector<1x128xf32>, vector<1x128xf32>, vector<1x128xf32>, vector<1x128xf32>, vector<1x128xf32> -> vector<8x128xf32>
      %129 = arith.maximumf %15, %128 : vector<8x128xf32>
      %c0_98 = arith.constant 0 : index
      %c0_99 = arith.constant 0 : index
      %130 = vector.load %arg11[%c0_98, %c0_99] : memref<8x128xf32, #tpu.memory_space<vmem>>, vector<8x128xf32>
      tpu.vector_store %arg11[%c0_98, %c0_99], %129 {strides = array<i32>} : memref<8x128xf32, #tpu.memory_space<vmem>>, vector<8x128xf32>,
    } else {
    }
    %c0_i32_4 = arith.constant 0 : i32
    %9 = arith.cmpi eq, %arg1, %c0_i32_4 : i32
    %10 = arith.extui %9 : i1 to i32
    %c0_i32_5 = arith.constant 0 : i32
    %11 = arith.cmpi ne, %10, %c0_i32_5 : i32
    scf.if %11 {
      %c0_8 = arith.constant 0 : index
      %c0_9 = arith.constant 0 : index
      %15 = vector.load %arg11[%c0_8, %c0_9] : memref<8x128xf32, #tpu.memory_space<vmem>>, vector<8x128xf32>
      %16 = tpu.iota {dimensions = array<i32: 1>} : vector<128x128xi32>
      %c128_i32 = arith.constant 128 : i32
      %17 = arith.muli %arg1, %c128_i32 : i32
      %18 = vector.broadcast %17 : i32 to vector<128x128xi32>
      %19 = arith.addi %18, %16 : vector<128x128xi32>
      %c8_i32 = arith.constant 8 : i32
      %20 = vector.broadcast %c8_i32 : i32 to vector<128x128xi32>
      %21 = arith.cmpi slt, %19, %20 : vector<128x128xi32>
      %c0_10 = arith.constant 0 : index
      %c0_11 = arith.constant 0 : index
      %c0_12 = arith.constant 0 : index
      %22 = vector.load %arg2[%c0_10, %c0_11, %c0_12] : memref<8x8x128xbf16, #tpu.memory_space<vmem>>, vector<1x8x128xbf16>
      %23 = vector.shape_cast %22 : vector<1x8x128xbf16> to vector<8x128xbf16>
      %c0_13 = arith.constant 0 : index
      %c0_14 = arith.constant 0 : index
      %24 = vector.load %arg3[%c0_13, %c0_14] : memref<64x8xbf16, #tpu.memory_space<vmem>>, vector<64x8xbf16>
      %cst = arith.constant dense<0.000000e+00> : vector<64x128xf32>
      %25 = tpu.matmul %24, %23, %cst {dimension_numbers = #tpu.dot_dimension_numbers<[1], [0], [0], [1], [0, 0, 1, 1], [], []>} : vector<64x8xbf16>, vector<8x128xbf16>, vector<64x128xf32> -> vector<64x128xf32>
      %cst_15 = arith.constant 0.000000e+00 : f32
      %26 = vector.broadcast %cst_15 : f32 to vector<64x128xf32>
      %27 = arith.maximumf %25, %26 : vector<64x128xf32>
      %c0_16 = arith.constant 0 : index
      %c0_17 = arith.constant 0 : index
      %28 = vector.load %arg4[%c0_16, %c0_17] : memref<128x64xbf16, #tpu.memory_space<vmem>>, vector<128x64xbf16>
      %29 = arith.truncf %27 : vector<64x128xf32> to vector<64x128xbf16>
      %cst_18 = arith.constant dense<0.000000e+00> : vector<128x128xf32>
      %30 = tpu.matmul %28, %29, %cst_18 {dimension_numbers = #tpu.dot_dimension_numbers<[1], [0], [0], [1], [0, 0, 1, 1], [], []>} : vector<128x64xbf16>, vector<64x128xbf16>, vector<128x128xf32> -> vector<128x128xf32>
      %31 = arith.addf %30, %5 : vector<128x128xf32>
      %cst_19 = arith.constant 0.000000e+00 : f32
      %32 = vector.broadcast %cst_19 : f32 to vector<128x128xf32>
      %33 = arith.maximumf %31, %32 : vector<128x128xf32>
      %cst_20 = arith.constant 0.000000e+00 : f32
      %34 = vector.broadcast %cst_20 : f32 to vector<128x128xf32>
      %35 = arith.select %21, %33, %34 : vector<128x128xi1>, vector<128x128xf32>
      %cst_21 = arith.constant dense<0xFF800000> : vector<128xf32>
      %36 = vector.multi_reduction <maximumf>, %35, %cst_21 [1] : vector<128x128xf32> to vector<128xf32>
      %37 = vector.shape_cast %36 : vector<128xf32> to vector<1x128xf32>
      %c1 = arith.constant 1 : index
      %c0_22 = arith.constant 0 : index
      %c0_23 = arith.constant 0 : index
      %38 = vector.load %arg2[%c1, %c0_22, %c0_23] : memref<8x8x128xbf16, #tpu.memory_space<vmem>>, vector<1x8x128xbf16>
      %39 = vector.shape_cast %38 : vector<1x8x128xbf16> to vector<8x128xbf16>
      %c0_24 = arith.constant 0 : index
      %c0_25 = arith.constant 0 : index
      %40 = vector.load %arg3[%c0_24, %c0_25] : memref<64x8xbf16, #tpu.memory_space<vmem>>, vector<64x8xbf16>
      %cst_26 = arith.constant dense<0.000000e+00> : vector<64x128xf32>
      %41 = tpu.matmul %40, %39, %cst_26 {dimension_numbers = #tpu.dot_dimension_numbers<[1], [0], [0], [1], [0, 0, 1, 1], [], []>} : vector<64x8xbf16>, vector<8x128xbf16>, vector<64x128xf32> -> vector<64x128xf32>
      %cst_27 = arith.constant 0.000000e+00 : f32
      %42 = vector.broadcast %cst_27 : f32 to vector<64x128xf32>
      %43 = arith.maximumf %41, %42 : vector<64x128xf32>
      %c0_28 = arith.constant 0 : index
      %c0_29 = arith.constant 0 : index
      %44 = vector.load %arg4[%c0_28, %c0_29] : memref<128x64xbf16, #tpu.memory_space<vmem>>, vector<128x64xbf16>
      %45 = arith.truncf %43 : vector<64x128xf32> to vector<64x128xbf16>
      %cst_30 = arith.constant dense<0.000000e+00> : vector<128x128xf32>
      %46 = tpu.matmul %44, %45, %cst_30 {dimension_numbers = #tpu.dot_dimension_numbers<[1], [0], [0], [1], [0, 0, 1, 1], [], []>} : vector<128x64xbf16>, vector<64x128xbf16>, vector<128x128xf32> -> vector<128x128xf32>
      %47 = arith.addf %46, %5 : vector<128x128xf32>
      %cst_31 = arith.constant 0.000000e+00 : f32
      %48 = vector.broadcast %cst_31 : f32 to vector<128x128xf32>
      %49 = arith.maximumf %47, %48 : vector<128x128xf32>
      %cst_32 = arith.constant 0.000000e+00 : f32
      %50 = vector.broadcast %cst_32 : f32 to vector<128x128xf32>
      %51 = arith.select %21, %49, %50 : vector<128x128xi1>, vector<128x128xf32>
      %cst_33 = arith.constant dense<0xFF800000> : vector<128xf32>
      %52 = vector.multi_reduction <maximumf>, %51, %cst_33 [1] : vector<128x128xf32> to vector<128xf32>
      %53 = vector.shape_cast %52 : vector<128xf32> to vector<1x128xf32>
      %c2 = arith.constant 2 : index
      %c0_34 = arith.constant 0 : index
      %c0_35 = arith.constant 0 : index
      %54 = vector.load %arg2[%c2, %c0_34, %c0_35] : memref<8x8x128xbf16, #tpu.memory_space<vmem>>, vector<1x8x128xbf16>
      %55 = vector.shape_cast %54 : vector<1x8x128xbf16> to vector<8x128xbf16>
      %c0_36 = arith.constant 0 : index
      %c0_37 = arith.constant 0 : index
      %56 = vector.load %arg3[%c0_36, %c0_37] : memref<64x8xbf16, #tpu.memory_space<vmem>>, vector<64x8xbf16>
      %cst_38 = arith.constant dense<0.000000e+00> : vector<64x128xf32>
      %57 = tpu.matmul %56, %55, %cst_38 {dimension_numbers = #tpu.dot_dimension_numbers<[1], [0], [0], [1], [0, 0, 1, 1], [], []>} : vector<64x8xbf16>, vector<8x128xbf16>, vector<64x128xf32> -> vector<64x128xf32>
      %cst_39 = arith.constant 0.000000e+00 : f32
      %58 = vector.broadcast %cst_39 : f32 to vector<64x128xf32>
      %59 = arith.maximumf %57, %58 : vector<64x128xf32>
      %c0_40 = arith.constant 0 : index
      %c0_41 = arith.constant 0 : index
      %60 = vector.load %arg4[%c0_40, %c0_41] : memref<128x64xbf16, #tpu.memory_space<vmem>>, vector<128x64xbf16>
      %61 = arith.truncf %59 : vector<64x128xf32> to vector<64x128xbf16>
      %cst_42 = arith.constant dense<0.000000e+00> : vector<128x128xf32>
      %62 = tpu.matmul %60, %61, %cst_42 {dimension_numbers = #tpu.dot_dimension_numbers<[1], [0], [0], [1], [0, 0, 1, 1], [], []>} : vector<128x64xbf16>, vector<64x128xbf16>, vector<128x128xf32> -> vector<128x128xf32>
      %63 = arith.addf %62, %5 : vector<128x128xf32>
      %cst_43 = arith.constant 0.000000e+00 : f32
      %64 = vector.broadcast %cst_43 : f32 to vector<128x128xf32>
      %65 = arith.maximumf %63, %64 : vector<128x128xf32>
      %cst_44 = arith.constant 0.000000e+00 : f32
      %66 = vector.broadcast %cst_44 : f32 to vector<128x128xf32>
      %67 = arith.select %21, %65, %66 : vector<128x128xi1>, vector<128x128xf32>
      %cst_45 = arith.constant dense<0xFF800000> : vector<128xf32>
      %68 = vector.multi_reduction <maximumf>, %67, %cst_45 [1] : vector<128x128xf32> to vector<128xf32>
      %69 = vector.shape_cast %68 : vector<128xf32> to vector<1x128xf32>
      %c3 = arith.constant 3 : index
      %c0_46 = arith.constant 0 : index
      %c0_47 = arith.constant 0 : index
      %70 = vector.load %arg2[%c3, %c0_46, %c0_47] : memref<8x8x128xbf16, #tpu.memory_space<vmem>>, vector<1x8x128xbf16>
      %71 = vector.shape_cast %70 : vector<1x8x128xbf16> to vector<8x128xbf16>
      %c0_48 = arith.constant 0 : index
      %c0_49 = arith.constant 0 : index
      %72 = vector.load %arg3[%c0_48, %c0_49] : memref<64x8xbf16, #tpu.memory_space<vmem>>, vector<64x8xbf16>
      %cst_50 = arith.constant dense<0.000000e+00> : vector<64x128xf32>
      %73 = tpu.matmul %72, %71, %cst_50 {dimension_numbers = #tpu.dot_dimension_numbers<[1], [0], [0], [1], [0, 0, 1, 1], [], []>} : vector<64x8xbf16>, vector<8x128xbf16>, vector<64x128xf32> -> vector<64x128xf32>
      %cst_51 = arith.constant 0.000000e+00 : f32
      %74 = vector.broadcast %cst_51 : f32 to vector<64x128xf32>
      %75 = arith.maximumf %73, %74 : vector<64x128xf32>
      %c0_52 = arith.constant 0 : index
      %c0_53 = arith.constant 0 : index
      %76 = vector.load %arg4[%c0_52, %c0_53] : memref<128x64xbf16, #tpu.memory_space<vmem>>, vector<128x64xbf16>
      %77 = arith.truncf %75 : vector<64x128xf32> to vector<64x128xbf16>
      %cst_54 = arith.constant dense<0.000000e+00> : vector<128x128xf32>
      %78 = tpu.matmul %76, %77, %cst_54 {dimension_numbers = #tpu.dot_dimension_numbers<[1], [0], [0], [1], [0, 0, 1, 1], [], []>} : vector<128x64xbf16>, vector<64x128xbf16>, vector<128x128xf32> -> vector<128x128xf32>
      %79 = arith.addf %78, %5 : vector<128x128xf32>
      %cst_55 = arith.constant 0.000000e+00 : f32
      %80 = vector.broadcast %cst_55 : f32 to vector<128x128xf32>
      %81 = arith.maximumf %79, %80 : vector<128x128xf32>
      %cst_56 = arith.constant 0.000000e+00 : f32
      %82 = vector.broadcast %cst_56 : f32 to vector<128x128xf32>
      %83 = arith.select %21, %81, %82 : vector<128x128xi1>, vector<128x128xf32>
      %cst_57 = arith.constant dense<0xFF800000> : vector<128xf32>
      %84 = vector.multi_reduction <maximumf>, %83, %cst_57 [1] : vector<128x128xf32> to vector<128xf32>
      %85 = vector.shape_cast %84 : vector<128xf32> to vector<1x128xf32>
      %c4 = arith.constant 4 : index
      %c0_58 = arith.constant 0 : index
      %c0_59 = arith.constant 0 : index
      %86 = vector.load %arg2[%c4, %c0_58, %c0_59] : memref<8x8x128xbf16, #tpu.memory_space<vmem>>, vector<1x8x128xbf16>
      %87 = vector.shape_cast %86 : vector<1x8x128xbf16> to vector<8x128xbf16>
      %c0_60 = arith.constant 0 : index
      %c0_61 = arith.constant 0 : index
      %88 = vector.load %arg3[%c0_60, %c0_61] : memref<64x8xbf16, #tpu.memory_space<vmem>>, vector<64x8xbf16>
      %cst_62 = arith.constant dense<0.000000e+00> : vector<64x128xf32>
      %89 = tpu.matmul %88, %87, %cst_62 {dimension_numbers = #tpu.dot_dimension_numbers<[1], [0], [0], [1], [0, 0, 1, 1], [], []>} : vector<64x8xbf16>, vector<8x128xbf16>, vector<64x128xf32> -> vector<64x128xf32>
      %cst_63 = arith.constant 0.000000e+00 : f32
      %90 = vector.broadcast %cst_63 : f32 to vector<64x128xf32>
      %91 = arith.maximumf %89, %90 : vector<64x128xf32>
      %c0_64 = arith.constant 0 : index
      %c0_65 = arith.constant 0 : index
      %92 = vector.load %arg4[%c0_64, %c0_65] : memref<128x64xbf16, #tpu.memory_space<vmem>>, vector<128x64xbf16>
      %93 = arith.truncf %91 : vector<64x128xf32> to vector<64x128xbf16>
      %cst_66 = arith.constant dense<0.000000e+00> : vector<128x128xf32>
      %94 = tpu.matmul %92, %93, %cst_66 {dimension_numbers = #tpu.dot_dimension_numbers<[1], [0], [0], [1], [0, 0, 1, 1], [], []>} : vector<128x64xbf16>, vector<64x128xbf16>, vector<128x128xf32> -> vector<128x128xf32>
      %95 = arith.addf %94, %5 : vector<128x128xf32>
      %cst_67 = arith.constant 0.000000e+00 : f32
      %96 = vector.broadcast %cst_67 : f32 to vector<128x128xf32>
      %97 = arith.maximumf %95, %96 : vector<128x128xf32>
      %cst_68 = arith.constant 0.000000e+00 : f32
      %98 = vector.broadcast %cst_68 : f32 to vector<128x128xf32>
      %99 = arith.select %21, %97, %98 : vector<128x128xi1>, vector<128x128xf32>
      %cst_69 = arith.constant dense<0xFF800000> : vector<128xf32>
      %100 = vector.multi_reduction <maximumf>, %99, %cst_69 [1] : vector<128x128xf32> to vector<128xf32>
      %101 = vector.shape_cast %100 : vector<128xf32> to vector<1x128xf32>
      %c5 = arith.constant 5 : index
      %c0_70 = arith.constant 0 : index
      %c0_71 = arith.constant 0 : index
      %102 = vector.load %arg2[%c5, %c0_70, %c0_71] : memref<8x8x128xbf16, #tpu.memory_space<vmem>>, vector<1x8x128xbf16>
      %103 = vector.shape_cast %102 : vector<1x8x128xbf16> to vector<8x128xbf16>
      %c0_72 = arith.constant 0 : index
      %c0_73 = arith.constant 0 : index
      %104 = vector.load %arg3[%c0_72, %c0_73] : memref<64x8xbf16, #tpu.memory_space<vmem>>, vector<64x8xbf16>
      %cst_74 = arith.constant dense<0.000000e+00> : vector<64x128xf32>
      %105 = tpu.matmul %104, %103, %cst_74 {dimension_numbers = #tpu.dot_dimension_numbers<[1], [0], [0], [1], [0, 0, 1, 1], [], []>} : vector<64x8xbf16>, vector<8x128xbf16>, vector<64x128xf32> -> vector<64x128xf32>
      %cst_75 = arith.constant 0.000000e+00 : f32
      %106 = vector.broadcast %cst_75 : f32 to vector<64x128xf32>
      %107 = arith.maximumf %105, %106 : vector<64x128xf32>
      %c0_76 = arith.constant 0 : index
      %c0_77 = arith.constant 0 : index
      %108 = vector.load %arg4[%c0_76, %c0_77] : memref<128x64xbf16, #tpu.memory_space<vmem>>, vector<128x64xbf16>
      %109 = arith.truncf %107 : vector<64x128xf32> to vector<64x128xbf16>
      %cst_78 = arith.constant dense<0.000000e+00> : vector<128x128xf32>
      %110 = tpu.matmul %108, %109, %cst_78 {dimension_numbers = #tpu.dot_dimension_numbers<[1], [0], [0], [1], [0, 0, 1, 1], [], []>} : vector<128x64xbf16>, vector<64x128xbf16>, vector<128x128xf32> -> vector<128x128xf32>
      %111 = arith.addf %110, %5 : vector<128x128xf32>
      %cst_79 = arith.constant 0.000000e+00 : f32
      %112 = vector.broadcast %cst_79 : f32 to vector<128x128xf32>
      %113 = arith.maximumf %111, %112 : vector<128x128xf32>
      %cst_80 = arith.constant 0.000000e+00 : f32
      %114 = vector.broadcast %cst_80 : f32 to vector<128x128xf32>
      %115 = arith.select %21, %113, %114 : vector<128x128xi1>, vector<128x128xf32>
      %cst_81 = arith.constant dense<0xFF800000> : vector<128xf32>
      %116 = vector.multi_reduction <maximumf>, %115, %cst_81 [1] : vector<128x128xf32> to vector<128xf32>
      %117 = vector.shape_cast %116 : vector<128xf32> to vector<1x128xf32>
      %c6 = arith.constant 6 : index
      %c0_82 = arith.constant 0 : index
      %c0_83 = arith.constant 0 : index
      %118 = vector.load %arg2[%c6, %c0_82, %c0_83] : memref<8x8x128xbf16, #tpu.memory_space<vmem>>, vector<1x8x128xbf16>
      %119 = vector.shape_cast %118 : vector<1x8x128xbf16> to vector<8x128xbf16>
      %c0_84 = arith.constant 0 : index
      %c0_85 = arith.constant 0 : index
      %120 = vector.load %arg3[%c0_84, %c0_85] : memref<64x8xbf16, #tpu.memory_space<vmem>>, vector<64x8xbf16>
      %cst_86 = arith.constant dense<0.000000e+00> : vector<64x128xf32>
      %121 = tpu.matmul %120, %119, %cst_86 {dimension_numbers = #tpu.dot_dimension_numbers<[1], [0], [0], [1], [0, 0, 1, 1], [], []>} : vector<64x8xbf16>, vector<8x128xbf16>, vector<64x128xf32> -> vector<64x128xf32>
      %cst_87 = arith.constant 0.000000e+00 : f32
      %122 = vector.broadcast %cst_87 : f32 to vector<64x128xf32>
      %123 = arith.maximumf %121, %122 : vector<64x128xf32>
      %c0_88 = arith.constant 0 : index
      %c0_89 = arith.constant 0 : index
      %124 = vector.load %arg4[%c0_88, %c0_89] : memref<128x64xbf16, #tpu.memory_space<vmem>>, vector<128x64xbf16>
      %125 = arith.truncf %123 : vector<64x128xf32> to vector<64x128xbf16>
      %cst_90 = arith.constant dense<0.000000e+00> : vector<128x128xf32>
      %126 = tpu.matmul %124, %125, %cst_90 {dimension_numbers = #tpu.dot_dimension_numbers<[1], [0], [0], [1], [0, 0, 1, 1], [], []>} : vector<128x64xbf16>, vector<64x128xbf16>, vector<128x128xf32> -> vector<128x128xf32>
      %127 = arith.addf %126, %5 : vector<128x128xf32>
      %cst_91 = arith.constant 0.000000e+00 : f32
      %128 = vector.broadcast %cst_91 : f32 to vector<128x128xf32>
      %129 = arith.maximumf %127, %128 : vector<128x128xf32>
      %cst_92 = arith.constant 0.000000e+00 : f32
      %130 = vector.broadcast %cst_92 : f32 to vector<128x128xf32>
      %131 = arith.select %21, %129, %130 : vector<128x128xi1>, vector<128x128xf32>
      %cst_93 = arith.constant dense<0xFF800000> : vector<128xf32>
      %132 = vector.multi_reduction <maximumf>, %131, %cst_93 [1] : vector<128x128xf32> to vector<128xf32>
      %133 = vector.shape_cast %132 : vector<128xf32> to vector<1x128xf32>
      %c7 = arith.constant 7 : index
      %c0_94 = arith.constant 0 : index
      %c0_95 = arith.constant 0 : index
      %134 = vector.load %arg2[%c7, %c0_94, %c0_95] : memref<8x8x128xbf16, #tpu.memory_space<vmem>>, vector<1x8x128xbf16>
      %135 = vector.shape_cast %134 : vector<1x8x128xbf16> to vector<8x128xbf16>
      %c0_96 = arith.constant 0 : index
      %c0_97 = arith.constant 0 : index
      %136 = vector.load %arg3[%c0_96, %c0_97] : memref<64x8xbf16, #tpu.memory_space<vmem>>, vector<64x8xbf16>
      %cst_98 = arith.constant dense<0.000000e+00> : vector<64x128xf32>
      %137 = tpu.matmul %136, %135, %cst_98 {dimension_numbers = #tpu.dot_dimension_numbers<[1], [0], [0], [1], [0, 0, 1, 1], [], []>} : vector<64x8xbf16>, vector<8x128xbf16>, vector<64x128xf32> -> vector<64x128xf32>
      %cst_99 = arith.constant 0.000000e+00 : f32
      %138 = vector.broadcast %cst_99 : f32 to vector<64x128xf32>
      %139 = arith.maximumf %137, %138 : vector<64x128xf32>
      %c0_100 = arith.constant 0 : index
      %c0_101 = arith.constant 0 : index
      %140 = vector.load %arg4[%c0_100, %c0_101] : memref<128x64xbf16, #tpu.memory_space<vmem>>, vector<128x64xbf16>
      %141 = arith.truncf %139 : vector<64x128xf32> to vector<64x128xbf16>
      %cst_102 = arith.constant dense<0.000000e+00> : vector<128x128xf32>
      %142 = tpu.matmul %140, %141, %cst_102 {dimension_numbers = #tpu.dot_dimension_numbers<[1], [0], [0], [1], [0, 0, 1, 1], [], []>} : vector<128x64xbf16>, vector<64x128xbf16>, vector<128x128xf32> -> vector<128x128xf32>
      %143 = arith.addf %142, %5 : vector<128x128xf32>
      %cst_103 = arith.constant 0.000000e+00 : f32
      %144 = vector.broadcast %cst_103 : f32 to vector<128x128xf32>
      %145 = arith.maximumf %143, %144 : vector<128x128xf32>
      %cst_104 = arith.constant 0.000000e+00 : f32
      %146 = vector.broadcast %cst_104 : f32 to vector<128x128xf32>
      %147 = arith.select %21, %145, %146 : vector<128x128xi1>, vector<128x128xf32>
      %cst_105 = arith.constant dense<0xFF800000> : vector<128xf32>
      %148 = vector.multi_reduction <maximumf>, %147, %cst_105 [1] : vector<128x128xf32> to vector<128xf32>
      %149 = vector.shape_cast %148 : vector<128xf32> to vector<1x128xf32>
      %150 = tpu.concatenate %37, %53, %69, %85, %101, %117, %133, %149 in 0 : vector<1x128xf32>, vector<1x128xf32>, vector<1x128xf32>, vector<1x128xf32>, vector<1x128xf32>, vector<1x128xf32>, vector<1x128xf32>, vector<1x128xf32> -> vector<8x128xf32>
      %151 = arith.maximumf %15, %150 : vector<8x128xf32>
      %c0_106 = arith.constant 0 : index
      %c0_107 = arith.constant 0 : index
      %152 = vector.load %arg11[%c0_106, %c0_107] : memref<8x128xf32, #tpu.memory_space<vmem>>, vector<8x128xf32>
      tpu.vector_store %arg11[%c0_106, %c0_107], %151 {strides = array<i32>} : memref<8x128xf32, #tpu.memory_space<vmem>>, vector<8x128xf32>,
    } else {
    }
    %c0_i32_6 = arith.constant 0 : i32
    %12 = arith.cmpi eq, %arg1, %c0_i32_6 : i32
    %13 = arith.extui %12 : i1 to i32
    %c0_i32_7 = arith.constant 0 : i32
    %14 = arith.cmpi ne, %13, %c0_i32_7 : i32
    scf.if %14 {
      %c0_8 = arith.constant 0 : index
      %c0_9 = arith.constant 0 : index
      %15 = vector.load %arg11[%c0_8, %c0_9] : memref<8x128xf32, #tpu.memory_space<vmem>>, vector<8x128xf32>
      %c0_10 = arith.constant 0 : index
      %c0_11 = arith.constant 0 : index
      %16 = vector.load %arg6[%c0_10, %c0_11] : memref<128x64xf32, #tpu.memory_space<vmem>>, vector<128x64xf32>
      %cst = arith.constant dense<0.000000e+00> : vector<8x64xf32>
      %17 = tpu.matmul %15, %16, %cst {dimension_numbers = #tpu.dot_dimension_numbers<[1], [0], [0], [1], [0, 0, 1, 1], [], []>} : vector<8x128xf32>, vector<128x64xf32>, vector<8x64xf32> -> vector<8x64xf32>
      %c0_12 = arith.constant 0 : index
      %c0_13 = arith.constant 0 : index
      %18 = vector.load %arg7[%c0_12, %c0_13] : memref<1x64xf32, #tpu.memory_space<vmem>>, vector<1x64xf32>
      %19 = vector.broadcast %18 : vector<1x64xf32> to vector<8x64xf32>
      %20 = arith.addf %17, %19 : vector<8x64xf32>
      %cst_14 = arith.constant 0.000000e+00 : f32
      %21 = vector.broadcast %cst_14 : f32 to vector<8x64xf32>
      %22 = arith.maximumf %20, %21 : vector<8x64xf32>
      %c0_15 = arith.constant 0 : index
      %c0_16 = arith.constant 0 : index
      %23 = vector.load %arg8[%c0_15, %c0_16] : memref<64x128xf32, #tpu.memory_space<vmem>>, vector<64x128xf32>
      %cst_17 = arith.constant dense<0.000000e+00> : vector<8x128xf32>
      %24 = tpu.matmul %22, %23, %cst_17 {dimension_numbers = #tpu.dot_dimension_numbers<[1], [0], [0], [1], [0, 0, 1, 1], [], []>} : vector<8x64xf32>, vector<64x128xf32>, vector<8x128xf32> -> vector<8x128xf32>
      %c0_18 = arith.constant 0 : index
      %c0_19 = arith.constant 0 : index
      %25 = vector.load %arg9[%c0_18, %c0_19] : memref<1x128xf32, #tpu.memory_space<vmem>>, vector<1x128xf32>
      %26 = vector.broadcast %25 : vector<1x128xf32> to vector<8x128xf32>
      %27 = arith.addf %24, %26 : vector<8x128xf32>
      %28 = arith.mulf %27, %27 : vector<8x128xf32>
      %cst_20 = arith.constant dense<0.000000e+00> : vector<8xf32>
      %29 = vector.multi_reduction <add>, %28, %cst_20 [1] : vector<8x128xf32> to vector<8xf32>
      %30 = vector.shape_cast %29 : vector<8xf32> to vector<8x1xf32>
      %31 = math.sqrt %30 : vector<8x1xf32>
      %cst_21 = arith.constant 9.99999996E-13 : f32
      %32 = vector.broadcast %cst_21 : f32 to vector<8x1xf32>
      %33 = arith.maximumf %31, %32 : vector<8x1xf32>
      %34 = vector.broadcast %33 : vector<8x1xf32> to vector<8x128xf32>
      %35 = arith.divf %27, %34 : vector<8x128xf32>
      %c0_22 = arith.constant 0 : index
      %c0_23 = arith.constant 0 : index
      %36 = vector.load %arg10[%c0_22, %c0_23] : memref<8x128xf32, #tpu.memory_space<vmem>>, vector<8x128xf32>
      tpu.vector_store %arg10[%c0_22, %c0_23], %35 {strides = array<i32>} : memref<8x128xf32, #tpu.memory_space<vmem>>, vector<8x128xf32>,
    } else {
    }
    return
  }
  func.func @transform_0(%arg0: i32, %arg1: i32) -> (i32, i32, i32) {
    %c0_i32 = arith.constant 0 : i32
    %c0_i32_0 = arith.constant 0 : i32
    return %arg0, %c0_i32, %arg1 : i32, i32, i32
  }
  func.func @transform_1(%arg0: i32, %arg1: i32) -> (i32, i32) {
    %c0_i32 = arith.constant 0 : i32
    %c0_i32_0 = arith.constant 0 : i32
    %c0_i32_1 = arith.constant 0 : i32
    return %c0_i32, %c0_i32_0 : i32, i32
  }
  func.func @transform_2(%arg0: i32, %arg1: i32) -> (i32, i32) {
    %c0_i32 = arith.constant 0 : i32
    %c0_i32_0 = arith.constant 0 : i32
    %c0_i32_1 = arith.constant 0 : i32
    return %c0_i32, %c0_i32_0 : i32, i32
  }
  func.func @transform_3(%arg0: i32, %arg1: i32) -> (i32, i32) {
    %c0_i32 = arith.constant 0 : i32
    %c0_i32_0 = arith.constant 0 : i32
    %c0_i32_1 = arith.constant 0 : i32
    return %c0_i32, %c0_i32_0 : i32, i32
  }
  func.func @transform_4(%arg0: i32, %arg1: i32) -> (i32, i32) {
    %c0_i32 = arith.constant 0 : i32
    %c0_i32_0 = arith.constant 0 : i32
    %c0_i32_1 = arith.constant 0 : i32
    return %c0_i32, %c0_i32_0 : i32, i32
  }
  func.func @transform_5(%arg0: i32, %arg1: i32) -> (i32, i32) {
    %c0_i32 = arith.constant 0 : i32
    %c0_i32_0 = arith.constant 0 : i32
    %c0_i32_1 = arith.constant 0 : i32
    return %c0_i32, %c0_i32_0 : i32, i32
  }
  func.func @transform_6(%arg0: i32, %arg1: i32) -> (i32, i32) {
    %c0_i32 = arith.constant 0 : i32
    %c0_i32_0 = arith.constant 0 : i32
    %c0_i32_1 = arith.constant 0 : i32
    return %c0_i32, %c0_i32_0 : i32, i32
  }
  func.func @transform_7(%arg0: i32, %arg1: i32) -> (i32, i32) {
    %c0_i32 = arith.constant 0 : i32
    %c0_i32_0 = arith.constant 0 : i32
    %c0_i32_1 = arith.constant 0 : i32
    return %c0_i32, %c0_i32_0 : i32, i32
  }
  func.func @transform_8(%arg0: i32, %arg1: i32) -> (i32, i32) {
    %c0_i32 = arith.constant 0 : i32
    %c0_i32_0 = arith.constant 0 : i32
    return %arg0, %c0_i32 : i32, i32
  }
}

</mosaic_0001>

<llo_original>
// kernel: tpu_custom_call.1
$region0: #{tpu_custom_call.1}
  #allocation0 [shape = 'u32[]', space=smem, size = 0x4, offset = 0x4, fixed_abs, tag = 'smem constant byte address 0x4 - core index']
  #allocation1 [shape = 'u32[144,128]{1,0:T(1,128)}', space=vmem, size = 0x12000, scoped, tag = 'internal scratch']
  #allocation2 [shape = 'f32[8,128]{1,0:T(8,128)}', space=vmem, size = 0x1000, scoped, tag = 'scratch operand']
  %s0 = inlined_call_operand.vmem [shape: bf16[8,8,128], index: 0, kind: input, shape index: {}]
  %s1 = inlined_call_operand.vmem [shape: bf16[64,8], index: 1, kind: input, shape index: {}]
  %s2 = inlined_call_operand.vmem [shape: bf16[128,64], index: 2, kind: input, shape index: {}]
  %s3 = inlined_call_operand.vmem [shape: f32[128,1], index: 3, kind: input, shape index: {}]
  %s4 = inlined_call_operand.vmem [shape: f32[128,64], index: 4, kind: input, shape index: {}]
  %s5 = inlined_call_operand.vmem [shape: f32[1,64], index: 5, kind: input, shape index: {}]
  %s6 = inlined_call_operand.vmem [shape: f32[64,128], index: 6, kind: input, shape index: {}]
  %s7 = inlined_call_operand.vmem [shape: f32[1,128], index: 7, kind: input, shape index: {}]
  %s8 = inlined_call_operand.hbm [shape: f32[8,128], index: 8, kind: output, shape index: {}]
  %s9 = sld [smem:[#allocation0]]
  $region54: #{tpu_custom_call.1} parent=0
    _
  %s11 = ssub.s32 1, %s9
  %s12 = scalar_select 0, %s11, %s9
  $region1: #{tpu_custom_call.1} parent=0
    #allocation3 [shape = 'u8[4096]{0}', space=vmem, size = 0x1000, scoped, tag = 'output window, operand 0, single buffered']
    #allocation4 [shape = 's32[1]{0}', space=sflag, size = 0x4, scoped, tag = 'scoped memory for tpu_custom_call.1']
    %13 = vsyncpa [#allocation4], 0
    // Predicated region
    $region2: #{tpu_custom_call.1} parent=1 // pred_check
      _
    $region3: #{tpu_custom_call.1} parent=1 // pred_check_branch
      %15 = sbr.rel (0) target = $region5
    $region4: #{tpu_custom_call.1} parent=1 // pred_region
      _
    $region5: #{tpu_custom_call.1} parent=1 // pred_fallthru
      _
    // Predicated region
    $region6: #{tpu_custom_call.1} parent=1 // pred_check
      _
    $region7: #{tpu_custom_call.1} parent=1 // pred_check_branch
      %17 = sbr.rel (0) target = $region9
    $region8: #{tpu_custom_call.1} parent=1 // pred_region
      _
    $region9: #{tpu_custom_call.1} parent=1 // pred_fallthru
      _
    // Predicated region
    $region10: #{tpu_custom_call.1} parent=1 // pred_check
      _
    $region11: #{tpu_custom_call.1} parent=1 // pred_check_branch
      %19 = sbr.rel (0) target = $region13
    $region12: #{tpu_custom_call.1} parent=1 // pred_region
      _
    $region13: #{tpu_custom_call.1} parent=1 // pred_fallthru
      _
    // Predicated region
    $region14: #{tpu_custom_call.1} parent=1 // pred_check
      _
    $region15: #{tpu_custom_call.1} parent=1 // pred_check_branch
      %21 = sbr.rel (0) target = $region17
    $region16: #{tpu_custom_call.1} parent=1 // pred_region
      _
    $region17: #{tpu_custom_call.1} parent=1 // pred_fallthru
      _
    // Predicated region
    $region18: #{tpu_custom_call.1} parent=1 // pred_check
      _
    $region19: #{tpu_custom_call.1} parent=1 // pred_check_branch
      %23 = sbr.rel (0) target = $region21
    $region20: #{tpu_custom_call.1} parent=1 // pred_region
      _
    $region21: #{tpu_custom_call.1} parent=1 // pred_fallthru
      _
    // Predicated region
    $region22: #{tpu_custom_call.1} parent=1 // pred_check
      _
    $region23: #{tpu_custom_call.1} parent=1 // pred_check_branch
      %25 = sbr.rel (0) target = $region25
    $region24: #{tpu_custom_call.1} parent=1 // pred_region
      _
    $region25: #{tpu_custom_call.1} parent=1 // pred_fallthru
      _
    // Predicated region
    $region26: #{tpu_custom_call.1} parent=1 // pred_check
      _
    $region27: #{tpu_custom_call.1} parent=1 // pred_check_branch
      %27 = sbr.rel (0) target = $region29
    $region28: #{tpu_custom_call.1} parent=1 // pred_region
      _
    $region29: #{tpu_custom_call.1} parent=1 // pred_fallthru
      _
    // Predicated region
    $region30: #{tpu_custom_call.1} parent=1 // pred_check
      _
    $region31: #{tpu_custom_call.1} parent=1 // pred_check_branch
      %29 = sbr.rel (0) target = $region33
    $region32: #{tpu_custom_call.1} parent=1 // pred_region
      _
    $region33: #{tpu_custom_call.1} parent=1 // pred_fallthru
      _
    %p31 = scmp.eq.s32.totalorder 0, 0
    // Predicated region
    $region34: #{tpu_custom_call.1} parent=1 // pred_check
      %p32 = pneg %p31
    $region35: #{tpu_custom_call.1} parent=1 // pred_check_branch
      %34 = sbr.rel (%p32) target = $region37
    $region36: #{tpu_custom_call.1} parent=1 // pred_region
      %35 = vst [vmem:[#allocation2] sm:$0xff] 0.0
    $region37: #{tpu_custom_call.1} parent=1 // pred_fallthru
      _
    %v36 = vld [vmem:[%s3] sm:$0xff]
    %v37 = vld [vmem:[%s3 + $0x8] sm:$0xff]
    %v38 = vld [vmem:[%s3 + $0x10] sm:$0xff]
    %v39 = vld [vmem:[%s3 + $0x18] sm:$0xff]
    %v40 = vld [vmem:[%s3 + $0x20] sm:$0xff]
    %v41 = vld [vmem:[%s3 + $0x28] sm:$0xff]
    %v42 = vld [vmem:[%s3 + $0x30] sm:$0xff]
    %v43 = vld [vmem:[%s3 + $0x38] sm:$0xff]
    %v44 = vld [vmem:[%s3 + $0x40] sm:$0xff]
    %v45 = vld [vmem:[%s3 + $0x48] sm:$0xff]
    %v46 = vld [vmem:[%s3 + $0x50] sm:$0xff]
    %v47 = vld [vmem:[%s3 + $0x58] sm:$0xff]
    %v48 = vld [vmem:[%s3 + $0x60] sm:$0xff]
    %v49 = vld [vmem:[%s3 + $0x68] sm:$0xff]
    %v50 = vld [vmem:[%s3 + $0x70] sm:$0xff]
    %v51 = vld [vmem:[%s3 + $0x78] sm:$0xff]
    %53 = vset.pattern.permute.xlu0 0
    %54 = vperm.xlu0 %53, %v36
    %v55 = vpop.permute.xlu0 %54
    %58 = vset.pattern.permute.xlu0 0
    %59 = vperm.xlu0 %58, %v37
    %v60 = vpop.permute.xlu0 %59
    %63 = vset.pattern.permute.xlu0 0
    %64 = vperm.xlu0 %63, %v38
    %v65 = vpop.permute.xlu0 %64
    %68 = vset.pattern.permute.xlu0 0
    %69 = vperm.xlu0 %68, %v39
    %v70 = vpop.permute.xlu0 %69
    %73 = vset.pattern.permute.xlu0 0
    %74 = vperm.xlu0 %73, %v40
    %v75 = vpop.permute.xlu0 %74
    %78 = vset.pattern.permute.xlu0 0
    %79 = vperm.xlu0 %78, %v41
    %v80 = vpop.permute.xlu0 %79
    %83 = vset.pattern.permute.xlu0 0
    %84 = vperm.xlu0 %83, %v42
    %v85 = vpop.permute.xlu0 %84
    %88 = vset.pattern.permute.xlu0 0
    %89 = vperm.xlu0 %88, %v43
    %v90 = vpop.permute.xlu0 %89
    %93 = vset.pattern.permute.xlu0 0
    %94 = vperm.xlu0 %93, %v44
    %v95 = vpop.permute.xlu0 %94
    %98 = vset.pattern.permute.xlu0 0
    %99 = vperm.xlu0 %98, %v45
    %v100 = vpop.permute.xlu0 %99
    %103 = vset.pattern.permute.xlu0 0
    %104 = vperm.xlu0 %103, %v46
    %v105 = vpop.permute.xlu0 %104
    %108 = vset.pattern.permute.xlu0 0
    %109 = vperm.xlu0 %108, %v47
    %v110 = vpop.permute.xlu0 %109
    %113 = vset.pattern.permute.xlu0 0
    %114 = vperm.xlu0 %113, %v48
    %v115 = vpop.permute.xlu0 %114
    %118 = vset.pattern.permute.xlu0 0
    %119 = vperm.xlu0 %118, %v49
    %v120 = vpop.permute.xlu0 %119
    %123 = vset.pattern.permute.xlu0 0
    %124 = vperm.xlu0 %123, %v50
    %v125 = vpop.permute.xlu0 %124
    %128 = vset.pattern.permute.xlu0 0
    %129 = vperm.xlu0 %128, %v51
    %v130 = vpop.permute.xlu0 %129
    %p132 = scmp.lt.s32.totalorder 0, 0
    // Predicated region
    $region38: #{tpu_custom_call.1} parent=1 // pred_check
      %p133 = pneg %p132
    $region39: #{tpu_custom_call.1} parent=1 // pred_check_branch
      %135 = sbr.rel (%p133) target = $region41
    $region40: #{tpu_custom_call.1} parent=1 // pred_region
      %v136 = vld [vmem:[#allocation2] sm:$0xff]
      %v137 = vld [vmem:[%s0] sm:$0xf]
      %v138 = vld [vmem:[%s1] sm:$0xf]
      %v139 = vld [vmem:[%s1 + $0x4] sm:$0xf]
      %v140 = vld [vmem:[%s1 + $0x8] sm:$0xf]
      %v141 = vld [vmem:[%s1 + $0xc] sm:$0xf]
      %v142 = vld [vmem:[%s1 + $0x10] sm:$0xf]
      %v143 = vld [vmem:[%s1 + $0x14] sm:$0xf]
      %v144 = vld [vmem:[%s1 + $0x18] sm:$0xf]
      %v145 = vld [vmem:[%s1 + $0x1c] sm:$0xf]
      %v154 = vunpack.c.l.b16 %v138
      %v155 = vunpack.c.l.b16 %v139
      %v156 = vunpack.c.l.b16 %v140
      %v157 = vunpack.c.l.b16 %v141
      %v158 = vunpack.c.l.b16 %v142
      %v159 = vunpack.c.l.b16 %v143
      %v160 = vunpack.c.l.b16 %v144
      %v161 = vunpack.c.l.b16 %v145
      %v162 = vpack.c.b16 %v155, %v154
      %v163 = vpack.c.b16 %v157, %v156
      %v164 = vpack.c.b16 %v159, %v158
      %v165 = vpack.c.b16 %v161, %v160
      %vm166 = vcmask 64512
      %v168 = vsel %vm166, %v162, 0
      %v171 = vsel %vm166, %v163, 0
      %v174 = vsel %vm166, %v164, 0
      %v177 = vsel %vm166, %v165, 0
      %vm179 = vcmask 1043456
      %v181 = vsel %vm179, %v137, 0
      %183 = vmatprep.subr.bf16.mxu0 0
      %184 = vmatpush1.bf16.msra.mxu0 %v181
      %185 = vmatprep.subr.bf16.mxu0 0
      %186 = vmatpush1.bf16.msra.mxu0 0
      %187 = vmatprep.subr.bf16.mxu0 0
      %188 = vmatpush1.bf16.msra.mxu0 0
      %189 = vmatprep.subr.bf16.mxu0 0
      %190 = vmatpush1.bf16.msra.mxu0 0
      %191 = vmatprep.subr.bf16.mxu0 0
      %192 = vmatpush1.bf16.msra.mxu0 0
      %193 = vmatprep.subr.bf16.mxu0 0
      %194 = vmatpush1.bf16.msra.mxu0 0
      %195 = vmatprep.subr.bf16.mxu0 0
      %196 = vmatpush1.bf16.msra.mxu0 0
      %197 = vmatprep.subr.bf16.mxu0 0
      %198 = vmatpush1.bf16.msra.mxu0 0
      %199 = vmatprep.subr.bf16.mxu0 0
      %200 = vmatpush1.bf16.msra.mxu0 0
      %201 = vmatprep.subr.bf16.mxu0 0
      %202 = vmatpush1.bf16.msra.mxu0 0
      %203 = vmatprep.subr.bf16.mxu0 0
      %204 = vmatpush1.bf16.msra.mxu0 0
      %205 = vmatprep.subr.bf16.mxu0 0
      %206 = vmatpush1.bf16.msra.mxu0 0
      %207 = vmatprep.subr.bf16.mxu0 0
      %208 = vmatpush1.bf16.msra.mxu0 0
      %209 = vmatprep.subr.bf16.mxu0 0
      %210 = vmatpush1.bf16.msra.mxu0 0
      %211 = vmatprep.subr.bf16.mxu0 0
      %212 = vmatpush1.bf16.msra.mxu0 0
      %213 = vmatprep.subr.bf16.mxu0 0
      %214 = vmatpush1.bf16.msra.mxu0 0
      %215 = vmatprep.mubr.bf16.mxu0 0
      %216 = vmatmul.mubr.bf16.gmra.mrb[0].mxu0 %v168
      %v217 = vpop.f32.mrb[0].mxu0
      %v218 = vadd.f32 0.0, %v217
      %v219 = vpop.f32.mrb[0].mxu0
      %v220 = vpop.f32.mrb[0].mxu0
      %v221 = vadd.f32 0.0, %v220
      %v222 = vpop.f32.mrb[0].mxu0
      %223 = vmatprep.mubr.bf16.mxu0 0
      %224 = vmatmul.mubr.bf16.gmra.mrb[0].mxu0 %v171
      %v225 = vpop.f32.mrb[0].mxu0
      %v226 = vadd.f32 0.0, %v225
      %v227 = vpop.f32.mrb[0].mxu0
      %v228 = vpop.f32.mrb[0].mxu0
      %v229 = vadd.f32 0.0, %v228
      %v230 = vpop.f32.mrb[0].mxu0
      %231 = vmatprep.mubr.bf16.mxu0 0
      %232 = vmatmul.mubr.bf16.gmra.mrb[0].mxu0 %v174
      %v233 = vpop.f32.mrb[0].mxu0
      %v234 = vadd.f32 0.0, %v233
      %v235 = vpop.f32.mrb[0].mxu0
      %v236 = vpop.f32.mrb[0].mxu0
      %v237 = vadd.f32 0.0, %v236
      %v238 = vpop.f32.mrb[0].mxu0
      %239 = vmatprep.mubr.bf16.mxu0 0
      %240 = vmatmul.mubr.bf16.gmra.mrb[0].mxu0 %v177
      %v241 = vpop.f32.mrb[0].mxu0
      %v242 = vadd.f32 0.0, %v241
      %v243 = vpop.f32.mrb[0].mxu0
      %v244 = vpop.f32.mrb[0].mxu0
      %v245 = vadd.f32 0.0, %v244
      %v246 = vpop.f32.mrb[0].mxu0
      %247 = vdwg.mxu0
      %v248 = vmax.f32 %v218, 0.0
      %v249 = vmax.f32 %v221, 0.0
      %v250 = vmax.f32 %v226, 0.0
      %v251 = vmax.f32 %v229, 0.0
      %v252 = vmax.f32 %v234, 0.0
      %v253 = vmax.f32 %v237, 0.0
      %v254 = vmax.f32 %v242, 0.0
      %v255 = vmax.f32 %v245, 0.0
      %v256 = vld [vmem:[%s2] sm:$0xf]
      %v257 = vld [vmem:[%s2 + $0x4] sm:$0xf]
      %v258 = vld [vmem:[%s2 + $0x8] sm:$0xf]
      %v259 = vld [vmem:[%s2 + $0xc] sm:$0xf]
      %v260 = vld [vmem:[%s2 + $0x10] sm:$0xf]
      %v261 = vld [vmem:[%s2 + $0x14] sm:$0xf]
      %v262 = vld [vmem:[%s2 + $0x18] sm:$0xf]
      %v263 = vld [vmem:[%s2 + $0x1c] sm:$0xf]
      %v264 = vld [vmem:[%s2 + $0x20] sm:$0xf]
      %v265 = vld [vmem:[%s2 + $0x24] sm:$0xf]
      %v266 = vld [vmem:[%s2 + $0x28] sm:$0xf]
      %v267 = vld [vmem:[%s2 + $0x2c] sm:$0xf]
      %v268 = vld [vmem:[%s2 + $0x30] sm:$0xf]
      %v269 = vld [vmem:[%s2 + $0x34] sm:$0xf]
      %v270 = vld [vmem:[%s2 + $0x38] sm:$0xf]
      %v271 = vld [vmem:[%s2 + $0x3c] sm:$0xf]
      %v272 = vpack.c.bf16 %v249, %v248
      %v273 = vpack.c.bf16 %v251, %v250
      %v274 = vpack.c.bf16 %v253, %v252
      %v275 = vpack.c.bf16 %v255, %v254
      %v292 = vunpack.c.l.b16 %v256
      %v293 = vunpack.c.l.b16 %v257
      %v294 = vunpack.c.l.b16 %v258
      %v295 = vunpack.c.l.b16 %v259
      %v296 = vunpack.c.l.b16 %v260
      %v297 = vunpack.c.l.b16 %v261
      %v298 = vunpack.c.l.b16 %v262
      %v299 = vunpack.c.l.b16 %v263
      %v300 = vunpack.c.l.b16 %v264
      %v301 = vunpack.c.l.b16 %v265
      %v302 = vunpack.c.l.b16 %v266
      %v303 = vunpack.c.l.b16 %v267
      %v304 = vunpack.c.l.b16 %v268
      %v305 = vunpack.c.l.b16 %v269
      %v306 = vunpack.c.l.b16 %v270
      %v307 = vunpack.c.l.b16 %v271
      %v308 = vpack.c.b16 %v293, %v292
      %v309 = vpack.c.b16 %v295, %v294
      %v310 = vpack.c.b16 %v297, %v296
      %v311 = vpack.c.b16 %v299, %v298
      %v312 = vpack.c.b16 %v301, %v300
      %v313 = vpack.c.b16 %v303, %v302
      %v314 = vpack.c.b16 %v305, %v304
      %v315 = vpack.c.b16 %v307, %v306
      %vm316 = vcmask 523264
      %v318 = vsel %vm316, %v308, 0
      %v321 = vsel %vm316, %v309, 0
      %v324 = vsel %vm316, %v310, 0
      %v327 = vsel %vm316, %v311, 0
      %v330 = vsel %vm316, %v312, 0
      %v333 = vsel %vm316, %v313, 0
      %v336 = vsel %vm316, %v314, 0
      %v339 = vsel %vm316, %v315, 0
      %341 = vmatprep.subr.bf16.mxu0 0
      %342 = vmatpush1.bf16.msra.mxu0 %v272
      %343 = vmatprep.subr.bf16.mxu0 0
      %344 = vmatpush1.bf16.msra.mxu0 %v273
      %345 = vmatprep.subr.bf16.mxu0 0
      %346 = vmatpush1.bf16.msra.mxu0 %v274
      %347 = vmatprep.subr.bf16.mxu0 0
      %348 = vmatpush1.bf16.msra.mxu0 %v275
      %349 = vmatprep.subr.bf16.mxu0 0
      %350 = vmatpush1.bf16.msra.mxu0 0
      %351 = vmatprep.subr.bf16.mxu0 0
      %352 = vmatpush1.bf16.msra.mxu0 0
      %353 = vmatprep.subr.bf16.mxu0 0
      %354 = vmatpush1.bf16.msra.mxu0 0
      %355 = vmatprep.subr.bf16.mxu0 0
      %356 = vmatpush1.bf16.msra.mxu0 0
      %357 = vmatprep.subr.bf16.mxu0 0
      %358 = vmatpush1.bf16.msra.mxu0 0
      %359 = vmatprep.subr.bf16.mxu0 0
      %360 = vmatpush1.bf16.msra.mxu0 0
      %361 = vmatprep.subr.bf16.mxu0 0
      %362 = vmatpush1.bf16.msra.mxu0 0
      %363 = vmatprep.subr.bf16.mxu0 0
      %364 = vmatpush1.bf16.msra.mxu0 0
      %365 = vmatprep.subr.bf16.mxu0 0
      %366 = vmatpush1.bf16.msra.mxu0 0
      %367 = vmatprep.subr.bf16.mxu0 0
      %368 = vmatpush1.bf16.msra.mxu0 0
      %369 = vmatprep.subr.bf16.mxu0 0
      %370 = vmatpush1.bf16.msra.mxu0 0
      %371 = vmatprep.subr.bf16.mxu0 0
      %372 = vmatpush1.bf16.msra.mxu0 0
      %373 = vmatprep.mubr.bf16.mxu0 0
      %374 = vmatmul.mubr.bf16.gmra.mrb[0].mxu0 %v318
      %v375 = vpop.f32.mrb[0].mxu0
      %v376 = vadd.f32 %v55, %v375
      %v377 = vpop.f32.mrb[0].mxu0
      %v378 = vpop.f32.mrb[0].mxu0
      %v379 = vadd.f32 %v60, %v378
      %v380 = vpop.f32.mrb[0].mxu0
      %381 = vmatprep.mubr.bf16.mxu0 0
      %382 = vmatmul.mubr.bf16.gmra.mrb[0].mxu0 %v321
      %v383 = vpop.f32.mrb[0].mxu0
      %v384 = vadd.f32 %v65, %v383
      %v385 = vpop.f32.mrb[0].mxu0
      %v386 = vpop.f32.mrb[0].mxu0
      %v387 = vadd.f32 %v70, %v386
      %v388 = vpop.f32.mrb[0].mxu0
      %389 = vmatprep.mubr.bf16.mxu0 0
      %390 = vmatmul.mubr.bf16.gmra.mrb[0].mxu0 %v324
      %v391 = vpop.f32.mrb[0].mxu0
      %v392 = vadd.f32 %v75, %v391
      %v393 = vpop.f32.mrb[0].mxu0
      %v394 = vpop.f32.mrb[0].mxu0
      %v395 = vadd.f32 %v80, %v394
      %v396 = vpop.f32.mrb[0].mxu0
      %397 = vmatprep.mubr.bf16.mxu0 0
      %398 = vmatmul.mubr.bf16.gmra.mrb[0].mxu0 %v327
      %v399 = vpop.f32.mrb[0].mxu0
      %v400 = vadd.f32 %v85, %v399
      %v401 = vpop.f32.mrb[0].mxu0
      %v402 = vpop.f32.mrb[0].mxu0
      %v403 = vadd.f32 %v90, %v402
      %v404 = vpop.f32.mrb[0].mxu0
      %405 = vmatprep.mubr.bf16.mxu0 0
      %406 = vmatmul.mubr.bf16.gmra.mrb[0].mxu0 %v330
      %v407 = vpop.f32.mrb[0].mxu0
      %v408 = vadd.f32 %v95, %v407
      %v409 = vpop.f32.mrb[0].mxu0
      %v410 = vpop.f32.mrb[0].mxu0
      %v411 = vadd.f32 %v100, %v410
      %v412 = vpop.f32.mrb[0].mxu0
      %413 = vmatprep.mubr.bf16.mxu0 0
      %414 = vmatmul.mubr.bf16.gmra.mrb[0].mxu0 %v333
      %v415 = vpop.f32.mrb[0].mxu0
      %v416 = vadd.f32 %v105, %v415
      %v417 = vpop.f32.mrb[0].mxu0
      %v418 = vpop.f32.mrb[0].mxu0
      %v419 = vadd.f32 %v110, %v418
      %v420 = vpop.f32.mrb[0].mxu0
      %421 = vmatprep.mubr.bf16.mxu0 0
      %422 = vmatmul.mubr.bf16.gmra.mrb[0].mxu0 %v336
      %v423 = vpop.f32.mrb[0].mxu0
      %v424 = vadd.f32 %v115, %v423
      %v425 = vpop.f32.mrb[0].mxu0
      %v426 = vpop.f32.mrb[0].mxu0
      %v427 = vadd.f32 %v120, %v426
      %v428 = vpop.f32.mrb[0].mxu0
      %429 = vmatprep.mubr.bf16.mxu0 0
      %430 = vmatmul.mubr.bf16.gmra.mrb[0].mxu0 %v339
      %v431 = vpop.f32.mrb[0].mxu0
      %v432 = vadd.f32 %v125, %v431
      %v433 = vpop.f32.mrb[0].mxu0
      %v434 = vpop.f32.mrb[0].mxu0
      %v435 = vadd.f32 %v130, %v434
      %v436 = vpop.f32.mrb[0].mxu0
      %437 = vdwg.mxu0
      %v438 = vmax.f32 %v376, 0.0
      %v439 = vmax.f32 %v379, 0.0
      %v440 = vmax.f32 %v384, 0.0
      %v441 = vmax.f32 %v387, 0.0
      %v442 = vmax.f32 %v392, 0.0
      %v443 = vmax.f32 %v395, 0.0
      %v444 = vmax.f32 %v400, 0.0
      %v445 = vmax.f32 %v403, 0.0
      %v446 = vmax.f32 %v408, 0.0
      %v447 = vmax.f32 %v411, 0.0
      %v448 = vmax.f32 %v416, 0.0
      %v449 = vmax.f32 %v419, 0.0
      %v450 = vmax.f32 %v424, 0.0
      %v451 = vmax.f32 %v427, 0.0
      %v452 = vmax.f32 %v432, 0.0
      %v453 = vmax.f32 %v435, 0.0
      %454 = vmax.xlane.f32.xlu0 %v438
      %v455 = vpop.xlane.xlu0 %454
      %456 = vmax.xlane.f32.xlu0 %v439
      %v457 = vpop.xlane.xlu0 %456
      %458 = vmax.xlane.f32.xlu0 %v440
      %v459 = vpop.xlane.xlu0 %458
      %460 = vmax.xlane.f32.xlu0 %v441
      %v461 = vpop.xlane.xlu0 %460
      %462 = vmax.xlane.f32.xlu0 %v442
      %v463 = vpop.xlane.xlu0 %462
      %464 = vmax.xlane.f32.xlu0 %v443
      %v465 = vpop.xlane.xlu0 %464
      %466 = vmax.xlane.f32.xlu0 %v444
      %v467 = vpop.xlane.xlu0 %466
      %468 = vmax.xlane.f32.xlu0 %v445
      %v469 = vpop.xlane.xlu0 %468
      %470 = vmax.xlane.f32.xlu0 %v446
      %v471 = vpop.xlane.xlu0 %470
      %472 = vmax.xlane.f32.xlu0 %v447
      %v473 = vpop.xlane.xlu0 %472
      %474 = vmax.xlane.f32.xlu0 %v448
      %v475 = vpop.xlane.xlu0 %474
      %476 = vmax.xlane.f32.xlu0 %v449
      %v477 = vpop.xlane.xlu0 %476
      %478 = vmax.xlane.f32.xlu0 %v450
      %v479 = vpop.xlane.xlu0 %478
      %480 = vmax.xlane.f32.xlu0 %v451
      %v481 = vpop.xlane.xlu0 %480
      %482 = vmax.xlane.f32.xlu0 %v452
      %v483 = vpop.xlane.xlu0 %482
      %484 = vmax.xlane.f32.xlu0 %v453
      %v485 = vpop.xlane.xlu0 %484
      %s486 = scalar_lea.vmem %s0, 4
      %v487 = vld [vmem:[%s486] sm:$0xf]
      %v489 = vsel %vm179, %v487, 0
      %491 = vmatprep.subr.bf16.mxu0 0
      %492 = vmatpush1.bf16.msra.mxu0 %v489
      %493 = vmatprep.subr.bf16.mxu0 0
      %494 = vmatpush1.bf16.msra.mxu0 0
      %495 = vmatprep.subr.bf16.mxu0 0
      %496 = vmatpush1.bf16.msra.mxu0 0
      %497 = vmatprep.subr.bf16.mxu0 0
      %498 = vmatpush1.bf16.msra.mxu0 0
      %499 = vmatprep.subr.bf16.mxu0 0
      %500 = vmatpush1.bf16.msra.mxu0 0
      %501 = vmatprep.subr.bf16.mxu0 0
      %502 = vmatpush1.bf16.msra.mxu0 0
      %503 = vmatprep.subr.bf16.mxu0 0
      %504 = vmatpush1.bf16.msra.mxu0 0
      %505 = vmatprep.subr.bf16.mxu0 0
      %506 = vmatpush1.bf16.msra.mxu0 0
      %507 = vmatprep.subr.bf16.mxu0 0
      %508 = vmatpush1.bf16.msra.mxu0 0
      %509 = vmatprep.subr.bf16.mxu0 0
      %510 = vmatpush1.bf16.msra.mxu0 0
      %511 = vmatprep.subr.bf16.mxu0 0
      %512 = vmatpush1.bf16.msra.mxu0 0
      %513 = vmatprep.subr.bf16.mxu0 0
      %514 = vmatpush1.bf16.msra.mxu0 0
      %515 = vmatprep.subr.bf16.mxu0 0
      %516 = vmatpush1.bf16.msra.mxu0 0
      %517 = vmatprep.subr.bf16.mxu0 0
      %518 = vmatpush1.bf16.msra.mxu0 0
      %519 = vmatprep.subr.bf16.mxu0 0
      %520 = vmatpush1.bf16.msra.mxu0 0
      %521 = vmatprep.subr.bf16.mxu0 0
      %522 = vmatpush1.bf16.msra.mxu0 0
      %523 = vmatprep.mubr.bf16.mxu0 0
      %524 = vmatmul.mubr.bf16.gmra.mrb[0].mxu0 %v168
      %v525 = vpop.f32.mrb[0].mxu0
      %v526 = vadd.f32 0.0, %v525
      %v527 = vpop.f32.mrb[0].mxu0
      %v528 = vpop.f32.mrb[0].mxu0
      %v529 = vadd.f32 0.0, %v528
      %v530 = vpop.f32.mrb[0].mxu0
      %531 = vmatprep.mubr.bf16.mxu0 0
      %532 = vmatmul.mubr.bf16.gmra.mrb[0].mxu0 %v171
      %v533 = vpop.f32.mrb[0].mxu0
      %v534 = vadd.f32 0.0, %v533
      %v535 = vpop.f32.mrb[0].mxu0
      %v536 = vpop.f32.mrb[0].mxu0
      %v537 = vadd.f32 0.0, %v536
      %v538 = vpop.f32.mrb[0].mxu0
      %539 = vmatprep.mubr.bf16.mxu0 0
      %540 = vmatmul.mubr.bf16.gmra.mrb[0].mxu0 %v174
      %v541 = vpop.f32.mrb[0].mxu0
      %v542 = vadd.f32 0.0, %v541
      %v543 = vpop.f32.mrb[0].mxu0
      %v544 = vpop.f32.mrb[0].mxu0
      %v545 = vadd.f32 0.0, %v544
      %v546 = vpop.f32.mrb[0].mxu0
      %547 = vmatprep.mubr.bf16.mxu0 0
      %548 = vmatmul.mubr.bf16.gmra.mrb[0].mxu0 %v177
      %v549 = vpop.f32.mrb[0].mxu0
      %v550 = vadd.f32 0.0, %v549
      %v551 = vpop.f32.mrb[0].mxu0
      %v552 = vpop.f32.mrb[0].mxu0
      %v553 = vadd.f32 0.0, %v552
      %v554 = vpop.f32.mrb[0].mxu0
      %555 = vdwg.mxu0
      %v556 = vmax.f32 %v526, 0.0
      %v557 = vmax.f32 %v529, 0.0
      %v558 = vmax.f32 %v534, 0.0
      %v559 = vmax.f32 %v537, 0.0
      %v560 = vmax.f32 %v542, 0.0
      %v561 = vmax.f32 %v545, 0.0
      %v562 = vmax.f32 %v550, 0.0
      %v563 = vmax.f32 %v553, 0.0
      %v564 = vpack.c.bf16 %v557, %v556
      %v565 = vpack.c.bf16 %v559, %v558
      %v566 = vpack.c.bf16 %v561, %v560
      %v567 = vpack.c.bf16 %v563, %v562
      %568 = vmatprep.subr.bf16.mxu0 0
      %569 = vmatpush1.bf16.msra.mxu0 %v564
      %570 = vmatprep.subr.bf16.mxu0 0
      %571 = vmatpush1.bf16.msra.mxu0 %v565
      %572 = vmatprep.subr.bf16.mxu0 0
      %573 = vmatpush1.bf16.msra.mxu0 %v566
      %574 = vmatprep.subr.bf16.mxu0 0
      %575 = vmatpush1.bf16.msra.mxu0 %v567
      %576 = vmatprep.subr.bf16.mxu0 0
      %577 = vmatpush1.bf16.msra.mxu0 0
      %578 = vmatprep.subr.bf16.mxu0 0
      %579 = vmatpush1.bf16.msra.mxu0 0
      %580 = vmatprep.subr.bf16.mxu0 0
      %581 = vmatpush1.bf16.msra.mxu0 0
      %582 = vmatprep.subr.bf16.mxu0 0
      %583 = vmatpush1.bf16.msra.mxu0 0
      %584 = vmatprep.subr.bf16.mxu0 0
      %585 = vmatpush1.bf16.msra.mxu0 0
      %586 = vmatprep.subr.bf16.mxu0 0
      %587 = vmatpush1.bf16.msra.mxu0 0
      %588 = vmatprep.subr.bf16.mxu0 0
      %589 = vmatpush1.bf16.msra.mxu0 0
      %590 = vmatprep.subr.bf16.mxu0 0
      %591 = vmatpush1.bf16.msra.mxu0 0
      %592 = vmatprep.subr.bf16.mxu0 0
      %593 = vmatpush1.bf16.msra.mxu0 0
      %594 = vmatprep.subr.bf16.mxu0 0
      %595 = vmatpush1.bf16.msra.mxu0 0
      %596 = vmatprep.subr.bf16.mxu0 0
      %597 = vmatpush1.bf16.msra.mxu0 0
      %598 = vmatprep.subr.bf16.mxu0 0
      %599 = vmatpush1.bf16.msra.mxu0 0
      %600 = vmatprep.mubr.bf16.mxu0 0
      %601 = vmatmul.mubr.bf16.gmra.mrb[0].mxu0 %v318
      %v602 = vpop.f32.mrb[0].mxu0
      %v603 = vadd.f32 %v55, %v602
      %v604 = vpop.f32.mrb[0].mxu0
      %v605 = vpop.f32.mrb[0].mxu0
      %v606 = vadd.f32 %v60, %v605
      %v607 = vpop.f32.mrb[0].mxu0
      %608 = vmatprep.mubr.bf16.mxu0 0
      %609 = vmatmul.mubr.bf16.gmra.mrb[0].mxu0 %v321
      %v610 = vpop.f32.mrb[0].mxu0
      %v611 = vadd.f32 %v65, %v610
      %v612 = vpop.f32.mrb[0].mxu0
      %v613 = vpop.f32.mrb[0].mxu0
      %v614 = vadd.f32 %v70, %v613
      %v615 = vpop.f32.mrb[0].mxu0
      %616 = vmatprep.mubr.bf16.mxu0 0
      %617 = vmatmul.mubr.bf16.gmra.mrb[0].mxu0 %v324
      %v618 = vpop.f32.mrb[0].mxu0
      %v619 = vadd.f32 %v75, %v618
      %v620 = vpop.f32.mrb[0].mxu0
      %v621 = vpop.f32.mrb[0].mxu0
      %v622 = vadd.f32 %v80, %v621
      %v623 = vpop.f32.mrb[0].mxu0
      %624 = vmatprep.mubr.bf16.mxu0 0
      %625 = vmatmul.mubr.bf16.gmra.mrb[0].mxu0 %v327
      %v626 = vpop.f32.mrb[0].mxu0
      %v627 = vadd.f32 %v85, %v626
      %v628 = vpop.f32.mrb[0].mxu0
      %v629 = vpop.f32.mrb[0].mxu0
      %v630 = vadd.f32 %v90, %v629
      %v631 = vpop.f32.mrb[0].mxu0
      %632 = vmatprep.mubr.bf16.mxu0 0
      %633 = vmatmul.mubr.bf16.gmra.mrb[0].mxu0 %v330
      %v634 = vpop.f32.mrb[0].mxu0
      %v635 = vadd.f32 %v95, %v634
      %v636 = vpop.f32.mrb[0].mxu0
      %v637 = vpop.f32.mrb[0].mxu0
      %v638 = vadd.f32 %v100, %v637
      %v639 = vpop.f32.mrb[0].mxu0
      %640 = vmatprep.mubr.bf16.mxu0 0
      %641 = vmatmul.mubr.bf16.gmra.mrb[0].mxu0 %v333
      %v642 = vpop.f32.mrb[0].mxu0
      %v643 = vadd.f32 %v105, %v642
      %v644 = vpop.f32.mrb[0].mxu0
      %v645 = vpop.f32.mrb[0].mxu0
      %v646 = vadd.f32 %v110, %v645
      %v647 = vpop.f32.mrb[0].mxu0
      %648 = vmatprep.mubr.bf16.mxu0 0
      %649 = vmatmul.mubr.bf16.gmra.mrb[0].mxu0 %v336
      %v650 = vpop.f32.mrb[0].mxu0
      %v651 = vadd.f32 %v115, %v650
      %v652 = vpop.f32.mrb[0].mxu0
      %v653 = vpop.f32.mrb[0].mxu0
      %v654 = vadd.f32 %v120, %v653
      %v655 = vpop.f32.mrb[0].mxu0
      %656 = vmatprep.mubr.bf16.mxu0 0
      %657 = vmatmul.mubr.bf16.gmra.mrb[0].mxu0 %v339
      %v658 = vpop.f32.mrb[0].mxu0
      %v659 = vadd.f32 %v125, %v658
      %v660 = vpop.f32.mrb[0].mxu0
      %v661 = vpop.f32.mrb[0].mxu0
      %v662 = vadd.f32 %v130, %v661
      %v663 = vpop.f32.mrb[0].mxu0
      %664 = vdwg.mxu0
      %v665 = vmax.f32 %v603, 0.0
      %v666 = vmax.f32 %v606, 0.0
      %v667 = vmax.f32 %v611, 0.0
      %v668 = vmax.f32 %v614, 0.0
      %v669 = vmax.f32 %v619, 0.0
      %v670 = vmax.f32 %v622, 0.0
      %v671 = vmax.f32 %v627, 0.0
      %v672 = vmax.f32 %v630, 0.0
      %v673 = vmax.f32 %v635, 0.0
      %v674 = vmax.f32 %v638, 0.0
      %v675 = vmax.f32 %v643, 0.0
      %v676 = vmax.f32 %v646, 0.0
      %v677 = vmax.f32 %v651, 0.0
      %v678 = vmax.f32 %v654, 0.0
      %v679 = vmax.f32 %v659, 0.0
      %v680 = vmax.f32 %v662, 0.0
      %681 = vmax.xlane.f32.xlu0 %v665
      %v682 = vpop.xlane.xlu0 %681
      %683 = vmax.xlane.f32.xlu0 %v666
      %v684 = vpop.xlane.xlu0 %683
      %685 = vmax.xlane.f32.xlu0 %v667
      %v686 = vpop.xlane.xlu0 %685
      %687 = vmax.xlane.f32.xlu0 %v668
      %v688 = vpop.xlane.xlu0 %687
      %689 = vmax.xlane.f32.xlu0 %v669
      %v690 = vpop.xlane.xlu0 %689
      %691 = vmax.xlane.f32.xlu0 %v670
      %v692 = vpop.xlane.xlu0 %691
      %693 = vmax.xlane.f32.xlu0 %v671
      %v694 = vpop.xlane.xlu0 %693
      %695 = vmax.xlane.f32.xlu0 %v672
      %v696 = vpop.xlane.xlu0 %695
      %697 = vmax.xlane.f32.xlu0 %v673
      %v698 = vpop.xlane.xlu0 %697
      %699 = vmax.xlane.f32.xlu0 %v674
      %v700 = vpop.xlane.xlu0 %699
      %701 = vmax.xlane.f32.xlu0 %v675
      %v702 = vpop.xlane.xlu0 %701
      %703 = vmax.xlane.f32.xlu0 %v676
      %v704 = vpop.xlane.xlu0 %703
      %705 = vmax.xlane.f32.xlu0 %v677
      %v706 = vpop.xlane.xlu0 %705
      %707 = vmax.xlane.f32.xlu0 %v678
      %v708 = vpop.xlane.xlu0 %707
      %709 = vmax.xlane.f32.xlu0 %v679
      %v710 = vpop.xlane.xlu0 %709
      %711 = vmax.xlane.f32.xlu0 %v680
      %v712 = vpop.xlane.xlu0 %711
      %s713 = scalar_lea.vmem %s0, 8
      %v714 = vld [vmem:[%s713] sm:$0xf]
      %v716 = vsel %vm179, %v714, 0
      %718 = vmatprep.subr.bf16.mxu0 0
      %719 = vmatpush1.bf16.msra.mxu0 %v716
      %720 = vmatprep.subr.bf16.mxu0 0
      %721 = vmatpush1.bf16.msra.mxu0 0
      %722 = vmatprep.subr.bf16.mxu0 0
      %723 = vmatpush1.bf16.msra.mxu0 0
      %724 = vmatprep.subr.bf16.mxu0 0
      %725 = vmatpush1.bf16.msra.mxu0 0
      %726 = vmatprep.subr.bf16.mxu0 0
      %727 = vmatpush1.bf16.msra.mxu0 0
      %728 = vmatprep.subr.bf16.mxu0 0
      %729 = vmatpush1.bf16.msra.mxu0 0
      %730 = vmatprep.subr.bf16.mxu0 0
      %731 = vmatpush1.bf16.msra.mxu0 0
      %732 = vmatprep.subr.bf16.mxu0 0
      %733 = vmatpush1.bf16.msra.mxu0 0
      %734 = vmatprep.subr.bf16.mxu0 0
      %735 = vmatpush1.bf16.msra.mxu0 0
      %736 = vmatprep.subr.bf16.mxu0 0
      %737 = vmatpush1.bf16.msra.mxu0 0
      %738 = vmatprep.subr.bf16.mxu0 0
      %739 = vmatpush1.bf16.msra.mxu0 0
      %740 = vmatprep.subr.bf16.mxu0 0
      %741 = vmatpush1.bf16.msra.mxu0 0
      %742 = vmatprep.subr.bf16.mxu0 0
      %743 = vmatpush1.bf16.msra.mxu0 0
      %744 = vmatprep.subr.bf16.mxu0 0
      %745 = vmatpush1.bf16.msra.mxu0 0
      %746 = vmatprep.subr.bf16.mxu0 0
      %747 = vmatpush1.bf16.msra.mxu0 0
      %748 = vmatprep.subr.bf16.mxu0 0
      %749 = vmatpush1.bf16.msra.mxu0 0
      %750 = vmatprep.mubr.bf16.mxu0 0
      %751 = vmatmul.mubr.bf16.gmra.mrb[0].mxu0 %v168
      %v752 = vpop.f32.mrb[0].mxu0
      %v753 = vadd.f32 0.0, %v752
      %v754 = vpop.f32.mrb[0].mxu0
      %v755 = vpop.f32.mrb[0].mxu0
      %v756 = vadd.f32 0.0, %v755
      %v757 = vpop.f32.mrb[0].mxu0
      %758 = vmatprep.mubr.bf16.mxu0 0
      %759 = vmatmul.mubr.bf16.gmra.mrb[0].mxu0 %v171
      %v760 = vpop.f32.mrb[0].mxu0
      %v761 = vadd.f32 0.0, %v760
      %v762 = vpop.f32.mrb[0].mxu0
      %v763 = vpop.f32.mrb[0].mxu0
      %v764 = vadd.f32 0.0, %v763
      %v765 = vpop.f32.mrb[0].mxu0
      %766 = vmatprep.mubr.bf16.mxu0 0
      %767 = vmatmul.mubr.bf16.gmra.mrb[0].mxu0 %v174
      %v768 = vpop.f32.mrb[0].mxu0
      %v769 = vadd.f32 0.0, %v768
      %v770 = vpop.f32.mrb[0].mxu0
      %v771 = vpop.f32.mrb[0].mxu0
      %v772 = vadd.f32 0.0, %v771
      %v773 = vpop.f32.mrb[0].mxu0
      %774 = vmatprep.mubr.bf16.mxu0 0
      %775 = vmatmul.mubr.bf16.gmra.mrb[0].mxu0 %v177
      %v776 = vpop.f32.mrb[0].mxu0
      %v777 = vadd.f32 0.0, %v776
      %v778 = vpop.f32.mrb[0].mxu0
      %v779 = vpop.f32.mrb[0].mxu0
      %v780 = vadd.f32 0.0, %v779
      %v781 = vpop.f32.mrb[0].mxu0
      %782 = vdwg.mxu0
      %v783 = vmax.f32 %v753, 0.0
      %v784 = vmax.f32 %v756, 0.0
      %v785 = vmax.f32 %v761, 0.0
      %v786 = vmax.f32 %v764, 0.0
      %v787 = vmax.f32 %v769, 0.0
      %v788 = vmax.f32 %v772, 0.0
      %v789 = vmax.f32 %v777, 0.0
      %v790 = vmax.f32 %v780, 0.0
      %v791 = vpack.c.bf16 %v784, %v783
      %v792 = vpack.c.bf16 %v786, %v785
      %v793 = vpack.c.bf16 %v788, %v787
      %v794 = vpack.c.bf16 %v790, %v789
      %795 = vmatprep.subr.bf16.mxu0 0
      %796 = vmatpush1.bf16.msra.mxu0 %v791
      %797 = vmatprep.subr.bf16.mxu0 0
      %798 = vmatpush1.bf16.msra.mxu0 %v792
      %799 = vmatprep.subr.bf16.mxu0 0
      %800 = vmatpush1.bf16.msra.mxu0 %v793
      %801 = vmatprep.subr.bf16.mxu0 0
      %802 = vmatpush1.bf16.msra.mxu0 %v794
      %803 = vmatprep.subr.bf16.mxu0 0
      %804 = vmatpush1.bf16.msra.mxu0 0
      %805 = vmatprep.subr.bf16.mxu0 0
      %806 = vmatpush1.bf16.msra.mxu0 0
      %807 = vmatprep.subr.bf16.mxu0 0
      %808 = vmatpush1.bf16.msra.mxu0 0
      %809 = vmatprep.subr.bf16.mxu0 0
      %810 = vmatpush1.bf16.msra.mxu0 0
      %811 = vmatprep.subr.bf16.mxu0 0
      %812 = vmatpush1.bf16.msra.mxu0 0
      %813 = vmatprep.subr.bf16.mxu0 0
      %814 = vmatpush1.bf16.msra.mxu0 0
      %815 = vmatprep.subr.bf16.mxu0 0
      %816 = vmatpush1.bf16.msra.mxu0 0
      %817 = vmatprep.subr.bf16.mxu0 0
      %818 = vmatpush1.bf16.msra.mxu0 0
      %819 = vmatprep.subr.bf16.mxu0 0
      %820 = vmatpush1.bf16.msra.mxu0 0
      %821 = vmatprep.subr.bf16.mxu0 0
      %822 = vmatpush1.bf16.msra.mxu0 0
      %823 = vmatprep.subr.bf16.mxu0 0
      %824 = vmatpush1.bf16.msra.mxu0 0
      %825 = vmatprep.subr.bf16.mxu0 0
      %826 = vmatpush1.bf16.msra.mxu0 0
      %827 = vmatprep.mubr.bf16.mxu0 0
      %828 = vmatmul.mubr.bf16.gmra.mrb[0].mxu0 %v318
      %v829 = vpop.f32.mrb[0].mxu0
      %v830 = vadd.f32 %v55, %v829
      %v831 = vpop.f32.mrb[0].mxu0
      %v832 = vpop.f32.mrb[0].mxu0
      %v833 = vadd.f32 %v60, %v832
      %v834 = vpop.f32.mrb[0].mxu0
      %835 = vmatprep.mubr.bf16.mxu0 0
      %836 = vmatmul.mubr.bf16.gmra.mrb[0].mxu0 %v321
      %v837 = vpop.f32.mrb[0].mxu0
      %v838 = vadd.f32 %v65, %v837
      %v839 = vpop.f32.mrb[0].mxu0
      %v840 = vpop.f32.mrb[0].mxu0
      %v841 = vadd.f32 %v70, %v840
      %v842 = vpop.f32.mrb[0].mxu0
      %843 = vmatprep.mubr.bf16.mxu0 0
      %844 = vmatmul.mubr.bf16.gmra.mrb[0].mxu0 %v324
      %v845 = vpop.f32.mrb[0].mxu0
      %v846 = vadd.f32 %v75, %v845
      %v847 = vpop.f32.mrb[0].mxu0
      %v848 = vpop.f32.mrb[0].mxu0
      %v849 = vadd.f32 %v80, %v848
      %v850 = vpop.f32.mrb[0].mxu0
      %851 = vmatprep.mubr.bf16.mxu0 0
      %852 = vmatmul.mubr.bf16.gmra.mrb[0].mxu0 %v327
      %v853 = vpop.f32.mrb[0].mxu0
      %v854 = vadd.f32 %v85, %v853
      %v855 = vpop.f32.mrb[0].mxu0
      %v856 = vpop.f32.mrb[0].mxu0
      %v857 = vadd.f32 %v90, %v856
      %v858 = vpop.f32.mrb[0].mxu0
      %859 = vmatprep.mubr.bf16.mxu0 0
      %860 = vmatmul.mubr.bf16.gmra.mrb[0].mxu0 %v330
      %v861 = vpop.f32.mrb[0].mxu0
      %v862 = vadd.f32 %v95, %v861
      %v863 = vpop.f32.mrb[0].mxu0
      %v864 = vpop.f32.mrb[0].mxu0
      %v865 = vadd.f32 %v100, %v864
      %v866 = vpop.f32.mrb[0].mxu0
      %867 = vmatprep.mubr.bf16.mxu0 0
      %868 = vmatmul.mubr.bf16.gmra.mrb[0].mxu0 %v333
      %v869 = vpop.f32.mrb[0].mxu0
      %v870 = vadd.f32 %v105, %v869
      %v871 = vpop.f32.mrb[0].mxu0
      %v872 = vpop.f32.mrb[0].mxu0
      %v873 = vadd.f32 %v110, %v872
      %v874 = vpop.f32.mrb[0].mxu0
      %875 = vmatprep.mubr.bf16.mxu0 0
      %876 = vmatmul.mubr.bf16.gmra.mrb[0].mxu0 %v336
      %v877 = vpop.f32.mrb[0].mxu0
      %v878 = vadd.f32 %v115, %v877
      %v879 = vpop.f32.mrb[0].mxu0
      %v880 = vpop.f32.mrb[0].mxu0
      %v881 = vadd.f32 %v120, %v880
      %v882 = vpop.f32.mrb[0].mxu0
      %883 = vmatprep.mubr.bf16.mxu0 0
      %884 = vmatmul.mubr.bf16.gmra.mrb[0].mxu0 %v339
      %v885 = vpop.f32.mrb[0].mxu0
      %v886 = vadd.f32 %v125, %v885
      %v887 = vpop.f32.mrb[0].mxu0
      %v888 = vpop.f32.mrb[0].mxu0
      %v889 = vadd.f32 %v130, %v888
      %v890 = vpop.f32.mrb[0].mxu0
      %891 = vdwg.mxu0
      %v892 = vmax.f32 %v830, 0.0
      %v893 = vmax.f32 %v833, 0.0
      %v894 = vmax.f32 %v838, 0.0
      %v895 = vmax.f32 %v841, 0.0
      %v896 = vmax.f32 %v846, 0.0
      %v897 = vmax.f32 %v849, 0.0
      %v898 = vmax.f32 %v854, 0.0
      %v899 = vmax.f32 %v857, 0.0
      %v900 = vmax.f32 %v862, 0.0
      %v901 = vmax.f32 %v865, 0.0
      %v902 = vmax.f32 %v870, 0.0
      %v903 = vmax.f32 %v873, 0.0
      %v904 = vmax.f32 %v878, 0.0
      %v905 = vmax.f32 %v881, 0.0
      %v906 = vmax.f32 %v886, 0.0
      %v907 = vmax.f32 %v889, 0.0
      %908 = vmax.xlane.f32.xlu0 %v892
      %v909 = vpop.xlane.xlu0 %908
      %910 = vmax.xlane.f32.xlu0 %v893
      %v911 = vpop.xlane.xlu0 %910
      %912 = vmax.xlane.f32.xlu0 %v894
      %v913 = vpop.xlane.xlu0 %912
      %914 = vmax.xlane.f32.xlu0 %v895
      %v915 = vpop.xlane.xlu0 %914
      %916 = vmax.xlane.f32.xlu0 %v896
      %v917 = vpop.xlane.xlu0 %916
      %918 = vmax.xlane.f32.xlu0 %v897
      %v919 = vpop.xlane.xlu0 %918
      %920 = vmax.xlane.f32.xlu0 %v898
      %v921 = vpop.xlane.xlu0 %920
      %922 = vmax.xlane.f32.xlu0 %v899
      %v923 = vpop.xlane.xlu0 %922
      %924 = vmax.xlane.f32.xlu0 %v900
      %v925 = vpop.xlane.xlu0 %924
      %926 = vmax.xlane.f32.xlu0 %v901
      %v927 = vpop.xlane.xlu0 %926
      %928 = vmax.xlane.f32.xlu0 %v902
      %v929 = vpop.xlane.xlu0 %928
      %930 = vmax.xlane.f32.xlu0 %v903
      %v931 = vpop.xlane.xlu0 %930
      %932 = vmax.xlane.f32.xlu0 %v904
      %v933 = vpop.xlane.xlu0 %932
      %934 = vmax.xlane.f32.xlu0 %v905
      %v935 = vpop.xlane.xlu0 %934
      %936 = vmax.xlane.f32.xlu0 %v906
      %v937 = vpop.xlane.xlu0 %936
      %938 = vmax.xlane.f32.xlu0 %v907
      %v939 = vpop.xlane.xlu0 %938
      %s940 = scalar_lea.vmem %s0, 12
      %v941 = vld [vmem:[%s940] sm:$0xf]
      %v943 = vsel %vm179, %v941, 0
      %945 = vmatprep.subr.bf16.mxu0 0
      %946 = vmatpush1.bf16.msra.mxu0 %v943
      %947 = vmatprep.subr.bf16.mxu0 0
      %948 = vmatpush1.bf16.msra.mxu0 0
      %949 = vmatprep.subr.bf16.mxu0 0
      %950 = vmatpush1.bf16.msra.mxu0 0
      %951 = vmatprep.subr.bf16.mxu0 0
      %952 = vmatpush1.bf16.msra.mxu0 0
      %953 = vmatprep.subr.bf16.mxu0 0
      %954 = vmatpush1.bf16.msra.mxu0 0
      %955 = vmatprep.subr.bf16.mxu0 0
      %956 = vmatpush1.bf16.msra.mxu0 0
      %957 = vmatprep.subr.bf16.mxu0 0
      %958 = vmatpush1.bf16.msra.mxu0 0
      %959 = vmatprep.subr.bf16.mxu0 0
      %960 = vmatpush1.bf16.msra.mxu0 0
      %961 = vmatprep.subr.bf16.mxu0 0
      %962 = vmatpush1.bf16.msra.mxu0 0
      %963 = vmatprep.subr.bf16.mxu0 0
      %964 = vmatpush1.bf16.msra.mxu0 0
      %965 = vmatprep.subr.bf16.mxu0 0
      %966 = vmatpush1.bf16.msra.mxu0 0
      %967 = vmatprep.subr.bf16.mxu0 0
      %968 = vmatpush1.bf16.msra.mxu0 0
      %969 = vmatprep.subr.bf16.mxu0 0
      %970 = vmatpush1.bf16.msra.mxu0 0
      %971 = vmatprep.subr.bf16.mxu0 0
      %972 = vmatpush1.bf16.msra.mxu0 0
      %973 = vmatprep.subr.bf16.mxu0 0
      %974 = vmatpush1.bf16.msra.mxu0 0
      %975 = vmatprep.subr.bf16.mxu0 0
      %976 = vmatpush1.bf16.msra.mxu0 0
      %977 = vmatprep.mubr.bf16.mxu0 0
      %978 = vmatmul.mubr.bf16.gmra.mrb[0].mxu0 %v168
      %v979 = vpop.f32.mrb[0].mxu0
      %v980 = vadd.f32 0.0, %v979
      %v981 = vpop.f32.mrb[0].mxu0
      %v982 = vpop.f32.mrb[0].mxu0
      %v983 = vadd.f32 0.0, %v982
      %v984 = vpop.f32.mrb[0].mxu0
      %985 = vmatprep.mubr.bf16.mxu0 0
      %986 = vmatmul.mubr.bf16.gmra.mrb[0].mxu0 %v171
      %v987 = vpop.f32.mrb[0].mxu0
      %v988 = vadd.f32 0.0, %v987
      %v989 = vpop.f32.mrb[0].mxu0
      %v990 = vpop.f32.mrb[0].mxu0
      %v991 = vadd.f32 0.0, %v990
      %v992 = vpop.f32.mrb[0].mxu0
      %993 = vmatprep.mubr.bf16.mxu0 0
      %994 = vmatmul.mubr.bf16.gmra.mrb[0].mxu0 %v174
      %v995 = vpop.f32.mrb[0].mxu0
      %v996 = vadd.f32 0.0, %v995
      %v997 = vpop.f32.mrb[0].mxu0
      %v998 = vpop.f32.mrb[0].mxu0
      %v999 = vadd.f32 0.0, %v998
      %v1000 = vpop.f32.mrb[0].mxu0
      %1001 = vmatprep.mubr.bf16.mxu0 0
      %1002 = vmatmul.mubr.bf16.gmra.mrb[0].mxu0 %v177
      %v1003 = vpop.f32.mrb[0].mxu0
      %v1004 = vadd.f32 0.0, %v1003
      %v1005 = vpop.f32.mrb[0].mxu0
      %v1006 = vpop.f32.mrb[0].mxu0
      %v1007 = vadd.f32 0.0, %v1006
      %v1008 = vpop.f32.mrb[0].mxu0
      %1009 = vdwg.mxu0
      %v1010 = vmax.f32 %v980, 0.0
      %v1011 = vmax.f32 %v983, 0.0
      %v1012 = vmax.f32 %v988, 0.0
      %v1013 = vmax.f32 %v991, 0.0
      %v1014 = vmax.f32 %v996, 0.0
      %v1015 = vmax.f32 %v999, 0.0
      %v1016 = vmax.f32 %v1004, 0.0
      %v1017 = vmax.f32 %v1007, 0.0
      %v1018 = vpack.c.bf16 %v1011, %v1010
      %v1019 = vpack.c.bf16 %v1013, %v1012
      %v1020 = vpack.c.bf16 %v1015, %v1014
      %v1021 = vpack.c.bf16 %v1017, %v1016
      %1022 = vmatprep.subr.bf16.mxu0 0
      %1023 = vmatpush1.bf16.msra.mxu0 %v1018
      %1024 = vmatprep.subr.bf16.mxu0 0
      %1025 = vmatpush1.bf16.msra.mxu0 %v1019
      %1026 = vmatprep.subr.bf16.mxu0 0
      %1027 = vmatpush1.bf16.msra.mxu0 %v1020
      %1028 = vmatprep.subr.bf16.mxu0 0
      %1029 = vmatpush1.bf16.msra.mxu0 %v1021
      %1030 = vmatprep.subr.bf16.mxu0 0
      %1031 = vmatpush1.bf16.msra.mxu0 0
      %1032 = vmatprep.subr.bf16.mxu0 0
      %1033 = vmatpush1.bf16.msra.mxu0 0
      %1034 = vmatprep.subr.bf16.mxu0 0
      %1035 = vmatpush1.bf16.msra.mxu0 0
      %1036 = vmatprep.subr.bf16.mxu0 0
      %1037 = vmatpush1.bf16.msra.mxu0 0
      %1038 = vmatprep.subr.bf16.mxu0 0
      %1039 = vmatpush1.bf16.msra.mxu0 0
      %1040 = vmatprep.subr.bf16.mxu0 0
      %1041 = vmatpush1.bf16.msra.mxu0 0
      %1042 = vmatprep.subr.bf16.mxu0 0
      %1043 = vmatpush1.bf16.msra.mxu0 0
      %1044 = vmatprep.subr.bf16.mxu0 0
      %1045 = vmatpush1.bf16.msra.mxu0 0
      %1046 = vmatprep.subr.bf16.mxu0 0
      %1047 = vmatpush1.bf16.msra.mxu0 0
      %1048 = vmatprep.subr.bf16.mxu0 0
      %1049 = vmatpush1.bf16.msra.mxu0 0
      %1050 = vmatprep.subr.bf16.mxu0 0
      %1051 = vmatpush1.bf16.msra.mxu0 0
      %1052 = vmatprep.subr.bf16.mxu0 0
      %1053 = vmatpush1.bf16.msra.mxu0 0
      %1054 = vmatprep.mubr.bf16.mxu0 0
      %1055 = vmatmul.mubr.bf16.gmra.mrb[0].mxu0 %v318
      %v1056 = vpop.f32.mrb[0].mxu0
      %v1057 = vadd.f32 %v55, %v1056
      %v1058 = vpop.f32.mrb[0].mxu0
      %v1059 = vpop.f32.mrb[0].mxu0
      %v1060 = vadd.f32 %v60, %v1059
      %v1061 = vpop.f32.mrb[0].mxu0
      %1062 = vmatprep.mubr.bf16.mxu0 0
      %1063 = vmatmul.mubr.bf16.gmra.mrb[0].mxu0 %v321
      %v1064 = vpop.f32.mrb[0].mxu0
      %v1065 = vadd.f32 %v65, %v1064
      %v1066 = vpop.f32.mrb[0].mxu0
      %v1067 = vpop.f32.mrb[0].mxu0
      %v1068 = vadd.f32 %v70, %v1067
      %v1069 = vpop.f32.mrb[0].mxu0
      %1070 = vmatprep.mubr.bf16.mxu0 0
      %1071 = vmatmul.mubr.bf16.gmra.mrb[0].mxu0 %v324
      %v1072 = vpop.f32.mrb[0].mxu0
      %v1073 = vadd.f32 %v75, %v1072
      %v1074 = vpop.f32.mrb[0].mxu0
      %v1075 = vpop.f32.mrb[0].mxu0
      %v1076 = vadd.f32 %v80, %v1075
      %v1077 = vpop.f32.mrb[0].mxu0
      %1078 = vmatprep.mubr.bf16.mxu0 0
      %1079 = vmatmul.mubr.bf16.gmra.mrb[0].mxu0 %v327
      %v1080 = vpop.f32.mrb[0].mxu0
      %v1081 = vadd.f32 %v85, %v1080
      %v1082 = vpop.f32.mrb[0].mxu0
      %v1083 = vpop.f32.mrb[0].mxu0
      %v1084 = vadd.f32 %v90, %v1083
      %v1085 = vpop.f32.mrb[0].mxu0
      %1086 = vmatprep.mubr.bf16.mxu0 0
      %1087 = vmatmul.mubr.bf16.gmra.mrb[0].mxu0 %v330
      %v1088 = vpop.f32.mrb[0].mxu0
      %v1089 = vadd.f32 %v95, %v1088
      %v1090 = vpop.f32.mrb[0].mxu0
      %v1091 = vpop.f32.mrb[0].mxu0
      %v1092 = vadd.f32 %v100, %v1091
      %v1093 = vpop.f32.mrb[0].mxu0
      %1094 = vmatprep.mubr.bf16.mxu0 0
      %1095 = vmatmul.mubr.bf16.gmra.mrb[0].mxu0 %v333
      %v1096 = vpop.f32.mrb[0].mxu0
      %v1097 = vadd.f32 %v105, %v1096
      %v1098 = vpop.f32.mrb[0].mxu0
      %v1099 = vpop.f32.mrb[0].mxu0
      %v1100 = vadd.f32 %v110, %v1099
      %v1101 = vpop.f32.mrb[0].mxu0
      %1102 = vmatprep.mubr.bf16.mxu0 0
      %1103 = vmatmul.mubr.bf16.gmra.mrb[0].mxu0 %v336
      %v1104 = vpop.f32.mrb[0].mxu0
      %v1105 = vadd.f32 %v115, %v1104
      %v1106 = vpop.f32.mrb[0].mxu0
      %v1107 = vpop.f32.mrb[0].mxu0
      %v1108 = vadd.f32 %v120, %v1107
      %v1109 = vpop.f32.mrb[0].mxu0
      %1110 = vmatprep.mubr.bf16.mxu0 0
      %1111 = vmatmul.mubr.bf16.gmra.mrb[0].mxu0 %v339
      %v1112 = vpop.f32.mrb[0].mxu0
      %v1113 = vadd.f32 %v125, %v1112
      %v1114 = vpop.f32.mrb[0].mxu0
      %v1115 = vpop.f32.mrb[0].mxu0
      %v1116 = vadd.f32 %v130, %v1115
      %v1117 = vpop.f32.mrb[0].mxu0
      %1118 = vdwg.mxu0
      %v1119 = vmax.f32 %v1057, 0.0
      %v1120 = vmax.f32 %v1060, 0.0
      %v1121 = vmax.f32 %v1065, 0.0
      %v1122 = vmax.f32 %v1068, 0.0
      %v1123 = vmax.f32 %v1073, 0.0
      %v1124 = vmax.f32 %v1076, 0.0
      %v1125 = vmax.f32 %v1081, 0.0
      %v1126 = vmax.f32 %v1084, 0.0
      %v1127 = vmax.f32 %v1089, 0.0
      %v1128 = vmax.f32 %v1092, 0.0
      %v1129 = vmax.f32 %v1097, 0.0
      %v1130 = vmax.f32 %v1100, 0.0
      %v1131 = vmax.f32 %v1105, 0.0
      %v1132 = vmax.f32 %v1108, 0.0
      %v1133 = vmax.f32 %v1113, 0.0
      %v1134 = vmax.f32 %v1116, 0.0
      %1135 = vmax.xlane.f32.xlu0 %v1119
      %v1136 = vpop.xlane.xlu0 %1135
      %1137 = vmax.xlane.f32.xlu0 %v1120
      %v1138 = vpop.xlane.xlu0 %1137
      %1139 = vmax.xlane.f32.xlu0 %v1121
      %v1140 = vpop.xlane.xlu0 %1139
      %1141 = vmax.xlane.f32.xlu0 %v1122
      %v1142 = vpop.xlane.xlu0 %1141
      %1143 = vmax.xlane.f32.xlu0 %v1123
      %v1144 = vpop.xlane.xlu0 %1143
      %1145 = vmax.xlane.f32.xlu0 %v1124
      %v1146 = vpop.xlane.xlu0 %1145
      %1147 = vmax.xlane.f32.xlu0 %v1125
      %v1148 = vpop.xlane.xlu0 %1147
      %1149 = vmax.xlane.f32.xlu0 %v1126
      %v1150 = vpop.xlane.xlu0 %1149
      %1151 = vmax.xlane.f32.xlu0 %v1127
      %v1152 = vpop.xlane.xlu0 %1151
      %1153 = vmax.xlane.f32.xlu0 %v1128
      %v1154 = vpop.xlane.xlu0 %1153
      %1155 = vmax.xlane.f32.xlu0 %v1129
      %v1156 = vpop.xlane.xlu0 %1155
      %1157 = vmax.xlane.f32.xlu0 %v1130
      %v1158 = vpop.xlane.xlu0 %1157
      %1159 = vmax.xlane.f32.xlu0 %v1131
      %v1160 = vpop.xlane.xlu0 %1159
      %1161 = vmax.xlane.f32.xlu0 %v1132
      %v1162 = vpop.xlane.xlu0 %1161
      %1163 = vmax.xlane.f32.xlu0 %v1133
      %v1164 = vpop.xlane.xlu0 %1163
      %1165 = vmax.xlane.f32.xlu0 %v1134
      %v1166 = vpop.xlane.xlu0 %1165
      %s1167 = scalar_lea.vmem %s0, 16
      %v1168 = vld [vmem:[%s1167] sm:$0xf]
      %v1170 = vsel %vm179, %v1168, 0
      %1172 = vmatprep.subr.bf16.mxu0 0
      %1173 = vmatpush1.bf16.msra.mxu0 %v1170
      %1174 = vmatprep.subr.bf16.mxu0 0
      %1175 = vmatpush1.bf16.msra.mxu0 0
      %1176 = vmatprep.subr.bf16.mxu0 0
      %1177 = vmatpush1.bf16.msra.mxu0 0
      %1178 = vmatprep.subr.bf16.mxu0 0
      %1179 = vmatpush1.bf16.msra.mxu0 0
      %1180 = vmatprep.subr.bf16.mxu0 0
      %1181 = vmatpush1.bf16.msra.mxu0 0
      %1182 = vmatprep.subr.bf16.mxu0 0
      %1183 = vmatpush1.bf16.msra.mxu0 0
      %1184 = vmatprep.subr.bf16.mxu0 0
      %1185 = vmatpush1.bf16.msra.mxu0 0
      %1186 = vmatprep.subr.bf16.mxu0 0
      %1187 = vmatpush1.bf16.msra.mxu0 0
      %1188 = vmatprep.subr.bf16.mxu0 0
      %1189 = vmatpush1.bf16.msra.mxu0 0
      %1190 = vmatprep.subr.bf16.mxu0 0
      %1191 = vmatpush1.bf16.msra.mxu0 0
      %1192 = vmatprep.subr.bf16.mxu0 0
      %1193 = vmatpush1.bf16.msra.mxu0 0
      %1194 = vmatprep.subr.bf16.mxu0 0
      %1195 = vmatpush1.bf16.msra.mxu0 0
      %1196 = vmatprep.subr.bf16.mxu0 0
      %1197 = vmatpush1.bf16.msra.mxu0 0
      %1198 = vmatprep.subr.bf16.mxu0 0
      %1199 = vmatpush1.bf16.msra.mxu0 0
      %1200 = vmatprep.subr.bf16.mxu0 0
      %1201 = vmatpush1.bf16.msra.mxu0 0
      %1202 = vmatprep.subr.bf16.mxu0 0
      %1203 = vmatpush1.bf16.msra.mxu0 0
      %1204 = vmatprep.mubr.bf16.mxu0 0
      %1205 = vmatmul.mubr.bf16.gmra.mrb[0].mxu0 %v168
      %v1206 = vpop.f32.mrb[0].mxu0
      %v1207 = vadd.f32 0.0, %v1206
      %v1208 = vpop.f32.mrb[0].mxu0
      %v1209 = vpop.f32.mrb[0].mxu0
      %v1210 = vadd.f32 0.0, %v1209
      %v1211 = vpop.f32.mrb[0].mxu0
      %1212 = vmatprep.mubr.bf16.mxu0 0
      %1213 = vmatmul.mubr.bf16.gmra.mrb[0].mxu0 %v171
      %v1214 = vpop.f32.mrb[0].mxu0
      %v1215 = vadd.f32 0.0, %v1214
      %v1216 = vpop.f32.mrb[0].mxu0
      %v1217 = vpop.f32.mrb[0].mxu0
      %v1218 = vadd.f32 0.0, %v1217
      %v1219 = vpop.f32.mrb[0].mxu0
      %1220 = vmatprep.mubr.bf16.mxu0 0
      %1221 = vmatmul.mubr.bf16.gmra.mrb[0].mxu0 %v174
      %v1222 = vpop.f32.mrb[0].mxu0
      %v1223 = vadd.f32 0.0, %v1222
      %v1224 = vpop.f32.mrb[0].mxu0
      %v1225 = vpop.f32.mrb[0].mxu0
      %v1226 = vadd.f32 0.0, %v1225
      %v1227 = vpop.f32.mrb[0].mxu0
      %1228 = vmatprep.mubr.bf16.mxu0 0
      %1229 = vmatmul.mubr.bf16.gmra.mrb[0].mxu0 %v177
      %v1230 = vpop.f32.mrb[0].mxu0
      %v1231 = vadd.f32 0.0, %v1230
      %v1232 = vpop.f32.mrb[0].mxu0
      %v1233 = vpop.f32.mrb[0].mxu0
      %v1234 = vadd.f32 0.0, %v1233
      %v1235 = vpop.f32.mrb[0].mxu0
      %1236 = vdwg.mxu0
      %v1237 = vmax.f32 %v1207, 0.0
      %v1238 = vmax.f32 %v1210, 0.0
      %v1239 = vmax.f32 %v1215, 0.0
      %v1240 = vmax.f32 %v1218, 0.0
      %v1241 = vmax.f32 %v1223, 0.0
      %v1242 = vmax.f32 %v1226, 0.0
      %v1243 = vmax.f32 %v1231, 0.0
      %v1244 = vmax.f32 %v1234, 0.0
      %v1245 = vpack.c.bf16 %v1238, %v1237
      %v1246 = vpack.c.bf16 %v1240, %v1239
      %v1247 = vpack.c.bf16 %v1242, %v1241
      %v1248 = vpack.c.bf16 %v1244, %v1243
      %1249 = vmatprep.subr.bf16.mxu0 0
      %1250 = vmatpush1.bf16.msra.mxu0 %v1245
      %1251 = vmatprep.subr.bf16.mxu0 0
      %1252 = vmatpush1.bf16.msra.mxu0 %v1246
      %1253 = vmatprep.subr.bf16.mxu0 0
      %1254 = vmatpush1.bf16.msra.mxu0 %v1247
      %1255 = vmatprep.subr.bf16.mxu0 0
      %1256 = vmatpush1.bf16.msra.mxu0 %v1248
      %1257 = vmatprep.subr.bf16.mxu0 0
      %1258 = vmatpush1.bf16.msra.mxu0 0
      %1259 = vmatprep.subr.bf16.mxu0 0
      %1260 = vmatpush1.bf16.msra.mxu0 0
      %1261 = vmatprep.subr.bf16.mxu0 0
      %1262 = vmatpush1.bf16.msra.mxu0 0
      %1263 = vmatprep.subr.bf16.mxu0 0
      %1264 = vmatpush1.bf16.msra.mxu0 0
      %1265 = vmatprep.subr.bf16.mxu0 0
      %1266 = vmatpush1.bf16.msra.mxu0 0
      %1267 = vmatprep.subr.bf16.mxu0 0
      %1268 = vmatpush1.bf16.msra.mxu0 0
      %1269 = vmatprep.subr.bf16.mxu0 0
      %1270 = vmatpush1.bf16.msra.mxu0 0
      %1271 = vmatprep.subr.bf16.mxu0 0
      %1272 = vmatpush1.bf16.msra.mxu0 0
      %1273 = vmatprep.subr.bf16.mxu0 0
      %1274 = vmatpush1.bf16.msra.mxu0 0
      %1275 = vmatprep.subr.bf16.mxu0 0
      %1276 = vmatpush1.bf16.msra.mxu0 0
      %1277 = vmatprep.subr.bf16.mxu0 0
      %1278 = vmatpush1.bf16.msra.mxu0 0
      %1279 = vmatprep.subr.bf16.mxu0 0
      %1280 = vmatpush1.bf16.msra.mxu0 0
      %1281 = vmatprep.mubr.bf16.mxu0 0
      %1282 = vmatmul.mubr.bf16.gmra.mrb[0].mxu0 %v318
      %v1283 = vpop.f32.mrb[0].mxu0
      %v1284 = vadd.f32 %v55, %v1283
      %v1285 = vpop.f32.mrb[0].mxu0
      %v1286 = vpop.f32.mrb[0].mxu0
      %v1287 = vadd.f32 %v60, %v1286
      %v1288 = vpop.f32.mrb[0].mxu0
      %1289 = vmatprep.mubr.bf16.mxu0 0
      %1290 = vmatmul.mubr.bf16.gmra.mrb[0].mxu0 %v321
      %v1291 = vpop.f32.mrb[0].mxu0
      %v1292 = vadd.f32 %v65, %v1291
      %v1293 = vpop.f32.mrb[0].mxu0
      %v1294 = vpop.f32.mrb[0].mxu0
      %v1295 = vadd.f32 %v70, %v1294
      %v1296 = vpop.f32.mrb[0].mxu0
      %1297 = vmatprep.mubr.bf16.mxu0 0
      %1298 = vmatmul.mubr.bf16.gmra.mrb[0].mxu0 %v324
      %v1299 = vpop.f32.mrb[0].mxu0
      %v1300 = vadd.f32 %v75, %v1299
      %v1301 = vpop.f32.mrb[0].mxu0
      %v1302 = vpop.f32.mrb[0].mxu0
      %v1303 = vadd.f32 %v80, %v1302
      %v1304 = vpop.f32.mrb[0].mxu0
      %1305 = vmatprep.mubr.bf16.mxu0 0
      %1306 = vmatmul.mubr.bf16.gmra.mrb[0].mxu0 %v327
      %v1307 = vpop.f32.mrb[0].mxu0
      %v1308 = vadd.f32 %v85, %v1307
      %v1309 = vpop.f32.mrb[0].mxu0
      %v1310 = vpop.f32.mrb[0].mxu0
      %v1311 = vadd.f32 %v90, %v1310
      %v1312 = vpop.f32.mrb[0].mxu0
      %1313 = vmatprep.mubr.bf16.mxu0 0
      %1314 = vmatmul.mubr.bf16.gmra.mrb[0].mxu0 %v330
      %v1315 = vpop.f32.mrb[0].mxu0
      %v1316 = vadd.f32 %v95, %v1315
      %v1317 = vpop.f32.mrb[0].mxu0
      %v1318 = vpop.f32.mrb[0].mxu0
      %v1319 = vadd.f32 %v100, %v1318
      %v1320 = vpop.f32.mrb[0].mxu0
      %1321 = vmatprep.mubr.bf16.mxu0 0
      %1322 = vmatmul.mubr.bf16.gmra.mrb[0].mxu0 %v333
      %v1323 = vpop.f32.mrb[0].mxu0
      %v1324 = vadd.f32 %v105, %v1323
      %v1325 = vpop.f32.mrb[0].mxu0
      %v1326 = vpop.f32.mrb[0].mxu0
      %v1327 = vadd.f32 %v110, %v1326
      %v1328 = vpop.f32.mrb[0].mxu0
      %1329 = vmatprep.mubr.bf16.mxu0 0
      %1330 = vmatmul.mubr.bf16.gmra.mrb[0].mxu0 %v336
      %v1331 = vpop.f32.mrb[0].mxu0
      %v1332 = vadd.f32 %v115, %v1331
      %v1333 = vpop.f32.mrb[0].mxu0
      %v1334 = vpop.f32.mrb[0].mxu0
      %v1335 = vadd.f32 %v120, %v1334
      %v1336 = vpop.f32.mrb[0].mxu0
      %1337 = vmatprep.mubr.bf16.mxu0 0
      %1338 = vmatmul.mubr.bf16.gmra.mrb[0].mxu0 %v339
      %v1339 = vpop.f32.mrb[0].mxu0
      %v1340 = vadd.f32 %v125, %v1339
      %v1341 = vpop.f32.mrb[0].mxu0
      %v1342 = vpop.f32.mrb[0].mxu0
      %v1343 = vadd.f32 %v130, %v1342
      %v1344 = vpop.f32.mrb[0].mxu0
      %1345 = vdwg.mxu0
      %v1346 = vmax.f32 %v1284, 0.0
      %v1347 = vmax.f32 %v1287, 0.0
      %v1348 = vmax.f32 %v1292, 0.0
      %v1349 = vmax.f32 %v1295, 0.0
      %v1350 = vmax.f32 %v1300, 0.0
      %v1351 = vmax.f32 %v1303, 0.0
      %v1352 = vmax.f32 %v1308, 0.0
      %v1353 = vmax.f32 %v1311, 0.0
      %v1354 = vmax.f32 %v1316, 0.0
      %v1355 = vmax.f32 %v1319, 0.0
      %v1356 = vmax.f32 %v1324, 0.0
      %v1357 = vmax.f32 %v1327, 0.0
      %v1358 = vmax.f32 %v1332, 0.0
      %v1359 = vmax.f32 %v1335, 0.0
      %v1360 = vmax.f32 %v1340, 0.0
      %v1361 = vmax.f32 %v1343, 0.0
      %1362 = vmax.xlane.f32.xlu0 %v1346
      %v1363 = vpop.xlane.xlu0 %1362
      %1364 = vmax.xlane.f32.xlu0 %v1347
      %v1365 = vpop.xlane.xlu0 %1364
      %1366 = vmax.xlane.f32.xlu0 %v1348
      %v1367 = vpop.xlane.xlu0 %1366
      %1368 = vmax.xlane.f32.xlu0 %v1349
      %v1369 = vpop.xlane.xlu0 %1368
      %1370 = vmax.xlane.f32.xlu0 %v1350
      %v1371 = vpop.xlane.xlu0 %1370
      %1372 = vmax.xlane.f32.xlu0 %v1351
      %v1373 = vpop.xlane.xlu0 %1372
      %1374 = vmax.xlane.f32.xlu0 %v1352
      %v1375 = vpop.xlane.xlu0 %1374
      %1376 = vmax.xlane.f32.xlu0 %v1353
      %v1377 = vpop.xlane.xlu0 %1376
      %1378 = vmax.xlane.f32.xlu0 %v1354
      %v1379 = vpop.xlane.xlu0 %1378
      %1380 = vmax.xlane.f32.xlu0 %v1355
      %v1381 = vpop.xlane.xlu0 %1380
      %1382 = vmax.xlane.f32.xlu0 %v1356
      %v1383 = vpop.xlane.xlu0 %1382
      %1384 = vmax.xlane.f32.xlu0 %v1357
      %v1385 = vpop.xlane.xlu0 %1384
      %1386 = vmax.xlane.f32.xlu0 %v1358
      %v1387 = vpop.xlane.xlu0 %1386
      %1388 = vmax.xlane.f32.xlu0 %v1359
      %v1389 = vpop.xlane.xlu0 %1388
      %1390 = vmax.xlane.f32.xlu0 %v1360
      %v1391 = vpop.xlane.xlu0 %1390
      %1392 = vmax.xlane.f32.xlu0 %v1361
      %v1393 = vpop.xlane.xlu0 %1392
      %s1394 = scalar_lea.vmem %s0, 20
      %v1395 = vld [vmem:[%s1394] sm:$0xf]
      %v1397 = vsel %vm179, %v1395, 0
      %1399 = vmatprep.subr.bf16.mxu0 0
      %1400 = vmatpush1.bf16.msra.mxu0 %v1397
      %1401 = vmatprep.subr.bf16.mxu0 0
      %1402 = vmatpush1.bf16.msra.mxu0 0
      %1403 = vmatprep.subr.bf16.mxu0 0
      %1404 = vmatpush1.bf16.msra.mxu0 0
      %1405 = vmatprep.subr.bf16.mxu0 0
      %1406 = vmatpush1.bf16.msra.mxu0 0
      %1407 = vmatprep.subr.bf16.mxu0 0
      %1408 = vmatpush1.bf16.msra.mxu0 0
      %1409 = vmatprep.subr.bf16.mxu0 0
      %1410 = vmatpush1.bf16.msra.mxu0 0
      %1411 = vmatprep.subr.bf16.mxu0 0
      %1412 = vmatpush1.bf16.msra.mxu0 0
      %1413 = vmatprep.subr.bf16.mxu0 0
      %1414 = vmatpush1.bf16.msra.mxu0 0
      %1415 = vmatprep.subr.bf16.mxu0 0
      %1416 = vmatpush1.bf16.msra.mxu0 0
      %1417 = vmatprep.subr.bf16.mxu0 0
      %1418 = vmatpush1.bf16.msra.mxu0 0
      %1419 = vmatprep.subr.bf16.mxu0 0
      %1420 = vmatpush1.bf16.msra.mxu0 0
      %1421 = vmatprep.subr.bf16.mxu0 0
      %1422 = vmatpush1.bf16.msra.mxu0 0
      %1423 = vmatprep.subr.bf16.mxu0 0
      %1424 = vmatpush1.bf16.msra.mxu0 0
      %1425 = vmatprep.subr.bf16.mxu0 0
      %1426 = vmatpush1.bf16.msra.mxu0 0
      %1427 = vmatprep.subr.bf16.mxu0 0
      %1428 = vmatpush1.bf16.msra.mxu0 0
      %1429 = vmatprep.subr.bf16.mxu0 0
      %1430 = vmatpush1.bf16.msra.mxu0 0
      %1431 = vmatprep.mubr.bf16.mxu0 0
      %1432 = vmatmul.mubr.bf16.gmra.mrb[0].mxu0 %v168
      %v1433 = vpop.f32.mrb[0].mxu0
      %v1434 = vadd.f32 0.0, %v1433
      %v1435 = vpop.f32.mrb[0].mxu0
      %v1436 = vpop.f32.mrb[0].mxu0
      %v1437 = vadd.f32 0.0, %v1436
      %v1438 = vpop.f32.mrb[0].mxu0
      %1439 = vmatprep.mubr.bf16.mxu0 0
      %1440 = vmatmul.mubr.bf16.gmra.mrb[0].mxu0 %v171
      %v1441 = vpop.f32.mrb[0].mxu0
      %v1442 = vadd.f32 0.0, %v1441
      %v1443 = vpop.f32.mrb[0].mxu0
      %v1444 = vpop.f32.mrb[0].mxu0
      %v1445 = vadd.f32 0.0, %v1444
      %v1446 = vpop.f32.mrb[0].mxu0
      %1447 = vmatprep.mubr.bf16.mxu0 0
      %1448 = vmatmul.mubr.bf16.gmra.mrb[0].mxu0 %v174
      %v1449 = vpop.f32.mrb[0].mxu0
      %v1450 = vadd.f32 0.0, %v1449
      %v1451 = vpop.f32.mrb[0].mxu0
      %v1452 = vpop.f32.mrb[0].mxu0
      %v1453 = vadd.f32 0.0, %v1452
      %v1454 = vpop.f32.mrb[0].mxu0
      %1455 = vmatprep.mubr.bf16.mxu0 0
      %1456 = vmatmul.mubr.bf16.gmra.mrb[0].mxu0 %v177
      %v1457 = vpop.f32.mrb[0].mxu0
      %v1458 = vadd.f32 0.0, %v1457
      %v1459 = vpop.f32.mrb[0].mxu0
      %v1460 = vpop.f32.mrb[0].mxu0
      %v1461 = vadd.f32 0.0, %v1460
      %v1462 = vpop.f32.mrb[0].mxu0
      %1463 = vdwg.mxu0
      %v1464 = vmax.f32 %v1434, 0.0
      %v1465 = vmax.f32 %v1437, 0.0
      %v1466 = vmax.f32 %v1442, 0.0
      %v1467 = vmax.f32 %v1445, 0.0
      %v1468 = vmax.f32 %v1450, 0.0
      %v1469 = vmax.f32 %v1453, 0.0
      %v1470 = vmax.f32 %v1458, 0.0
      %v1471 = vmax.f32 %v1461, 0.0
      %v1472 = vpack.c.bf16 %v1465, %v1464
      %v1473 = vpack.c.bf16 %v1467, %v1466
      %v1474 = vpack.c.bf16 %v1469, %v1468
      %v1475 = vpack.c.bf16 %v1471, %v1470
      %1476 = vmatprep.subr.bf16.mxu0 0
      %1477 = vmatpush1.bf16.msra.mxu0 %v1472
      %1478 = vmatprep.subr.bf16.mxu0 0
      %1479 = vmatpush1.bf16.msra.mxu0 %v1473
      %1480 = vmatprep.subr.bf16.mxu0 0
      %1481 = vmatpush1.bf16.msra.mxu0 %v1474
      %1482 = vmatprep.subr.bf16.mxu0 0
      %1483 = vmatpush1.bf16.msra.mxu0 %v1475
      %1484 = vmatprep.subr.bf16.mxu0 0
      %1485 = vmatpush1.bf16.msra.mxu0 0
      %1486 = vmatprep.subr.bf16.mxu0 0
      %1487 = vmatpush1.bf16.msra.mxu0 0
      %1488 = vmatprep.subr.bf16.mxu0 0
      %1489 = vmatpush1.bf16.msra.mxu0 0
      %1490 = vmatprep.subr.bf16.mxu0 0
      %1491 = vmatpush1.bf16.msra.mxu0 0
      %1492 = vmatprep.subr.bf16.mxu0 0
      %1493 = vmatpush1.bf16.msra.mxu0 0
      %1494 = vmatprep.subr.bf16.mxu0 0
      %1495 = vmatpush1.bf16.msra.mxu0 0
      %1496 = vmatprep.subr.bf16.mxu0 0
      %1497 = vmatpush1.bf16.msra.mxu0 0
      %1498 = vmatprep.subr.bf16.mxu0 0
      %1499 = vmatpush1.bf16.msra.mxu0 0
      %1500 = vmatprep.subr.bf16.mxu0 0
      %1501 = vmatpush1.bf16.msra.mxu0 0
      %1502 = vmatprep.subr.bf16.mxu0 0
      %1503 = vmatpush1.bf16.msra.mxu0 0
      %1504 = vmatprep.subr.bf16.mxu0 0
      %1505 = vmatpush1.bf16.msra.mxu0 0
      %1506 = vmatprep.subr.bf16.mxu0 0
      %1507 = vmatpush1.bf16.msra.mxu0 0
      %1508 = vmatprep.mubr.bf16.mxu0 0
      %1509 = vmatmul.mubr.bf16.gmra.mrb[0].mxu0 %v318
      %v1510 = vpop.f32.mrb[0].mxu0
      %v1511 = vadd.f32 %v55, %v1510
      %v1512 = vpop.f32.mrb[0].mxu0
      %v1513 = vpop.f32.mrb[0].mxu0
      %v1514 = vadd.f32 %v60, %v1513
      %v1515 = vpop.f32.mrb[0].mxu0
      %1516 = vmatprep.mubr.bf16.mxu0 0
      %1517 = vmatmul.mubr.bf16.gmra.mrb[0].mxu0 %v321
      %v1518 = vpop.f32.mrb[0].mxu0
      %v1519 = vadd.f32 %v65, %v1518
      %v1520 = vpop.f32.mrb[0].mxu0
      %v1521 = vpop.f32.mrb[0].mxu0
      %v1522 = vadd.f32 %v70, %v1521
      %v1523 = vpop.f32.mrb[0].mxu0
      %1524 = vmatprep.mubr.bf16.mxu0 0
      %1525 = vmatmul.mubr.bf16.gmra.mrb[0].mxu0 %v324
      %v1526 = vpop.f32.mrb[0].mxu0
      %v1527 = vadd.f32 %v75, %v1526
      %v1528 = vpop.f32.mrb[0].mxu0
      %v1529 = vpop.f32.mrb[0].mxu0
      %v1530 = vadd.f32 %v80, %v1529
      %v1531 = vpop.f32.mrb[0].mxu0
      %1532 = vmatprep.mubr.bf16.mxu0 0
      %1533 = vmatmul.mubr.bf16.gmra.mrb[0].mxu0 %v327
      %v1534 = vpop.f32.mrb[0].mxu0
      %v1535 = vadd.f32 %v85, %v1534
      %v1536 = vpop.f32.mrb[0].mxu0
      %v1537 = vpop.f32.mrb[0].mxu0
      %v1538 = vadd.f32 %v90, %v1537
      %v1539 = vpop.f32.mrb[0].mxu0
      %1540 = vmatprep.mubr.bf16.mxu0 0
      %1541 = vmatmul.mubr.bf16.gmra.mrb[0].mxu0 %v330
      %v1542 = vpop.f32.mrb[0].mxu0
      %v1543 = vadd.f32 %v95, %v1542
      %v1544 = vpop.f32.mrb[0].mxu0
      %v1545 = vpop.f32.mrb[0].mxu0
      %v1546 = vadd.f32 %v100, %v1545
      %v1547 = vpop.f32.mrb[0].mxu0
      %1548 = vmatprep.mubr.bf16.mxu0 0
      %1549 = vmatmul.mubr.bf16.gmra.mrb[0].mxu0 %v333
      %v1550 = vpop.f32.mrb[0].mxu0
      %v1551 = vadd.f32 %v105, %v1550
      %v1552 = vpop.f32.mrb[0].mxu0
      %v1553 = vpop.f32.mrb[0].mxu0
      %v1554 = vadd.f32 %v110, %v1553
      %v1555 = vpop.f32.mrb[0].mxu0
      %1556 = vmatprep.mubr.bf16.mxu0 0
      %1557 = vmatmul.mubr.bf16.gmra.mrb[0].mxu0 %v336
      %v1558 = vpop.f32.mrb[0].mxu0
      %v1559 = vadd.f32 %v115, %v1558
      %v1560 = vpop.f32.mrb[0].mxu0
      %v1561 = vpop.f32.mrb[0].mxu0
      %v1562 = vadd.f32 %v120, %v1561
      %v1563 = vpop.f32.mrb[0].mxu0
      %1564 = vmatprep.mubr.bf16.mxu0 0
      %1565 = vmatmul.mubr.bf16.gmra.mrb[0].mxu0 %v339
      %v1566 = vpop.f32.mrb[0].mxu0
      %v1567 = vadd.f32 %v125, %v1566
      %v1568 = vpop.f32.mrb[0].mxu0
      %v1569 = vpop.f32.mrb[0].mxu0
      %v1570 = vadd.f32 %v130, %v1569
      %v1571 = vpop.f32.mrb[0].mxu0
      %1572 = vdwg.mxu0
      %v1573 = vmax.f32 %v1511, 0.0
      %v1574 = vmax.f32 %v1514, 0.0
      %v1575 = vmax.f32 %v1519, 0.0
      %v1576 = vmax.f32 %v1522, 0.0
      %v1577 = vmax.f32 %v1527, 0.0
      %v1578 = vmax.f32 %v1530, 0.0
      %v1579 = vmax.f32 %v1535, 0.0
      %v1580 = vmax.f32 %v1538, 0.0
      %v1581 = vmax.f32 %v1543, 0.0
      %v1582 = vmax.f32 %v1546, 0.0
      %v1583 = vmax.f32 %v1551, 0.0
      %v1584 = vmax.f32 %v1554, 0.0
      %v1585 = vmax.f32 %v1559, 0.0
      %v1586 = vmax.f32 %v1562, 0.0
      %v1587 = vmax.f32 %v1567, 0.0
      %v1588 = vmax.f32 %v1570, 0.0
      %1589 = vmax.xlane.f32.xlu0 %v1573
      %v1590 = vpop.xlane.xlu0 %1589
      %1591 = vmax.xlane.f32.xlu0 %v1574
      %v1592 = vpop.xlane.xlu0 %1591
      %1593 = vmax.xlane.f32.xlu0 %v1575
      %v1594 = vpop.xlane.xlu0 %1593
      %1595 = vmax.xlane.f32.xlu0 %v1576
      %v1596 = vpop.xlane.xlu0 %1595
      %1597 = vmax.xlane.f32.xlu0 %v1577
      %v1598 = vpop.xlane.xlu0 %1597
      %1599 = vmax.xlane.f32.xlu0 %v1578
      %v1600 = vpop.xlane.xlu0 %1599
      %1601 = vmax.xlane.f32.xlu0 %v1579
      %v1602 = vpop.xlane.xlu0 %1601
      %1603 = vmax.xlane.f32.xlu0 %v1580
      %v1604 = vpop.xlane.xlu0 %1603
      %1605 = vmax.xlane.f32.xlu0 %v1581
      %v1606 = vpop.xlane.xlu0 %1605
      %1607 = vmax.xlane.f32.xlu0 %v1582
      %v1608 = vpop.xlane.xlu0 %1607
      %1609 = vmax.xlane.f32.xlu0 %v1583
      %v1610 = vpop.xlane.xlu0 %1609
      %1611 = vmax.xlane.f32.xlu0 %v1584
      %v1612 = vpop.xlane.xlu0 %1611
      %1613 = vmax.xlane.f32.xlu0 %v1585
      %v1614 = vpop.xlane.xlu0 %1613
      %1615 = vmax.xlane.f32.xlu0 %v1586
      %v1616 = vpop.xlane.xlu0 %1615
      %1617 = vmax.xlane.f32.xlu0 %v1587
      %v1618 = vpop.xlane.xlu0 %1617
      %1619 = vmax.xlane.f32.xlu0 %v1588
      %v1620 = vpop.xlane.xlu0 %1619
      %s1621 = scalar_lea.vmem %s0, 24
      %v1622 = vld [vmem:[%s1621] sm:$0xf]
      %v1624 = vsel %vm179, %v1622, 0
      %1626 = vmatprep.subr.bf16.mxu0 0
      %1627 = vmatpush1.bf16.msra.mxu0 %v1624
      %1628 = vmatprep.subr.bf16.mxu0 0
      %1629 = vmatpush1.bf16.msra.mxu0 0
      %1630 = vmatprep.subr.bf16.mxu0 0
      %1631 = vmatpush1.bf16.msra.mxu0 0
      %1632 = vmatprep.subr.bf16.mxu0 0
      %1633 = vmatpush1.bf16.msra.mxu0 0
      %1634 = vmatprep.subr.bf16.mxu0 0
      %1635 = vmatpush1.bf16.msra.mxu0 0
      %1636 = vmatprep.subr.bf16.mxu0 0
      %1637 = vmatpush1.bf16.msra.mxu0 0
      %1638 = vmatprep.subr.bf16.mxu0 0
      %1639 = vmatpush1.bf16.msra.mxu0 0
      %1640 = vmatprep.subr.bf16.mxu0 0
      %1641 = vmatpush1.bf16.msra.mxu0 0
      %1642 = vmatprep.subr.bf16.mxu0 0
      %1643 = vmatpush1.bf16.msra.mxu0 0
      %1644 = vmatprep.subr.bf16.mxu0 0
      %1645 = vmatpush1.bf16.msra.mxu0 0
      %1646 = vmatprep.subr.bf16.mxu0 0
      %1647 = vmatpush1.bf16.msra.mxu0 0
      %1648 = vmatprep.subr.bf16.mxu0 0
      %1649 = vmatpush1.bf16.msra.mxu0 0
      %1650 = vmatprep.subr.bf16.mxu0 0
      %1651 = vmatpush1.bf16.msra.mxu0 0
      %1652 = vmatprep.subr.bf16.mxu0 0
      %1653 = vmatpush1.bf16.msra.mxu0 0
      %1654 = vmatprep.subr.bf16.mxu0 0
      %1655 = vmatpush1.bf16.msra.mxu0 0
      %1656 = vmatprep.subr.bf16.mxu0 0
      %1657 = vmatpush1.bf16.msra.mxu0 0
      %1658 = vmatprep.mubr.bf16.mxu0 0
      %1659 = vmatmul.mubr.bf16.gmra.mrb[0].mxu0 %v168
      %v1660 = vpop.f32.mrb[0].mxu0
      %v1661 = vadd.f32 0.0, %v1660
      %v1662 = vpop.f32.mrb[0].mxu0
      %v1663 = vpop.f32.mrb[0].mxu0
      %v1664 = vadd.f32 0.0, %v1663
      %v1665 = vpop.f32.mrb[0].mxu0
      %1666 = vmatprep.mubr.bf16.mxu0 0
      %1667 = vmatmul.mubr.bf16.gmra.mrb[0].mxu0 %v171
      %v1668 = vpop.f32.mrb[0].mxu0
      %v1669 = vadd.f32 0.0, %v1668
      %v1670 = vpop.f32.mrb[0].mxu0
      %v1671 = vpop.f32.mrb[0].mxu0
      %v1672 = vadd.f32 0.0, %v1671
      %v1673 = vpop.f32.mrb[0].mxu0
      %1674 = vmatprep.mubr.bf16.mxu0 0
      %1675 = vmatmul.mubr.bf16.gmra.mrb[0].mxu0 %v174
      %v1676 = vpop.f32.mrb[0].mxu0
      %v1677 = vadd.f32 0.0, %v1676
      %v1678 = vpop.f32.mrb[0].mxu0
      %v1679 = vpop.f32.mrb[0].mxu0
      %v1680 = vadd.f32 0.0, %v1679
      %v1681 = vpop.f32.mrb[0].mxu0
      %1682 = vmatprep.mubr.bf16.mxu0 0
      %1683 = vmatmul.mubr.bf16.gmra.mrb[0].mxu0 %v177
      %v1684 = vpop.f32.mrb[0].mxu0
      %v1685 = vadd.f32 0.0, %v1684
      %v1686 = vpop.f32.mrb[0].mxu0
      %v1687 = vpop.f32.mrb[0].mxu0
      %v1688 = vadd.f32 0.0, %v1687
      %v1689 = vpop.f32.mrb[0].mxu0
      %1690 = vdwg.mxu0
      %v1691 = vmax.f32 %v1661, 0.0
      %v1692 = vmax.f32 %v1664, 0.0
      %v1693 = vmax.f32 %v1669, 0.0
      %v1694 = vmax.f32 %v1672, 0.0
      %v1695 = vmax.f32 %v1677, 0.0
      %v1696 = vmax.f32 %v1680, 0.0
      %v1697 = vmax.f32 %v1685, 0.0
      %v1698 = vmax.f32 %v1688, 0.0
      %v1699 = vpack.c.bf16 %v1692, %v1691
      %v1700 = vpack.c.bf16 %v1694, %v1693
      %v1701 = vpack.c.bf16 %v1696, %v1695
      %v1702 = vpack.c.bf16 %v1698, %v1697
      %1703 = vmatprep.subr.bf16.mxu0 0
      %1704 = vmatpush1.bf16.msra.mxu0 %v1699
      %1705 = vmatprep.subr.bf16.mxu0 0
      %1706 = vmatpush1.bf16.msra.mxu0 %v1700
      %1707 = vmatprep.subr.bf16.mxu0 0
      %1708 = vmatpush1.bf16.msra.mxu0 %v1701
      %1709 = vmatprep.subr.bf16.mxu0 0
      %1710 = vmatpush1.bf16.msra.mxu0 %v1702
      %1711 = vmatprep.subr.bf16.mxu0 0
      %1712 = vmatpush1.bf16.msra.mxu0 0
      %1713 = vmatprep.subr.bf16.mxu0 0
      %1714 = vmatpush1.bf16.msra.mxu0 0
      %1715 = vmatprep.subr.bf16.mxu0 0
      %1716 = vmatpush1.bf16.msra.mxu0 0
      %1717 = vmatprep.subr.bf16.mxu0 0
      %1718 = vmatpush1.bf16.msra.mxu0 0
      %1719 = vmatprep.subr.bf16.mxu0 0
      %1720 = vmatpush1.bf16.msra.mxu0 0
      %1721 = vmatprep.subr.bf16.mxu0 0
      %1722 = vmatpush1.bf16.msra.mxu0 0
      %1723 = vmatprep.subr.bf16.mxu0 0
      %1724 = vmatpush1.bf16.msra.mxu0 0
      %1725 = vmatprep.subr.bf16.mxu0 0
      %1726 = vmatpush1.bf16.msra.mxu0 0
      %1727 = vmatprep.subr.bf16.mxu0 0
      %1728 = vmatpush1.bf16.msra.mxu0 0
      %1729 = vmatprep.subr.bf16.mxu0 0
      %1730 = vmatpush1.bf16.msra.mxu0 0
      %1731 = vmatprep.subr.bf16.mxu0 0
      %1732 = vmatpush1.bf16.msra.mxu0 0
      %1733 = vmatprep.subr.bf16.mxu0 0
      %1734 = vmatpush1.bf16.msra.mxu0 0
      %1735 = vmatprep.mubr.bf16.mxu0 0
      %1736 = vmatmul.mubr.bf16.gmra.mrb[0].mxu0 %v318
      %v1737 = vpop.f32.mrb[0].mxu0
      %v1738 = vadd.f32 %v55, %v1737
      %v1739 = vpop.f32.mrb[0].mxu0
      %v1740 = vpop.f32.mrb[0].mxu0
      %v1741 = vadd.f32 %v60, %v1740
      %v1742 = vpop.f32.mrb[0].mxu0
      %1743 = vmatprep.mubr.bf16.mxu0 0
      %1744 = vmatmul.mubr.bf16.gmra.mrb[0].mxu0 %v321
      %v1745 = vpop.f32.mrb[0].mxu0
      %v1746 = vadd.f32 %v65, %v1745
      %v1747 = vpop.f32.mrb[0].mxu0
      %v1748 = vpop.f32.mrb[0].mxu0
      %v1749 = vadd.f32 %v70, %v1748
      %v1750 = vpop.f32.mrb[0].mxu0
      %1751 = vmatprep.mubr.bf16.mxu0 0
      %1752 = vmatmul.mubr.bf16.gmra.mrb[0].mxu0 %v324
      %v1753 = vpop.f32.mrb[0].mxu0
      %v1754 = vadd.f32 %v75, %v1753
      %v1755 = vpop.f32.mrb[0].mxu0
      %v1756 = vpop.f32.mrb[0].mxu0
      %v1757 = vadd.f32 %v80, %v1756
      %v1758 = vpop.f32.mrb[0].mxu0
      %1759 = vmatprep.mubr.bf16.mxu0 0
      %1760 = vmatmul.mubr.bf16.gmra.mrb[0].mxu0 %v327
      %v1761 = vpop.f32.mrb[0].mxu0
      %v1762 = vadd.f32 %v85, %v1761
      %v1763 = vpop.f32.mrb[0].mxu0
      %v1764 = vpop.f32.mrb[0].mxu0
      %v1765 = vadd.f32 %v90, %v1764
      %v1766 = vpop.f32.mrb[0].mxu0
      %1767 = vmatprep.mubr.bf16.mxu0 0
      %1768 = vmatmul.mubr.bf16.gmra.mrb[0].mxu0 %v330
      %v1769 = vpop.f32.mrb[0].mxu0
      %v1770 = vadd.f32 %v95, %v1769
      %v1771 = vpop.f32.mrb[0].mxu0
      %v1772 = vpop.f32.mrb[0].mxu0
      %v1773 = vadd.f32 %v100, %v1772
      %v1774 = vpop.f32.mrb[0].mxu0
      %1775 = vmatprep.mubr.bf16.mxu0 0
      %1776 = vmatmul.mubr.bf16.gmra.mrb[0].mxu0 %v333
      %v1777 = vpop.f32.mrb[0].mxu0
      %v1778 = vadd.f32 %v105, %v1777
      %v1779 = vpop.f32.mrb[0].mxu0
      %v1780 = vpop.f32.mrb[0].mxu0
      %v1781 = vadd.f32 %v110, %v1780
      %v1782 = vpop.f32.mrb[0].mxu0
      %1783 = vmatprep.mubr.bf16.mxu0 0
      %1784 = vmatmul.mubr.bf16.gmra.mrb[0].mxu0 %v336
      %v1785 = vpop.f32.mrb[0].mxu0
      %v1786 = vadd.f32 %v115, %v1785
      %v1787 = vpop.f32.mrb[0].mxu0
      %v1788 = vpop.f32.mrb[0].mxu0
      %v1789 = vadd.f32 %v120, %v1788
      %v1790 = vpop.f32.mrb[0].mxu0
      %1791 = vmatprep.mubr.bf16.mxu0 0
      %1792 = vmatmul.mubr.bf16.gmra.mrb[0].mxu0 %v339
      %v1793 = vpop.f32.mrb[0].mxu0
      %v1794 = vadd.f32 %v125, %v1793
      %v1795 = vpop.f32.mrb[0].mxu0
      %v1796 = vpop.f32.mrb[0].mxu0
      %v1797 = vadd.f32 %v130, %v1796
      %v1798 = vpop.f32.mrb[0].mxu0
      %1799 = vdwg.mxu0
      %v1800 = vmax.f32 %v1738, 0.0
      %v1801 = vmax.f32 %v1741, 0.0
      %v1802 = vmax.f32 %v1746, 0.0
      %v1803 = vmax.f32 %v1749, 0.0
      %v1804 = vmax.f32 %v1754, 0.0
      %v1805 = vmax.f32 %v1757, 0.0
      %v1806 = vmax.f32 %v1762, 0.0
      %v1807 = vmax.f32 %v1765, 0.0
      %v1808 = vmax.f32 %v1770, 0.0
      %v1809 = vmax.f32 %v1773, 0.0
      %v1810 = vmax.f32 %v1778, 0.0
      %v1811 = vmax.f32 %v1781, 0.0
      %v1812 = vmax.f32 %v1786, 0.0
      %v1813 = vmax.f32 %v1789, 0.0
      %v1814 = vmax.f32 %v1794, 0.0
      %v1815 = vmax.f32 %v1797, 0.0
      %1816 = vmax.xlane.f32.xlu0 %v1800
      %v1817 = vpop.xlane.xlu0 %1816
      %1818 = vmax.xlane.f32.xlu0 %v1801
      %v1819 = vpop.xlane.xlu0 %1818
      %1820 = vmax.xlane.f32.xlu0 %v1802
      %v1821 = vpop.xlane.xlu0 %1820
      %1822 = vmax.xlane.f32.xlu0 %v1803
      %v1823 = vpop.xlane.xlu0 %1822
      %1824 = vmax.xlane.f32.xlu0 %v1804
      %v1825 = vpop.xlane.xlu0 %1824
      %1826 = vmax.xlane.f32.xlu0 %v1805
      %v1827 = vpop.xlane.xlu0 %1826
      %1828 = vmax.xlane.f32.xlu0 %v1806
      %v1829 = vpop.xlane.xlu0 %1828
      %1830 = vmax.xlane.f32.xlu0 %v1807
      %v1831 = vpop.xlane.xlu0 %1830
      %1832 = vmax.xlane.f32.xlu0 %v1808
      %v1833 = vpop.xlane.xlu0 %1832
      %1834 = vmax.xlane.f32.xlu0 %v1809
      %v1835 = vpop.xlane.xlu0 %1834
      %1836 = vmax.xlane.f32.xlu0 %v1810
      %v1837 = vpop.xlane.xlu0 %1836
      %1838 = vmax.xlane.f32.xlu0 %v1811
      %v1839 = vpop.xlane.xlu0 %1838
      %1840 = vmax.xlane.f32.xlu0 %v1812
      %v1841 = vpop.xlane.xlu0 %1840
      %1842 = vmax.xlane.f32.xlu0 %v1813
      %v1843 = vpop.xlane.xlu0 %1842
      %1844 = vmax.xlane.f32.xlu0 %v1814
      %v1845 = vpop.xlane.xlu0 %1844
      %1846 = vmax.xlane.f32.xlu0 %v1815
      %v1847 = vpop.xlane.xlu0 %1846
      %s1848 = scalar_lea.vmem %s0, 28
      %v1849 = vld [vmem:[%s1848] sm:$0xf]
      %v1851 = vsel %vm179, %v1849, 0
      %1853 = vmatprep.subr.bf16.mxu0 0
      %1854 = vmatpush1.bf16.msra.mxu0 %v1851
      %1855 = vmatprep.subr.bf16.mxu0 0
      %1856 = vmatpush1.bf16.msra.mxu0 0
      %1857 = vmatprep.subr.bf16.mxu0 0
      %1858 = vmatpush1.bf16.msra.mxu0 0
      %1859 = vmatprep.subr.bf16.mxu0 0
      %1860 = vmatpush1.bf16.msra.mxu0 0
      %1861 = vmatprep.subr.bf16.mxu0 0
      %1862 = vmatpush1.bf16.msra.mxu0 0
      %1863 = vmatprep.subr.bf16.mxu0 0
      %1864 = vmatpush1.bf16.msra.mxu0 0
      %1865 = vmatprep.subr.bf16.mxu0 0
      %1866 = vmatpush1.bf16.msra.mxu0 0
      %1867 = vmatprep.subr.bf16.mxu0 0
      %1868 = vmatpush1.bf16.msra.mxu0 0
      %1869 = vmatprep.subr.bf16.mxu0 0
      %1870 = vmatpush1.bf16.msra.mxu0 0
      %1871 = vmatprep.subr.bf16.mxu0 0
      %1872 = vmatpush1.bf16.msra.mxu0 0
      %1873 = vmatprep.subr.bf16.mxu0 0
      %1874 = vmatpush1.bf16.msra.mxu0 0
      %1875 = vmatprep.subr.bf16.mxu0 0
      %1876 = vmatpush1.bf16.msra.mxu0 0
      %1877 = vmatprep.subr.bf16.mxu0 0
      %1878 = vmatpush1.bf16.msra.mxu0 0
      %1879 = vmatprep.subr.bf16.mxu0 0
      %1880 = vmatpush1.bf16.msra.mxu0 0
      %1881 = vmatprep.subr.bf16.mxu0 0
      %1882 = vmatpush1.bf16.msra.mxu0 0
      %1883 = vmatprep.subr.bf16.mxu0 0
      %1884 = vmatpush1.bf16.msra.mxu0 0
      %1885 = vmatprep.mubr.bf16.mxu0 0
      %1886 = vmatmul.mubr.bf16.gmra.mrb[0].mxu0 %v168
      %v1887 = vpop.f32.mrb[0].mxu0
      %v1888 = vadd.f32 0.0, %v1887
      %v1889 = vpop.f32.mrb[0].mxu0
      %v1890 = vpop.f32.mrb[0].mxu0
      %v1891 = vadd.f32 0.0, %v1890
      %v1892 = vpop.f32.mrb[0].mxu0
      %1893 = vmatprep.mubr.bf16.mxu0 0
      %1894 = vmatmul.mubr.bf16.gmra.mrb[0].mxu0 %v171
      %v1895 = vpop.f32.mrb[0].mxu0
      %v1896 = vadd.f32 0.0, %v1895
      %v1897 = vpop.f32.mrb[0].mxu0
      %v1898 = vpop.f32.mrb[0].mxu0
      %v1899 = vadd.f32 0.0, %v1898
      %v1900 = vpop.f32.mrb[0].mxu0
      %1901 = vmatprep.mubr.bf16.mxu0 0
      %1902 = vmatmul.mubr.bf16.gmra.mrb[0].mxu0 %v174
      %v1903 = vpop.f32.mrb[0].mxu0
      %v1904 = vadd.f32 0.0, %v1903
      %v1905 = vpop.f32.mrb[0].mxu0
      %v1906 = vpop.f32.mrb[0].mxu0
      %v1907 = vadd.f32 0.0, %v1906
      %v1908 = vpop.f32.mrb[0].mxu0
      %1909 = vmatprep.mubr.bf16.mxu0 0
      %1910 = vmatmul.mubr.bf16.gmra.mrb[0].mxu0 %v177
      %v1911 = vpop.f32.mrb[0].mxu0
      %v1912 = vadd.f32 0.0, %v1911
      %v1913 = vpop.f32.mrb[0].mxu0
      %v1914 = vpop.f32.mrb[0].mxu0
      %v1915 = vadd.f32 0.0, %v1914
      %v1916 = vpop.f32.mrb[0].mxu0
      %1917 = vdwg.mxu0
      %v1918 = vmax.f32 %v1888, 0.0
      %v1919 = vmax.f32 %v1891, 0.0
      %v1920 = vmax.f32 %v1896, 0.0
      %v1921 = vmax.f32 %v1899, 0.0
      %v1922 = vmax.f32 %v1904, 0.0
      %v1923 = vmax.f32 %v1907, 0.0
      %v1924 = vmax.f32 %v1912, 0.0
      %v1925 = vmax.f32 %v1915, 0.0
      %v1926 = vpack.c.bf16 %v1919, %v1918
      %v1927 = vpack.c.bf16 %v1921, %v1920
      %v1928 = vpack.c.bf16 %v1923, %v1922
      %v1929 = vpack.c.bf16 %v1925, %v1924
      %1930 = vmatprep.subr.bf16.mxu0 0
      %1931 = vmatpush1.bf16.msra.mxu0 %v1926
      %1932 = vmatprep.subr.bf16.mxu0 0
      %1933 = vmatpush1.bf16.msra.mxu0 %v1927
      %1934 = vmatprep.subr.bf16.mxu0 0
      %1935 = vmatpush1.bf16.msra.mxu0 %v1928
      %1936 = vmatprep.subr.bf16.mxu0 0
      %1937 = vmatpush1.bf16.msra.mxu0 %v1929
      %1938 = vmatprep.subr.bf16.mxu0 0
      %1939 = vmatpush1.bf16.msra.mxu0 0
      %1940 = vmatprep.subr.bf16.mxu0 0
      %1941 = vmatpush1.bf16.msra.mxu0 0
      %1942 = vmatprep.subr.bf16.mxu0 0
      %1943 = vmatpush1.bf16.msra.mxu0 0
      %1944 = vmatprep.subr.bf16.mxu0 0
      %1945 = vmatpush1.bf16.msra.mxu0 0
      %1946 = vmatprep.subr.bf16.mxu0 0
      %1947 = vmatpush1.bf16.msra.mxu0 0
      %1948 = vmatprep.subr.bf16.mxu0 0
      %1949 = vmatpush1.bf16.msra.mxu0 0
      %1950 = vmatprep.subr.bf16.mxu0 0
      %1951 = vmatpush1.bf16.msra.mxu0 0
      %1952 = vmatprep.subr.bf16.mxu0 0
      %1953 = vmatpush1.bf16.msra.mxu0 0
      %1954 = vmatprep.subr.bf16.mxu0 0
      %1955 = vmatpush1.bf16.msra.mxu0 0
      %1956 = vmatprep.subr.bf16.mxu0 0
      %1957 = vmatpush1.bf16.msra.mxu0 0
      %1958 = vmatprep.subr.bf16.mxu0 0
      %1959 = vmatpush1.bf16.msra.mxu0 0
      %1960 = vmatprep.subr.bf16.mxu0 0
      %1961 = vmatpush1.bf16.msra.mxu0 0
      %1962 = vmatprep.mubr.bf16.mxu0 0
      %1963 = vmatmul.mubr.bf16.gmra.mrb[0].mxu0 %v318
      %v1964 = vpop.f32.mrb[0].mxu0
      %v1965 = vadd.f32 %v55, %v1964
      %v1966 = vpop.f32.mrb[0].mxu0
      %v1967 = vpop.f32.mrb[0].mxu0
      %v1968 = vadd.f32 %v60, %v1967
      %v1969 = vpop.f32.mrb[0].mxu0
      %1970 = vmatprep.mubr.bf16.mxu0 0
      %1971 = vmatmul.mubr.bf16.gmra.mrb[0].mxu0 %v321
      %v1972 = vpop.f32.mrb[0].mxu0
      %v1973 = vadd.f32 %v65, %v1972
      %v1974 = vpop.f32.mrb[0].mxu0
      %v1975 = vpop.f32.mrb[0].mxu0
      %v1976 = vadd.f32 %v70, %v1975
      %v1977 = vpop.f32.mrb[0].mxu0
      %1978 = vmatprep.mubr.bf16.mxu0 0
      %1979 = vmatmul.mubr.bf16.gmra.mrb[0].mxu0 %v324
      %v1980 = vpop.f32.mrb[0].mxu0
      %v1981 = vadd.f32 %v75, %v1980
      %v1982 = vpop.f32.mrb[0].mxu0
      %v1983 = vpop.f32.mrb[0].mxu0
      %v1984 = vadd.f32 %v80, %v1983
      %v1985 = vpop.f32.mrb[0].mxu0
      %1986 = vmatprep.mubr.bf16.mxu0 0
      %1987 = vmatmul.mubr.bf16.gmra.mrb[0].mxu0 %v327
      %v1988 = vpop.f32.mrb[0].mxu0
      %v1989 = vadd.f32 %v85, %v1988
      %v1990 = vpop.f32.mrb[0].mxu0
      %v1991 = vpop.f32.mrb[0].mxu0
      %v1992 = vadd.f32 %v90, %v1991
      %v1993 = vpop.f32.mrb[0].mxu0
      %1994 = vmatprep.mubr.bf16.mxu0 0
      %1995 = vmatmul.mubr.bf16.gmra.mrb[0].mxu0 %v330
      %v1996 = vpop.f32.mrb[0].mxu0
      %v1997 = vadd.f32 %v95, %v1996
      %v1998 = vpop.f32.mrb[0].mxu0
      %v1999 = vpop.f32.mrb[0].mxu0
      %v2000 = vadd.f32 %v100, %v1999
      %v2001 = vpop.f32.mrb[0].mxu0
      %2002 = vmatprep.mubr.bf16.mxu0 0
      %2003 = vmatmul.mubr.bf16.gmra.mrb[0].mxu0 %v333
      %v2004 = vpop.f32.mrb[0].mxu0
      %v2005 = vadd.f32 %v105, %v2004
      %v2006 = vpop.f32.mrb[0].mxu0
      %v2007 = vpop.f32.mrb[0].mxu0
      %v2008 = vadd.f32 %v110, %v2007
      %v2009 = vpop.f32.mrb[0].mxu0
      %2010 = vmatprep.mubr.bf16.mxu0 0
      %2011 = vmatmul.mubr.bf16.gmra.mrb[0].mxu0 %v336
      %v2012 = vpop.f32.mrb[0].mxu0
      %v2013 = vadd.f32 %v115, %v2012
      %v2014 = vpop.f32.mrb[0].mxu0
      %v2015 = vpop.f32.mrb[0].mxu0
      %v2016 = vadd.f32 %v120, %v2015
      %v2017 = vpop.f32.mrb[0].mxu0
      %2018 = vmatprep.mubr.bf16.mxu0 0
      %2019 = vmatmul.mubr.bf16.gmra.mrb[0].mxu0 %v339
      %v2020 = vpop.f32.mrb[0].mxu0
      %v2021 = vadd.f32 %v125, %v2020
      %v2022 = vpop.f32.mrb[0].mxu0
      %v2023 = vpop.f32.mrb[0].mxu0
      %v2024 = vadd.f32 %v130, %v2023
      %v2025 = vpop.f32.mrb[0].mxu0
      %2026 = vdwg.mxu0
      %v2027 = vmax.f32 %v1965, 0.0
      %v2028 = vmax.f32 %v1968, 0.0
      %v2029 = vmax.f32 %v1973, 0.0
      %v2030 = vmax.f32 %v1976, 0.0
      %v2031 = vmax.f32 %v1981, 0.0
      %v2032 = vmax.f32 %v1984, 0.0
      %v2033 = vmax.f32 %v1989, 0.0
      %v2034 = vmax.f32 %v1992, 0.0
      %v2035 = vmax.f32 %v1997, 0.0
      %v2036 = vmax.f32 %v2000, 0.0
      %v2037 = vmax.f32 %v2005, 0.0
      %v2038 = vmax.f32 %v2008, 0.0
      %v2039 = vmax.f32 %v2013, 0.0
      %v2040 = vmax.f32 %v2016, 0.0
      %v2041 = vmax.f32 %v2021, 0.0
      %v2042 = vmax.f32 %v2024, 0.0
      %2043 = vmax.xlane.f32.xlu0 %v2027
      %v2044 = vpop.xlane.xlu0 %2043
      %2045 = vmax.xlane.f32.xlu0 %v2028
      %v2046 = vpop.xlane.xlu0 %2045
      %2047 = vmax.xlane.f32.xlu0 %v2029
      %v2048 = vpop.xlane.xlu0 %2047
      %2049 = vmax.xlane.f32.xlu0 %v2030
      %v2050 = vpop.xlane.xlu0 %2049
      %2051 = vmax.xlane.f32.xlu0 %v2031
      %v2052 = vpop.xlane.xlu0 %2051
      %2053 = vmax.xlane.f32.xlu0 %v2032
      %v2054 = vpop.xlane.xlu0 %2053
      %2055 = vmax.xlane.f32.xlu0 %v2033
      %v2056 = vpop.xlane.xlu0 %2055
      %2057 = vmax.xlane.f32.xlu0 %v2034
      %v2058 = vpop.xlane.xlu0 %2057
      %2059 = vmax.xlane.f32.xlu0 %v2035
      %v2060 = vpop.xlane.xlu0 %2059
      %2061 = vmax.xlane.f32.xlu0 %v2036
      %v2062 = vpop.xlane.xlu0 %2061
      %2063 = vmax.xlane.f32.xlu0 %v2037
      %v2064 = vpop.xlane.xlu0 %2063
      %2065 = vmax.xlane.f32.xlu0 %v2038
      %v2066 = vpop.xlane.xlu0 %2065
      %2067 = vmax.xlane.f32.xlu0 %v2039
      %v2068 = vpop.xlane.xlu0 %2067
      %2069 = vmax.xlane.f32.xlu0 %v2040
      %v2070 = vpop.xlane.xlu0 %2069
      %2071 = vmax.xlane.f32.xlu0 %v2041
      %v2072 = vpop.xlane.xlu0 %2071
      %2073 = vmax.xlane.f32.xlu0 %v2042
      %v2074 = vpop.xlane.xlu0 %2073
      %v2091 = vlaneseq
      %v2092 = vand.u32 %v2091, 127
      %v2093 = vlaneseq
      %v2094 = vshrl.u32 %v2093, 7
      %v2095 = vsub.s32 %v2092, %v2094
      %v2096 = vrot.slane %v455, %v2095
      %v2097 = vadd.s32 %v2092, 4294967288
      %v2098 = vlaneseq
      %v2099 = vshrl.u32 %v2098, 7
      %v2100 = vsub.s32 %v2097, %v2099
      %v2101 = vrot.slane %v457, %v2100
      %vm2102 = vcmask 130112
      %v2103 = vsel %vm2102, %v2101, %v2096
      %v2104 = vadd.s32 %v2092, 4294967280
      %v2105 = vlaneseq
      %v2106 = vshrl.u32 %v2105, 7
      %v2107 = vsub.s32 %v2104, %v2106
      %v2108 = vrot.slane %v459, %v2107
      %vm2109 = vcmask 195712
      %v2110 = vsel %vm2109, %v2108, %v2103
      %v2111 = vadd.s32 %v2092, 4294967272
      %v2112 = vlaneseq
      %v2113 = vshrl.u32 %v2112, 7
      %v2114 = vsub.s32 %v2111, %v2113
      %v2115 = vrot.slane %v461, %v2114
      %vm2116 = vcmask 261312
      %v2117 = vsel %vm2116, %v2115, %v2110
      %v2118 = vadd.s32 %v2092, 4294967264
      %v2119 = vlaneseq
      %v2120 = vshrl.u32 %v2119, 7
      %v2121 = vsub.s32 %v2118, %v2120
      %v2122 = vrot.slane %v463, %v2121
      %vm2123 = vcmask 326912
      %v2124 = vsel %vm2123, %v2122, %v2117
      %v2125 = vadd.s32 %v2092, 4294967256
      %v2126 = vlaneseq
      %v2127 = vshrl.u32 %v2126, 7
      %v2128 = vsub.s32 %v2125, %v2127
      %v2129 = vrot.slane %v465, %v2128
      %vm2130 = vcmask 392512
      %v2131 = vsel %vm2130, %v2129, %v2124
      %v2132 = vadd.s32 %v2092, 4294967248
      %v2133 = vlaneseq
      %v2134 = vshrl.u32 %v2133, 7
      %v2135 = vsub.s32 %v2132, %v2134
      %v2136 = vrot.slane %v467, %v2135
      %vm2137 = vcmask 458112
      %v2138 = vsel %vm2137, %v2136, %v2131
      %v2139 = vadd.s32 %v2092, 4294967240
      %v2140 = vlaneseq
      %v2141 = vshrl.u32 %v2140, 7
      %v2142 = vsub.s32 %v2139, %v2141
      %v2143 = vrot.slane %v469, %v2142
      %vm2144 = vcmask 523712
      %v2145 = vsel %vm2144, %v2143, %v2138
      %v2146 = vadd.s32 %v2092, 4294967232
      %v2147 = vlaneseq
      %v2148 = vshrl.u32 %v2147, 7
      %v2149 = vsub.s32 %v2146, %v2148
      %v2150 = vrot.slane %v471, %v2149
      %vm2151 = vcmask 589312
      %v2152 = vsel %vm2151, %v2150, %v2145
      %v2153 = vadd.s32 %v2092, 4294967224
      %v2154 = vlaneseq
      %v2155 = vshrl.u32 %v2154, 7
      %v2156 = vsub.s32 %v2153, %v2155
      %v2157 = vrot.slane %v473, %v2156
      %vm2158 = vcmask 654912
      %v2159 = vsel %vm2158, %v2157, %v2152
      %v2160 = vadd.s32 %v2092, 4294967216
      %v2161 = vlaneseq
      %v2162 = vshrl.u32 %v2161, 7
      %v2163 = vsub.s32 %v2160, %v2162
      %v2164 = vrot.slane %v475, %v2163
      %vm2165 = vcmask 720512
      %v2166 = vsel %vm2165, %v2164, %v2159
      %v2167 = vadd.s32 %v2092, 4294967208
      %v2168 = vlaneseq
      %v2169 = vshrl.u32 %v2168, 7
      %v2170 = vsub.s32 %v2167, %v2169
      %v2171 = vrot.slane %v477, %v2170
      %vm2172 = vcmask 786112
      %v2173 = vsel %vm2172, %v2171, %v2166
      %v2174 = vadd.s32 %v2092, 4294967200
      %v2175 = vlaneseq
      %v2176 = vshrl.u32 %v2175, 7
      %v2177 = vsub.s32 %v2174, %v2176
      %v2178 = vrot.slane %v479, %v2177
      %vm2179 = vcmask 851712
      %v2180 = vsel %vm2179, %v2178, %v2173
      %v2181 = vadd.s32 %v2092, 4294967192
      %v2182 = vlaneseq
      %v2183 = vshrl.u32 %v2182, 7
      %v2184 = vsub.s32 %v2181, %v2183
      %v2185 = vrot.slane %v481, %v2184
      %vm2186 = vcmask 917312
      %v2187 = vsel %vm2186, %v2185, %v2180
      %v2188 = vadd.s32 %v2092, 4294967184
      %v2189 = vlaneseq
      %v2190 = vshrl.u32 %v2189, 7
      %v2191 = vsub.s32 %v2188, %v2190
      %v2192 = vrot.slane %v483, %v2191
      %vm2193 = vcmask 982912
      %v2194 = vsel %vm2193, %v2192, %v2187
      %v2195 = vadd.s32 %v2092, 4294967176
      %v2196 = vlaneseq
      %v2197 = vshrl.u32 %v2196, 7
      %v2198 = vsub.s32 %v2195, %v2197
      %v2199 = vrot.slane %v485, %v2198
      %vm2200 = vcmask 1048512
      %v2201 = vsel %vm2200, %v2199, %v2194
      %v2219 = vlaneseq
      %v2220 = vshrl.u32 %v2219, 7
      %v2221 = vsub.s32 %v2092, %v2220
      %v2222 = vrot.slane %v682, %v2221
      %v2223 = vlaneseq
      %v2224 = vshrl.u32 %v2223, 7
      %v2225 = vsub.s32 %v2097, %v2224
      %v2226 = vrot.slane %v684, %v2225
      %v2227 = vsel %vm2102, %v2226, %v2222
      %v2228 = vlaneseq
      %v2229 = vshrl.u32 %v2228, 7
      %v2230 = vsub.s32 %v2104, %v2229
      %v2231 = vrot.slane %v686, %v2230
      %v2232 = vsel %vm2109, %v2231, %v2227
      %v2233 = vlaneseq
      %v2234 = vshrl.u32 %v2233, 7
      %v2235 = vsub.s32 %v2111, %v2234
      %v2236 = vrot.slane %v688, %v2235
      %v2237 = vsel %vm2116, %v2236, %v2232
      %v2238 = vlaneseq
      %v2239 = vshrl.u32 %v2238, 7
      %v2240 = vsub.s32 %v2118, %v2239
      %v2241 = vrot.slane %v690, %v2240
      %v2242 = vsel %vm2123, %v2241, %v2237
      %v2243 = vlaneseq
      %v2244 = vshrl.u32 %v2243, 7
      %v2245 = vsub.s32 %v2125, %v2244
      %v2246 = vrot.slane %v692, %v2245
      %v2247 = vsel %vm2130, %v2246, %v2242
      %v2248 = vlaneseq
      %v2249 = vshrl.u32 %v2248, 7
      %v2250 = vsub.s32 %v2132, %v2249
      %v2251 = vrot.slane %v694, %v2250
      %v2252 = vsel %vm2137, %v2251, %v2247
      %v2253 = vlaneseq
      %v2254 = vshrl.u32 %v2253, 7
      %v2255 = vsub.s32 %v2139, %v2254
      %v2256 = vrot.slane %v696, %v2255
      %v2257 = vsel %vm2144, %v2256, %v2252
      %v2258 = vlaneseq
      %v2259 = vshrl.u32 %v2258, 7
      %v2260 = vsub.s32 %v2146, %v2259
      %v2261 = vrot.slane %v698, %v2260
      %v2262 = vsel %vm2151, %v2261, %v2257
      %v2263 = vlaneseq
      %v2264 = vshrl.u32 %v2263, 7
      %v2265 = vsub.s32 %v2153, %v2264
      %v2266 = vrot.slane %v700, %v2265
      %v2267 = vsel %vm2158, %v2266, %v2262
      %v2268 = vlaneseq
      %v2269 = vshrl.u32 %v2268, 7
      %v2270 = vsub.s32 %v2160, %v2269
      %v2271 = vrot.slane %v702, %v2270
      %v2272 = vsel %vm2165, %v2271, %v2267
      %v2273 = vlaneseq
      %v2274 = vshrl.u32 %v2273, 7
      %v2275 = vsub.s32 %v2167, %v2274
      %v2276 = vrot.slane %v704, %v2275
      %v2277 = vsel %vm2172, %v2276, %v2272
      %v2278 = vlaneseq
      %v2279 = vshrl.u32 %v2278, 7
      %v2280 = vsub.s32 %v2174, %v2279
      %v2281 = vrot.slane %v706, %v2280
      %v2282 = vsel %vm2179, %v2281, %v2277
      %v2283 = vlaneseq
      %v2284 = vshrl.u32 %v2283, 7
      %v2285 = vsub.s32 %v2181, %v2284
      %v2286 = vrot.slane %v708, %v2285
      %v2287 = vsel %vm2186, %v2286, %v2282
      %v2288 = vlaneseq
      %v2289 = vshrl.u32 %v2288, 7
      %v2290 = vsub.s32 %v2188, %v2289
      %v2291 = vrot.slane %v710, %v2290
      %v2292 = vsel %vm2193, %v2291, %v2287
      %v2293 = vlaneseq
      %v2294 = vshrl.u32 %v2293, 7
      %v2295 = vsub.s32 %v2195, %v2294
      %v2296 = vrot.slane %v712, %v2295
      %v2297 = vsel %vm2200, %v2296, %v2292
      %v2315 = vlaneseq
      %v2316 = vshrl.u32 %v2315, 7
      %v2317 = vsub.s32 %v2092, %v2316
      %v2318 = vrot.slane %v909, %v2317
      %v2319 = vlaneseq
      %v2320 = vshrl.u32 %v2319, 7
      %v2321 = vsub.s32 %v2097, %v2320
      %v2322 = vrot.slane %v911, %v2321
      %v2323 = vsel %vm2102, %v2322, %v2318
      %v2324 = vlaneseq
      %v2325 = vshrl.u32 %v2324, 7
      %v2326 = vsub.s32 %v2104, %v2325
      %v2327 = vrot.slane %v913, %v2326
      %v2328 = vsel %vm2109, %v2327, %v2323
      %v2329 = vlaneseq
      %v2330 = vshrl.u32 %v2329, 7
      %v2331 = vsub.s32 %v2111, %v2330
      %v2332 = vrot.slane %v915, %v2331
      %v2333 = vsel %vm2116, %v2332, %v2328
      %v2334 = vlaneseq
      %v2335 = vshrl.u32 %v2334, 7
      %v2336 = vsub.s32 %v2118, %v2335
      %v2337 = vrot.slane %v917, %v2336
      %v2338 = vsel %vm2123, %v2337, %v2333
      %v2339 = vlaneseq
      %v2340 = vshrl.u32 %v2339, 7
      %v2341 = vsub.s32 %v2125, %v2340
      %v2342 = vrot.slane %v919, %v2341
      %v2343 = vsel %vm2130, %v2342, %v2338
      %v2344 = vlaneseq
      %v2345 = vshrl.u32 %v2344, 7
      %v2346 = vsub.s32 %v2132, %v2345
      %v2347 = vrot.slane %v921, %v2346
      %v2348 = vsel %vm2137, %v2347, %v2343
      %v2349 = vlaneseq
      %v2350 = vshrl.u32 %v2349, 7
      %v2351 = vsub.s32 %v2139, %v2350
      %v2352 = vrot.slane %v923, %v2351
      %v2353 = vsel %vm2144, %v2352, %v2348
      %v2354 = vlaneseq
      %v2355 = vshrl.u32 %v2354, 7
      %v2356 = vsub.s32 %v2146, %v2355
      %v2357 = vrot.slane %v925, %v2356
      %v2358 = vsel %vm2151, %v2357, %v2353
      %v2359 = vlaneseq
      %v2360 = vshrl.u32 %v2359, 7
      %v2361 = vsub.s32 %v2153, %v2360
      %v2362 = vrot.slane %v927, %v2361
      %v2363 = vsel %vm2158, %v2362, %v2358
      %v2364 = vlaneseq
      %v2365 = vshrl.u32 %v2364, 7
      %v2366 = vsub.s32 %v2160, %v2365
      %v2367 = vrot.slane %v929, %v2366
      %v2368 = vsel %vm2165, %v2367, %v2363
      %v2369 = vlaneseq
      %v2370 = vshrl.u32 %v2369, 7
      %v2371 = vsub.s32 %v2167, %v2370
      %v2372 = vrot.slane %v931, %v2371
      %v2373 = vsel %vm2172, %v2372, %v2368
      %v2374 = vlaneseq
      %v2375 = vshrl.u32 %v2374, 7
      %v2376 = vsub.s32 %v2174, %v2375
      %v2377 = vrot.slane %v933, %v2376
      %v2378 = vsel %vm2179, %v2377, %v2373
      %v2379 = vlaneseq
      %v2380 = vshrl.u32 %v2379, 7
      %v2381 = vsub.s32 %v2181, %v2380
      %v2382 = vrot.slane %v935, %v2381
      %v2383 = vsel %vm2186, %v2382, %v2378
      %v2384 = vlaneseq
      %v2385 = vshrl.u32 %v2384, 7
      %v2386 = vsub.s32 %v2188, %v2385
      %v2387 = vrot.slane %v937, %v2386
      %v2388 = vsel %vm2193, %v2387, %v2383
      %v2389 = vlaneseq
      %v2390 = vshrl.u32 %v2389, 7
      %v2391 = vsub.s32 %v2195, %v2390
      %v2392 = vrot.slane %v939, %v2391
      %v2393 = vsel %vm2200, %v2392, %v2388
      %v2411 = vlaneseq
      %v2412 = vshrl.u32 %v2411, 7
      %v2413 = vsub.s32 %v2092, %v2412
      %v2414 = vrot.slane %v1136, %v2413
      %v2415 = vlaneseq
      %v2416 = vshrl.u32 %v2415, 7
      %v2417 = vsub.s32 %v2097, %v2416
      %v2418 = vrot.slane %v1138, %v2417
      %v2419 = vsel %vm2102, %v2418, %v2414
      %v2420 = vlaneseq
      %v2421 = vshrl.u32 %v2420, 7
      %v2422 = vsub.s32 %v2104, %v2421
      %v2423 = vrot.slane %v1140, %v2422
      %v2424 = vsel %vm2109, %v2423, %v2419
      %v2425 = vlaneseq
      %v2426 = vshrl.u32 %v2425, 7
      %v2427 = vsub.s32 %v2111, %v2426
      %v2428 = vrot.slane %v1142, %v2427
      %v2429 = vsel %vm2116, %v2428, %v2424
      %v2430 = vlaneseq
      %v2431 = vshrl.u32 %v2430, 7
      %v2432 = vsub.s32 %v2118, %v2431
      %v2433 = vrot.slane %v1144, %v2432
      %v2434 = vsel %vm2123, %v2433, %v2429
      %v2435 = vlaneseq
      %v2436 = vshrl.u32 %v2435, 7
      %v2437 = vsub.s32 %v2125, %v2436
      %v2438 = vrot.slane %v1146, %v2437
      %v2439 = vsel %vm2130, %v2438, %v2434
      %v2440 = vlaneseq
      %v2441 = vshrl.u32 %v2440, 7
      %v2442 = vsub.s32 %v2132, %v2441
      %v2443 = vrot.slane %v1148, %v2442
      %v2444 = vsel %vm2137, %v2443, %v2439
      %v2445 = vlaneseq
      %v2446 = vshrl.u32 %v2445, 7
      %v2447 = vsub.s32 %v2139, %v2446
      %v2448 = vrot.slane %v1150, %v2447
      %v2449 = vsel %vm2144, %v2448, %v2444
      %v2450 = vlaneseq
      %v2451 = vshrl.u32 %v2450, 7
      %v2452 = vsub.s32 %v2146, %v2451
      %v2453 = vrot.slane %v1152, %v2452
      %v2454 = vsel %vm2151, %v2453, %v2449
      %v2455 = vlaneseq
      %v2456 = vshrl.u32 %v2455, 7
      %v2457 = vsub.s32 %v2153, %v2456
      %v2458 = vrot.slane %v1154, %v2457
      %v2459 = vsel %vm2158, %v2458, %v2454
      %v2460 = vlaneseq
      %v2461 = vshrl.u32 %v2460, 7
      %v2462 = vsub.s32 %v2160, %v2461
      %v2463 = vrot.slane %v1156, %v2462
      %v2464 = vsel %vm2165, %v2463, %v2459
      %v2465 = vlaneseq
      %v2466 = vshrl.u32 %v2465, 7
      %v2467 = vsub.s32 %v2167, %v2466
      %v2468 = vrot.slane %v1158, %v2467
      %v2469 = vsel %vm2172, %v2468, %v2464
      %v2470 = vlaneseq
      %v2471 = vshrl.u32 %v2470, 7
      %v2472 = vsub.s32 %v2174, %v2471
      %v2473 = vrot.slane %v1160, %v2472
      %v2474 = vsel %vm2179, %v2473, %v2469
      %v2475 = vlaneseq
      %v2476 = vshrl.u32 %v2475, 7
      %v2477 = vsub.s32 %v2181, %v2476
      %v2478 = vrot.slane %v1162, %v2477
      %v2479 = vsel %vm2186, %v2478, %v2474
      %v2480 = vlaneseq
      %v2481 = vshrl.u32 %v2480, 7
      %v2482 = vsub.s32 %v2188, %v2481
      %v2483 = vrot.slane %v1164, %v2482
      %v2484 = vsel %vm2193, %v2483, %v2479
      %v2485 = vlaneseq
      %v2486 = vshrl.u32 %v2485, 7
      %v2487 = vsub.s32 %v2195, %v2486
      %v2488 = vrot.slane %v1166, %v2487
      %v2489 = vsel %vm2200, %v2488, %v2484
      %v2507 = vlaneseq
      %v2508 = vshrl.u32 %v2507, 7
      %v2509 = vsub.s32 %v2092, %v2508
      %v2510 = vrot.slane %v1363, %v2509
      %v2511 = vlaneseq
      %v2512 = vshrl.u32 %v2511, 7
      %v2513 = vsub.s32 %v2097, %v2512
      %v2514 = vrot.slane %v1365, %v2513
      %v2515 = vsel %vm2102, %v2514, %v2510
      %v2516 = vlaneseq
      %v2517 = vshrl.u32 %v2516, 7
      %v2518 = vsub.s32 %v2104, %v2517
      %v2519 = vrot.slane %v1367, %v2518
      %v2520 = vsel %vm2109, %v2519, %v2515
      %v2521 = vlaneseq
      %v2522 = vshrl.u32 %v2521, 7
      %v2523 = vsub.s32 %v2111, %v2522
      %v2524 = vrot.slane %v1369, %v2523
      %v2525 = vsel %vm2116, %v2524, %v2520
      %v2526 = vlaneseq
      %v2527 = vshrl.u32 %v2526, 7
      %v2528 = vsub.s32 %v2118, %v2527
      %v2529 = vrot.slane %v1371, %v2528
      %v2530 = vsel %vm2123, %v2529, %v2525
      %v2531 = vlaneseq
      %v2532 = vshrl.u32 %v2531, 7
      %v2533 = vsub.s32 %v2125, %v2532
      %v2534 = vrot.slane %v1373, %v2533
      %v2535 = vsel %vm2130, %v2534, %v2530
      %v2536 = vlaneseq
      %v2537 = vshrl.u32 %v2536, 7
      %v2538 = vsub.s32 %v2132, %v2537
      %v2539 = vrot.slane %v1375, %v2538
      %v2540 = vsel %vm2137, %v2539, %v2535
      %v2541 = vlaneseq
      %v2542 = vshrl.u32 %v2541, 7
      %v2543 = vsub.s32 %v2139, %v2542
      %v2544 = vrot.slane %v1377, %v2543
      %v2545 = vsel %vm2144, %v2544, %v2540
      %v2546 = vlaneseq
      %v2547 = vshrl.u32 %v2546, 7
      %v2548 = vsub.s32 %v2146, %v2547
      %v2549 = vrot.slane %v1379, %v2548
      %v2550 = vsel %vm2151, %v2549, %v2545
      %v2551 = vlaneseq
      %v2552 = vshrl.u32 %v2551, 7
      %v2553 = vsub.s32 %v2153, %v2552
      %v2554 = vrot.slane %v1381, %v2553
      %v2555 = vsel %vm2158, %v2554, %v2550
      %v2556 = vlaneseq
      %v2557 = vshrl.u32 %v2556, 7
      %v2558 = vsub.s32 %v2160, %v2557
      %v2559 = vrot.slane %v1383, %v2558
      %v2560 = vsel %vm2165, %v2559, %v2555
      %v2561 = vlaneseq
      %v2562 = vshrl.u32 %v2561, 7
      %v2563 = vsub.s32 %v2167, %v2562
      %v2564 = vrot.slane %v1385, %v2563
      %v2565 = vsel %vm2172, %v2564, %v2560
      %v2566 = vlaneseq
      %v2567 = vshrl.u32 %v2566, 7
      %v2568 = vsub.s32 %v2174, %v2567
      %v2569 = vrot.slane %v1387, %v2568
      %v2570 = vsel %vm2179, %v2569, %v2565
      %v2571 = vlaneseq
      %v2572 = vshrl.u32 %v2571, 7
      %v2573 = vsub.s32 %v2181, %v2572
      %v2574 = vrot.slane %v1389, %v2573
      %v2575 = vsel %vm2186, %v2574, %v2570
      %v2576 = vlaneseq
      %v2577 = vshrl.u32 %v2576, 7
      %v2578 = vsub.s32 %v2188, %v2577
      %v2579 = vrot.slane %v1391, %v2578
      %v2580 = vsel %vm2193, %v2579, %v2575
      %v2581 = vlaneseq
      %v2582 = vshrl.u32 %v2581, 7
      %v2583 = vsub.s32 %v2195, %v2582
      %v2584 = vrot.slane %v1393, %v2583
      %v2585 = vsel %vm2200, %v2584, %v2580
      %v2603 = vlaneseq
      %v2604 = vshrl.u32 %v2603, 7
      %v2605 = vsub.s32 %v2092, %v2604
      %v2606 = vrot.slane %v1590, %v2605
      %v2607 = vlaneseq
      %v2608 = vshrl.u32 %v2607, 7
      %v2609 = vsub.s32 %v2097, %v2608
      %v2610 = vrot.slane %v1592, %v2609
      %v2611 = vsel %vm2102, %v2610, %v2606
      %v2612 = vlaneseq
      %v2613 = vshrl.u32 %v2612, 7
      %v2614 = vsub.s32 %v2104, %v2613
      %v2615 = vrot.slane %v1594, %v2614
      %v2616 = vsel %vm2109, %v2615, %v2611
      %v2617 = vlaneseq
      %v2618 = vshrl.u32 %v2617, 7
      %v2619 = vsub.s32 %v2111, %v2618
      %v2620 = vrot.slane %v1596, %v2619
      %v2621 = vsel %vm2116, %v2620, %v2616
      %v2622 = vlaneseq
      %v2623 = vshrl.u32 %v2622, 7
      %v2624 = vsub.s32 %v2118, %v2623
      %v2625 = vrot.slane %v1598, %v2624
      %v2626 = vsel %vm2123, %v2625, %v2621
      %v2627 = vlaneseq
      %v2628 = vshrl.u32 %v2627, 7
      %v2629 = vsub.s32 %v2125, %v2628
      %v2630 = vrot.slane %v1600, %v2629
      %v2631 = vsel %vm2130, %v2630, %v2626
      %v2632 = vlaneseq
      %v2633 = vshrl.u32 %v2632, 7
      %v2634 = vsub.s32 %v2132, %v2633
      %v2635 = vrot.slane %v1602, %v2634
      %v2636 = vsel %vm2137, %v2635, %v2631
      %v2637 = vlaneseq
      %v2638 = vshrl.u32 %v2637, 7
      %v2639 = vsub.s32 %v2139, %v2638
      %v2640 = vrot.slane %v1604, %v2639
      %v2641 = vsel %vm2144, %v2640, %v2636
      %v2642 = vlaneseq
      %v2643 = vshrl.u32 %v2642, 7
      %v2644 = vsub.s32 %v2146, %v2643
      %v2645 = vrot.slane %v1606, %v2644
      %v2646 = vsel %vm2151, %v2645, %v2641
      %v2647 = vlaneseq
      %v2648 = vshrl.u32 %v2647, 7
      %v2649 = vsub.s32 %v2153, %v2648
      %v2650 = vrot.slane %v1608, %v2649
      %v2651 = vsel %vm2158, %v2650, %v2646
      %v2652 = vlaneseq
      %v2653 = vshrl.u32 %v2652, 7
      %v2654 = vsub.s32 %v2160, %v2653
      %v2655 = vrot.slane %v1610, %v2654
      %v2656 = vsel %vm2165, %v2655, %v2651
      %v2657 = vlaneseq
      %v2658 = vshrl.u32 %v2657, 7
      %v2659 = vsub.s32 %v2167, %v2658
      %v2660 = vrot.slane %v1612, %v2659
      %v2661 = vsel %vm2172, %v2660, %v2656
      %v2662 = vlaneseq
      %v2663 = vshrl.u32 %v2662, 7
      %v2664 = vsub.s32 %v2174, %v2663
      %v2665 = vrot.slane %v1614, %v2664
      %v2666 = vsel %vm2179, %v2665, %v2661
      %v2667 = vlaneseq
      %v2668 = vshrl.u32 %v2667, 7
      %v2669 = vsub.s32 %v2181, %v2668
      %v2670 = vrot.slane %v1616, %v2669
      %v2671 = vsel %vm2186, %v2670, %v2666
      %v2672 = vlaneseq
      %v2673 = vshrl.u32 %v2672, 7
      %v2674 = vsub.s32 %v2188, %v2673
      %v2675 = vrot.slane %v1618, %v2674
      %v2676 = vsel %vm2193, %v2675, %v2671
      %v2677 = vlaneseq
      %v2678 = vshrl.u32 %v2677, 7
      %v2679 = vsub.s32 %v2195, %v2678
      %v2680 = vrot.slane %v1620, %v2679
      %v2681 = vsel %vm2200, %v2680, %v2676
      %v2699 = vlaneseq
      %v2700 = vshrl.u32 %v2699, 7
      %v2701 = vsub.s32 %v2092, %v2700
      %v2702 = vrot.slane %v1817, %v2701
      %v2703 = vlaneseq
      %v2704 = vshrl.u32 %v2703, 7
      %v2705 = vsub.s32 %v2097, %v2704
      %v2706 = vrot.slane %v1819, %v2705
      %v2707 = vsel %vm2102, %v2706, %v2702
      %v2708 = vlaneseq
      %v2709 = vshrl.u32 %v2708, 7
      %v2710 = vsub.s32 %v2104, %v2709
      %v2711 = vrot.slane %v1821, %v2710
      %v2712 = vsel %vm2109, %v2711, %v2707
      %v2713 = vlaneseq
      %v2714 = vshrl.u32 %v2713, 7
      %v2715 = vsub.s32 %v2111, %v2714
      %v2716 = vrot.slane %v1823, %v2715
      %v2717 = vsel %vm2116, %v2716, %v2712
      %v2718 = vlaneseq
      %v2719 = vshrl.u32 %v2718, 7
      %v2720 = vsub.s32 %v2118, %v2719
      %v2721 = vrot.slane %v1825, %v2720
      %v2722 = vsel %vm2123, %v2721, %v2717
      %v2723 = vlaneseq
      %v2724 = vshrl.u32 %v2723, 7
      %v2725 = vsub.s32 %v2125, %v2724
      %v2726 = vrot.slane %v1827, %v2725
      %v2727 = vsel %vm2130, %v2726, %v2722
      %v2728 = vlaneseq
      %v2729 = vshrl.u32 %v2728, 7
      %v2730 = vsub.s32 %v2132, %v2729
      %v2731 = vrot.slane %v1829, %v2730
      %v2732 = vsel %vm2137, %v2731, %v2727
      %v2733 = vlaneseq
      %v2734 = vshrl.u32 %v2733, 7
      %v2735 = vsub.s32 %v2139, %v2734
      %v2736 = vrot.slane %v1831, %v2735
      %v2737 = vsel %vm2144, %v2736, %v2732
      %v2738 = vlaneseq
      %v2739 = vshrl.u32 %v2738, 7
      %v2740 = vsub.s32 %v2146, %v2739
      %v2741 = vrot.slane %v1833, %v2740
      %v2742 = vsel %vm2151, %v2741, %v2737
      %v2743 = vlaneseq
      %v2744 = vshrl.u32 %v2743, 7
      %v2745 = vsub.s32 %v2153, %v2744
      %v2746 = vrot.slane %v1835, %v2745
      %v2747 = vsel %vm2158, %v2746, %v2742
      %v2748 = vlaneseq
      %v2749 = vshrl.u32 %v2748, 7
      %v2750 = vsub.s32 %v2160, %v2749
      %v2751 = vrot.slane %v1837, %v2750
      %v2752 = vsel %vm2165, %v2751, %v2747
      %v2753 = vlaneseq
      %v2754 = vshrl.u32 %v2753, 7
      %v2755 = vsub.s32 %v2167, %v2754
      %v2756 = vrot.slane %v1839, %v2755
      %v2757 = vsel %vm2172, %v2756, %v2752
      %v2758 = vlaneseq
      %v2759 = vshrl.u32 %v2758, 7
      %v2760 = vsub.s32 %v2174, %v2759
      %v2761 = vrot.slane %v1841, %v2760
      %v2762 = vsel %vm2179, %v2761, %v2757
      %v2763 = vlaneseq
      %v2764 = vshrl.u32 %v2763, 7
      %v2765 = vsub.s32 %v2181, %v2764
      %v2766 = vrot.slane %v1843, %v2765
      %v2767 = vsel %vm2186, %v2766, %v2762
      %v2768 = vlaneseq
      %v2769 = vshrl.u32 %v2768, 7
      %v2770 = vsub.s32 %v2188, %v2769
      %v2771 = vrot.slane %v1845, %v2770
      %v2772 = vsel %vm2193, %v2771, %v2767
      %v2773 = vlaneseq
      %v2774 = vshrl.u32 %v2773, 7
      %v2775 = vsub.s32 %v2195, %v2774
      %v2776 = vrot.slane %v1847, %v2775
      %v2777 = vsel %vm2200, %v2776, %v2772
      %v2795 = vlaneseq
      %v2796 = vshrl.u32 %v2795, 7
      %v2797 = vsub.s32 %v2092, %v2796
      %v2798 = vrot.slane %v2044, %v2797
      %v2799 = vlaneseq
      %v2800 = vshrl.u32 %v2799, 7
      %v2801 = vsub.s32 %v2097, %v2800
      %v2802 = vrot.slane %v2046, %v2801
      %v2803 = vsel %vm2102, %v2802, %v2798
      %v2804 = vlaneseq
      %v2805 = vshrl.u32 %v2804, 7
      %v2806 = vsub.s32 %v2104, %v2805
      %v2807 = vrot.slane %v2048, %v2806
      %v2808 = vsel %vm2109, %v2807, %v2803
      %v2809 = vlaneseq
      %v2810 = vshrl.u32 %v2809, 7
      %v2811 = vsub.s32 %v2111, %v2810
      %v2812 = vrot.slane %v2050, %v2811
      %v2813 = vsel %vm2116, %v2812, %v2808
      %v2814 = vlaneseq
      %v2815 = vshrl.u32 %v2814, 7
      %v2816 = vsub.s32 %v2118, %v2815
      %v2817 = vrot.slane %v2052, %v2816
      %v2818 = vsel %vm2123, %v2817, %v2813
      %v2819 = vlaneseq
      %v2820 = vshrl.u32 %v2819, 7
      %v2821 = vsub.s32 %v2125, %v2820
      %v2822 = vrot.slane %v2054, %v2821
      %v2823 = vsel %vm2130, %v2822, %v2818
      %v2824 = vlaneseq
      %v2825 = vshrl.u32 %v2824, 7
      %v2826 = vsub.s32 %v2132, %v2825
      %v2827 = vrot.slane %v2056, %v2826
      %v2828 = vsel %vm2137, %v2827, %v2823
      %v2829 = vlaneseq
      %v2830 = vshrl.u32 %v2829, 7
      %v2831 = vsub.s32 %v2139, %v2830
      %v2832 = vrot.slane %v2058, %v2831
      %v2833 = vsel %vm2144, %v2832, %v2828
      %v2834 = vlaneseq
      %v2835 = vshrl.u32 %v2834, 7
      %v2836 = vsub.s32 %v2146, %v2835
      %v2837 = vrot.slane %v2060, %v2836
      %v2838 = vsel %vm2151, %v2837, %v2833
      %v2839 = vlaneseq
      %v2840 = vshrl.u32 %v2839, 7
      %v2841 = vsub.s32 %v2153, %v2840
      %v2842 = vrot.slane %v2062, %v2841
      %v2843 = vsel %vm2158, %v2842, %v2838
      %v2844 = vlaneseq
      %v2845 = vshrl.u32 %v2844, 7
      %v2846 = vsub.s32 %v2160, %v2845
      %v2847 = vrot.slane %v2064, %v2846
      %v2848 = vsel %vm2165, %v2847, %v2843
      %v2849 = vlaneseq
      %v2850 = vshrl.u32 %v2849, 7
      %v2851 = vsub.s32 %v2167, %v2850
      %v2852 = vrot.slane %v2066, %v2851
      %v2853 = vsel %vm2172, %v2852, %v2848
      %v2854 = vlaneseq
      %v2855 = vshrl.u32 %v2854, 7
      %v2856 = vsub.s32 %v2174, %v2855
      %v2857 = vrot.slane %v2068, %v2856
      %v2858 = vsel %vm2179, %v2857, %v2853
      %v2859 = vlaneseq
      %v2860 = vshrl.u32 %v2859, 7
      %v2861 = vsub.s32 %v2181, %v2860
      %v2862 = vrot.slane %v2070, %v2861
      %v2863 = vsel %vm2186, %v2862, %v2858
      %v2864 = vlaneseq
      %v2865 = vshrl.u32 %v2864, 7
      %v2866 = vsub.s32 %v2188, %v2865
      %v2867 = vrot.slane %v2072, %v2866
      %v2868 = vsel %vm2193, %v2867, %v2863
      %v2869 = vlaneseq
      %v2870 = vshrl.u32 %v2869, 7
      %v2871 = vsub.s32 %v2195, %v2870
      %v2872 = vrot.slane %v2074, %v2871
      %v2873 = vsel %vm2200, %v2872, %v2868
      %vm2875 = vcmask 1040384
      %v2876 = vsel %vm2875, %v2201, %v2297
      %vm2877 = vcmask 1041408
      %v2878 = vsel %vm2877, %v2876, %v2393
      %vm2879 = vcmask 1042432
      %v2880 = vsel %vm2879, %v2878, %v2489
      %v2881 = vsel %vm179, %v2880, %v2585
      %vm2882 = vcmask 1044480
      %v2883 = vsel %vm2882, %v2881, %v2681
      %vm2884 = vcmask 1045504
      %v2885 = vsel %vm2884, %v2883, %v2777
      %vm2886 = vcmask 1046528
      %v2887 = vsel %vm2886, %v2885, %v2873
      %v2888 = vmax.f32 %v136, %v2887
      %2889 = vst [vmem:[#allocation2] sm:$0xff] %v2888
    $region41: #{tpu_custom_call.1} parent=1 // pred_fallthru
      _
    // Predicated region
    $region42: #{tpu_custom_call.1} parent=1 // pred_check
      %p2890 = pneg %p31
    $region43: #{tpu_custom_call.1} parent=1 // pred_check_branch
      %2892 = sbr.rel (%p2890) target = $region45
    $region44: #{tpu_custom_call.1} parent=1 // pred_region
      %v2893 = vld [vmem:[#allocation2] sm:$0xff]
      %v2894 = vlaneseq
      %v2895 = vand.u32 %v2894, 127
      %s2896 = smul.u32 0, 128
      %v2897 = vstv %s2896
      %v2898 = vadd.s32 %v2897, %v2895
      %vm2899 = vcmp.lt.s32.totalorder %v2898, 8
      %v2900 = vld [vmem:[%s0] sm:$0xf]
      %v2901 = vld [vmem:[%s1] sm:$0xf]
      %v2902 = vld [vmem:[%s1 + $0x4] sm:$0xf]
      %v2903 = vld [vmem:[%s1 + $0x8] sm:$0xf]
      %v2904 = vld [vmem:[%s1 + $0xc] sm:$0xf]
      %v2905 = vld [vmem:[%s1 + $0x10] sm:$0xf]
      %v2906 = vld [vmem:[%s1 + $0x14] sm:$0xf]
      %v2907 = vld [vmem:[%s1 + $0x18] sm:$0xf]
      %v2908 = vld [vmem:[%s1 + $0x1c] sm:$0xf]
      %v2917 = vunpack.c.l.b16 %v2901
      %v2918 = vunpack.c.l.b16 %v2902
      %v2919 = vunpack.c.l.b16 %v2903
      %v2920 = vunpack.c.l.b16 %v2904
      %v2921 = vunpack.c.l.b16 %v2905
      %v2922 = vunpack.c.l.b16 %v2906
      %v2923 = vunpack.c.l.b16 %v2907
      %v2924 = vunpack.c.l.b16 %v2908
      %v2925 = vpack.c.b16 %v2918, %v2917
      %v2926 = vpack.c.b16 %v2920, %v2919
      %v2927 = vpack.c.b16 %v2922, %v2921
      %v2928 = vpack.c.b16 %v2924, %v2923
      %vm2929 = vcmask 64512
      %v2931 = vsel %vm2929, %v2925, 0
      %v2934 = vsel %vm2929, %v2926, 0
      %v2937 = vsel %vm2929, %v2927, 0
      %v2940 = vsel %vm2929, %v2928, 0
      %vm2942 = vcmask 1043456
      %v2944 = vsel %vm2942, %v2900, 0
      %2946 = vmatprep.subr.bf16.mxu0 0
      %2947 = vmatpush1.bf16.msra.mxu0 %v2944
      %2948 = vmatprep.subr.bf16.mxu0 0
      %2949 = vmatpush1.bf16.msra.mxu0 0
      %2950 = vmatprep.subr.bf16.mxu0 0
      %2951 = vmatpush1.bf16.msra.mxu0 0
      %2952 = vmatprep.subr.bf16.mxu0 0
      %2953 = vmatpush1.bf16.msra.mxu0 0
      %2954 = vmatprep.subr.bf16.mxu0 0
      %2955 = vmatpush1.bf16.msra.mxu0 0
      %2956 = vmatprep.subr.bf16.mxu0 0
      %2957 = vmatpush1.bf16.msra.mxu0 0
      %2958 = vmatprep.subr.bf16.mxu0 0
      %2959 = vmatpush1.bf16.msra.mxu0 0
      %2960 = vmatprep.subr.bf16.mxu0 0
      %2961 = vmatpush1.bf16.msra.mxu0 0
      %2962 = vmatprep.subr.bf16.mxu0 0
      %2963 = vmatpush1.bf16.msra.mxu0 0
      %2964 = vmatprep.subr.bf16.mxu0 0
      %2965 = vmatpush1.bf16.msra.mxu0 0
      %2966 = vmatprep.subr.bf16.mxu0 0
      %2967 = vmatpush1.bf16.msra.mxu0 0
      %2968 = vmatprep.subr.bf16.mxu0 0
      %2969 = vmatpush1.bf16.msra.mxu0 0
      %2970 = vmatprep.subr.bf16.mxu0 0
      %2971 = vmatpush1.bf16.msra.mxu0 0
      %2972 = vmatprep.subr.bf16.mxu0 0
      %2973 = vmatpush1.bf16.msra.mxu0 0
      %2974 = vmatprep.subr.bf16.mxu0 0
      %2975 = vmatpush1.bf16.msra.mxu0 0
      %2976 = vmatprep.subr.bf16.mxu0 0
      %2977 = vmatpush1.bf16.msra.mxu0 0
      %2978 = vmatprep.mubr.bf16.mxu0 0
      %2979 = vmatmul.mubr.bf16.gmra.mrb[0].mxu0 %v2931
      %v2980 = vpop.f32.mrb[0].mxu0
      %v2981 = vadd.f32 0.0, %v2980
      %v2982 = vpop.f32.mrb[0].mxu0
      %v2983 = vpop.f32.mrb[0].mxu0
      %v2984 = vadd.f32 0.0, %v2983
      %v2985 = vpop.f32.mrb[0].mxu0
      %2986 = vmatprep.mubr.bf16.mxu0 0
      %2987 = vmatmul.mubr.bf16.gmra.mrb[0].mxu0 %v2934
      %v2988 = vpop.f32.mrb[0].mxu0
      %v2989 = vadd.f32 0.0, %v2988
      %v2990 = vpop.f32.mrb[0].mxu0
      %v2991 = vpop.f32.mrb[0].mxu0
      %v2992 = vadd.f32 0.0, %v2991
      %v2993 = vpop.f32.mrb[0].mxu0
      %2994 = vmatprep.mubr.bf16.mxu0 0
      %2995 = vmatmul.mubr.bf16.gmra.mrb[0].mxu0 %v2937
      %v2996 = vpop.f32.mrb[0].mxu0
      %v2997 = vadd.f32 0.0, %v2996
      %v2998 = vpop.f32.mrb[0].mxu0
      %v2999 = vpop.f32.mrb[0].mxu0
      %v3000 = vadd.f32 0.0, %v2999
      %v3001 = vpop.f32.mrb[0].mxu0
      %3002 = vmatprep.mubr.bf16.mxu0 0
      %3003 = vmatmul.mubr.bf16.gmra.mrb[0].mxu0 %v2940
      %v3004 = vpop.f32.mrb[0].mxu0
      %v3005 = vadd.f32 0.0, %v3004
      %v3006 = vpop.f32.mrb[0].mxu0
      %v3007 = vpop.f32.mrb[0].mxu0
      %v3008 = vadd.f32 0.0, %v3007
      %v3009 = vpop.f32.mrb[0].mxu0
      %3010 = vdwg.mxu0
      %v3011 = vmax.f32 %v2981, 0.0
      %v3012 = vmax.f32 %v2984, 0.0
      %v3013 = vmax.f32 %v2989, 0.0
      %v3014 = vmax.f32 %v2992, 0.0
      %v3015 = vmax.f32 %v2997, 0.0
      %v3016 = vmax.f32 %v3000, 0.0
      %v3017 = vmax.f32 %v3005, 0.0
      %v3018 = vmax.f32 %v3008, 0.0
      %v3019 = vld [vmem:[%s2] sm:$0xf]
      %v3020 = vld [vmem:[%s2 + $0x4] sm:$0xf]
      %v3021 = vld [vmem:[%s2 + $0x8] sm:$0xf]
      %v3022 = vld [vmem:[%s2 + $0xc] sm:$0xf]
      %v3023 = vld [vmem:[%s2 + $0x10] sm:$0xf]
      %v3024 = vld [vmem:[%s2 + $0x14] sm:$0xf]
      %v3025 = vld [vmem:[%s2 + $0x18] sm:$0xf]
      %v3026 = vld [vmem:[%s2 + $0x1c] sm:$0xf]
      %v3027 = vld [vmem:[%s2 + $0x20] sm:$0xf]
      %v3028 = vld [vmem:[%s2 + $0x24] sm:$0xf]
      %v3029 = vld [vmem:[%s2 + $0x28] sm:$0xf]
      %v3030 = vld [vmem:[%s2 + $0x2c] sm:$0xf]
      %v3031 = vld [vmem:[%s2 + $0x30] sm:$0xf]
      %v3032 = vld [vmem:[%s2 + $0x34] sm:$0xf]
      %v3033 = vld [vmem:[%s2 + $0x38] sm:$0xf]
      %v3034 = vld [vmem:[%s2 + $0x3c] sm:$0xf]
      %v3035 = vpack.c.bf16 %v3012, %v3011
      %v3036 = vpack.c.bf16 %v3014, %v3013
      %v3037 = vpack.c.bf16 %v3016, %v3015
      %v3038 = vpack.c.bf16 %v3018, %v3017
      %v3055 = vunpack.c.l.b16 %v3019
      %v3056 = vunpack.c.l.b16 %v3020
      %v3057 = vunpack.c.l.b16 %v3021
      %v3058 = vunpack.c.l.b16 %v3022
      %v3059 = vunpack.c.l.b16 %v3023
      %v3060 = vunpack.c.l.b16 %v3024
      %v3061 = vunpack.c.l.b16 %v3025
      %v3062 = vunpack.c.l.b16 %v3026
      %v3063 = vunpack.c.l.b16 %v3027
      %v3064 = vunpack.c.l.b16 %v3028
      %v3065 = vunpack.c.l.b16 %v3029
      %v3066 = vunpack.c.l.b16 %v3030
      %v3067 = vunpack.c.l.b16 %v3031
      %v3068 = vunpack.c.l.b16 %v3032
      %v3069 = vunpack.c.l.b16 %v3033
      %v3070 = vunpack.c.l.b16 %v3034
      %v3071 = vpack.c.b16 %v3056, %v3055
      %v3072 = vpack.c.b16 %v3058, %v3057
      %v3073 = vpack.c.b16 %v3060, %v3059
      %v3074 = vpack.c.b16 %v3062, %v3061
      %v3075 = vpack.c.b16 %v3064, %v3063
      %v3076 = vpack.c.b16 %v3066, %v3065
      %v3077 = vpack.c.b16 %v3068, %v3067
      %v3078 = vpack.c.b16 %v3070, %v3069
      %vm3079 = vcmask 523264
      %v3081 = vsel %vm3079, %v3071, 0
      %v3084 = vsel %vm3079, %v3072, 0
      %v3087 = vsel %vm3079, %v3073, 0
      %v3090 = vsel %vm3079, %v3074, 0
      %v3093 = vsel %vm3079, %v3075, 0
      %v3096 = vsel %vm3079, %v3076, 0
      %v3099 = vsel %vm3079, %v3077, 0
      %v3102 = vsel %vm3079, %v3078, 0
      %3104 = vmatprep.subr.bf16.mxu0 0
      %3105 = vmatpush1.bf16.msra.mxu0 %v3035
      %3106 = vmatprep.subr.bf16.mxu0 0
      %3107 = vmatpush1.bf16.msra.mxu0 %v3036
      %3108 = vmatprep.subr.bf16.mxu0 0
      %3109 = vmatpush1.bf16.msra.mxu0 %v3037
      %3110 = vmatprep.subr.bf16.mxu0 0
      %3111 = vmatpush1.bf16.msra.mxu0 %v3038
      %3112 = vmatprep.subr.bf16.mxu0 0
      %3113 = vmatpush1.bf16.msra.mxu0 0
      %3114 = vmatprep.subr.bf16.mxu0 0
      %3115 = vmatpush1.bf16.msra.mxu0 0
      %3116 = vmatprep.subr.bf16.mxu0 0
      %3117 = vmatpush1.bf16.msra.mxu0 0
      %3118 = vmatprep.subr.bf16.mxu0 0
      %3119 = vmatpush1.bf16.msra.mxu0 0
      %3120 = vmatprep.subr.bf16.mxu0 0
      %3121 = vmatpush1.bf16.msra.mxu0 0
      %3122 = vmatprep.subr.bf16.mxu0 0
      %3123 = vmatpush1.bf16.msra.mxu0 0
      %3124 = vmatprep.subr.bf16.mxu0 0
      %3125 = vmatpush1.bf16.msra.mxu0 0
      %3126 = vmatprep.subr.bf16.mxu0 0
      %3127 = vmatpush1.bf16.msra.mxu0 0
      %3128 = vmatprep.subr.bf16.mxu0 0
      %3129 = vmatpush1.bf16.msra.mxu0 0
      %3130 = vmatprep.subr.bf16.mxu0 0
      %3131 = vmatpush1.bf16.msra.mxu0 0
      %3132 = vmatprep.subr.bf16.mxu0 0
      %3133 = vmatpush1.bf16.msra.mxu0 0
      %3134 = vmatprep.subr.bf16.mxu0 0
      %3135 = vmatpush1.bf16.msra.mxu0 0
      %3136 = vmatprep.mubr.bf16.mxu0 0
      %3137 = vmatmul.mubr.bf16.gmra.mrb[0].mxu0 %v3081
      %v3138 = vpop.f32.mrb[0].mxu0
      %v3139 = vadd.f32 %v55, %v3138
      %v3140 = vpop.f32.mrb[0].mxu0
      %v3141 = vpop.f32.mrb[0].mxu0
      %v3142 = vadd.f32 %v60, %v3141
      %v3143 = vpop.f32.mrb[0].mxu0
      %3144 = vmatprep.mubr.bf16.mxu0 0
      %3145 = vmatmul.mubr.bf16.gmra.mrb[0].mxu0 %v3084
      %v3146 = vpop.f32.mrb[0].mxu0
      %v3147 = vadd.f32 %v65, %v3146
      %v3148 = vpop.f32.mrb[0].mxu0
      %v3149 = vpop.f32.mrb[0].mxu0
      %v3150 = vadd.f32 %v70, %v3149
      %v3151 = vpop.f32.mrb[0].mxu0
      %3152 = vmatprep.mubr.bf16.mxu0 0
      %3153 = vmatmul.mubr.bf16.gmra.mrb[0].mxu0 %v3087
      %v3154 = vpop.f32.mrb[0].mxu0
      %v3155 = vadd.f32 %v75, %v3154
      %v3156 = vpop.f32.mrb[0].mxu0
      %v3157 = vpop.f32.mrb[0].mxu0
      %v3158 = vadd.f32 %v80, %v3157
      %v3159 = vpop.f32.mrb[0].mxu0
      %3160 = vmatprep.mubr.bf16.mxu0 0
      %3161 = vmatmul.mubr.bf16.gmra.mrb[0].mxu0 %v3090
      %v3162 = vpop.f32.mrb[0].mxu0
      %v3163 = vadd.f32 %v85, %v3162
      %v3164 = vpop.f32.mrb[0].mxu0
      %v3165 = vpop.f32.mrb[0].mxu0
      %v3166 = vadd.f32 %v90, %v3165
      %v3167 = vpop.f32.mrb[0].mxu0
      %3168 = vmatprep.mubr.bf16.mxu0 0
      %3169 = vmatmul.mubr.bf16.gmra.mrb[0].mxu0 %v3093
      %v3170 = vpop.f32.mrb[0].mxu0
      %v3171 = vadd.f32 %v95, %v3170
      %v3172 = vpop.f32.mrb[0].mxu0
      %v3173 = vpop.f32.mrb[0].mxu0
      %v3174 = vadd.f32 %v100, %v3173
      %v3175 = vpop.f32.mrb[0].mxu0
      %3176 = vmatprep.mubr.bf16.mxu0 0
      %3177 = vmatmul.mubr.bf16.gmra.mrb[0].mxu0 %v3096
      %v3178 = vpop.f32.mrb[0].mxu0
      %v3179 = vadd.f32 %v105, %v3178
      %v3180 = vpop.f32.mrb[0].mxu0
      %v3181 = vpop.f32.mrb[0].mxu0
      %v3182 = vadd.f32 %v110, %v3181
      %v3183 = vpop.f32.mrb[0].mxu0
      %3184 = vmatprep.mubr.bf16.mxu0 0
      %3185 = vmatmul.mubr.bf16.gmra.mrb[0].mxu0 %v3099
      %v3186 = vpop.f32.mrb[0].mxu0
      %v3187 = vadd.f32 %v115, %v3186
      %v3188 = vpop.f32.mrb[0].mxu0
      %v3189 = vpop.f32.mrb[0].mxu0
      %v3190 = vadd.f32 %v120, %v3189
      %v3191 = vpop.f32.mrb[0].mxu0
      %3192 = vmatprep.mubr.bf16.mxu0 0
      %3193 = vmatmul.mubr.bf16.gmra.mrb[0].mxu0 %v3102
      %v3194 = vpop.f32.mrb[0].mxu0
      %v3195 = vadd.f32 %v125, %v3194
      %v3196 = vpop.f32.mrb[0].mxu0
      %v3197 = vpop.f32.mrb[0].mxu0
      %v3198 = vadd.f32 %v130, %v3197
      %v3199 = vpop.f32.mrb[0].mxu0
      %3200 = vdwg.mxu0
      %v3201 = vmax.f32 %v3139, 0.0
      %v3202 = vmax.f32 %v3142, 0.0
      %v3203 = vmax.f32 %v3147, 0.0
      %v3204 = vmax.f32 %v3150, 0.0
      %v3205 = vmax.f32 %v3155, 0.0
      %v3206 = vmax.f32 %v3158, 0.0
      %v3207 = vmax.f32 %v3163, 0.0
      %v3208 = vmax.f32 %v3166, 0.0
      %v3209 = vmax.f32 %v3171, 0.0
      %v3210 = vmax.f32 %v3174, 0.0
      %v3211 = vmax.f32 %v3179, 0.0
      %v3212 = vmax.f32 %v3182, 0.0
      %v3213 = vmax.f32 %v3187, 0.0
      %v3214 = vmax.f32 %v3190, 0.0
      %v3215 = vmax.f32 %v3195, 0.0
      %v3216 = vmax.f32 %v3198, 0.0
      %v3217 = vsel %vm2899, %v3201, 0.0
      %v3218 = vsel %vm2899, %v3202, 0.0
      %v3219 = vsel %vm2899, %v3203, 0.0
      %v3220 = vsel %vm2899, %v3204, 0.0
      %v3221 = vsel %vm2899, %v3205, 0.0
      %v3222 = vsel %vm2899, %v3206, 0.0
      %v3223 = vsel %vm2899, %v3207, 0.0
      %v3224 = vsel %vm2899, %v3208, 0.0
      %v3225 = vsel %vm2899, %v3209, 0.0
      %v3226 = vsel %vm2899, %v3210, 0.0
      %v3227 = vsel %vm2899, %v3211, 0.0
      %v3228 = vsel %vm2899, %v3212, 0.0
      %v3229 = vsel %vm2899, %v3213, 0.0
      %v3230 = vsel %vm2899, %v3214, 0.0
      %v3231 = vsel %vm2899, %v3215, 0.0
      %v3232 = vsel %vm2899, %v3216, 0.0
      %3233 = vmax.xlane.f32.xlu0 %v3217
      %v3234 = vpop.xlane.xlu0 %3233
      %3235 = vmax.xlane.f32.xlu0 %v3218
      %v3236 = vpop.xlane.xlu0 %3235
      %3237 = vmax.xlane.f32.xlu0 %v3219
      %v3238 = vpop.xlane.xlu0 %3237
      %3239 = vmax.xlane.f32.xlu0 %v3220
      %v3240 = vpop.xlane.xlu0 %3239
      %3241 = vmax.xlane.f32.xlu0 %v3221
      %v3242 = vpop.xlane.xlu0 %3241
      %3243 = vmax.xlane.f32.xlu0 %v3222
      %v3244 = vpop.xlane.xlu0 %3243
      %3245 = vmax.xlane.f32.xlu0 %v3223
      %v3246 = vpop.xlane.xlu0 %3245
      %3247 = vmax.xlane.f32.xlu0 %v3224
      %v3248 = vpop.xlane.xlu0 %3247
      %3249 = vmax.xlane.f32.xlu0 %v3225
      %v3250 = vpop.xlane.xlu0 %3249
      %3251 = vmax.xlane.f32.xlu0 %v3226
      %v3252 = vpop.xlane.xlu0 %3251
      %3253 = vmax.xlane.f32.xlu0 %v3227
      %v3254 = vpop.xlane.xlu0 %3253
      %3255 = vmax.xlane.f32.xlu0 %v3228
      %v3256 = vpop.xlane.xlu0 %3255
      %3257 = vmax.xlane.f32.xlu0 %v3229
      %v3258 = vpop.xlane.xlu0 %3257
      %3259 = vmax.xlane.f32.xlu0 %v3230
      %v3260 = vpop.xlane.xlu0 %3259
      %3261 = vmax.xlane.f32.xlu0 %v3231
      %v3262 = vpop.xlane.xlu0 %3261
      %3263 = vmax.xlane.f32.xlu0 %v3232
      %v3264 = vpop.xlane.xlu0 %3263
      %s3265 = scalar_lea.vmem %s0, 4
      %v3266 = vld [vmem:[%s3265] sm:$0xf]
      %v3268 = vsel %vm2942, %v3266, 0
      %3270 = vmatprep.subr.bf16.mxu0 0
      %3271 = vmatpush1.bf16.msra.mxu0 %v3268
      %3272 = vmatprep.subr.bf16.mxu0 0
      %3273 = vmatpush1.bf16.msra.mxu0 0
      %3274 = vmatprep.subr.bf16.mxu0 0
      %3275 = vmatpush1.bf16.msra.mxu0 0
      %3276 = vmatprep.subr.bf16.mxu0 0
      %3277 = vmatpush1.bf16.msra.mxu0 0
      %3278 = vmatprep.subr.bf16.mxu0 0
      %3279 = vmatpush1.bf16.msra.mxu0 0
      %3280 = vmatprep.subr.bf16.mxu0 0
      %3281 = vmatpush1.bf16.msra.mxu0 0
      %3282 = vmatprep.subr.bf16.mxu0 0
      %3283 = vmatpush1.bf16.msra.mxu0 0
      %3284 = vmatprep.subr.bf16.mxu0 0
      %3285 = vmatpush1.bf16.msra.mxu0 0
      %3286 = vmatprep.subr.bf16.mxu0 0
      %3287 = vmatpush1.bf16.msra.mxu0 0
      %3288 = vmatprep.subr.bf16.mxu0 0
      %3289 = vmatpush1.bf16.msra.mxu0 0
      %3290 = vmatprep.subr.bf16.mxu0 0
      %3291 = vmatpush1.bf16.msra.mxu0 0
      %3292 = vmatprep.subr.bf16.mxu0 0
      %3293 = vmatpush1.bf16.msra.mxu0 0
      %3294 = vmatprep.subr.bf16.mxu0 0
      %3295 = vmatpush1.bf16.msra.mxu0 0
      %3296 = vmatprep.subr.bf16.mxu0 0
      %3297 = vmatpush1.bf16.msra.mxu0 0
      %3298 = vmatprep.subr.bf16.mxu0 0
      %3299 = vmatpush1.bf16.msra.mxu0 0
      %3300 = vmatprep.subr.bf16.mxu0 0
      %3301 = vmatpush1.bf16.msra.mxu0 0
      %3302 = vmatprep.mubr.bf16.mxu0 0
      %3303 = vmatmul.mubr.bf16.gmra.mrb[0].mxu0 %v2931
      %v3304 = vpop.f32.mrb[0].mxu0
      %v3305 = vadd.f32 0.0, %v3304
      %v3306 = vpop.f32.mrb[0].mxu0
      %v3307 = vpop.f32.mrb[0].mxu0
      %v3308 = vadd.f32 0.0, %v3307
      %v3309 = vpop.f32.mrb[0].mxu0
      %3310 = vmatprep.mubr.bf16.mxu0 0
      %3311 = vmatmul.mubr.bf16.gmra.mrb[0].mxu0 %v2934
      %v3312 = vpop.f32.mrb[0].mxu0
      %v3313 = vadd.f32 0.0, %v3312
      %v3314 = vpop.f32.mrb[0].mxu0
      %v3315 = vpop.f32.mrb[0].mxu0
      %v3316 = vadd.f32 0.0, %v3315
      %v3317 = vpop.f32.mrb[0].mxu0
      %3318 = vmatprep.mubr.bf16.mxu0 0
      %3319 = vmatmul.mubr.bf16.gmra.mrb[0].mxu0 %v2937
      %v3320 = vpop.f32.mrb[0].mxu0
      %v3321 = vadd.f32 0.0, %v3320
      %v3322 = vpop.f32.mrb[0].mxu0
      %v3323 = vpop.f32.mrb[0].mxu0
      %v3324 = vadd.f32 0.0, %v3323
      %v3325 = vpop.f32.mrb[0].mxu0
      %3326 = vmatprep.mubr.bf16.mxu0 0
      %3327 = vmatmul.mubr.bf16.gmra.mrb[0].mxu0 %v2940
      %v3328 = vpop.f32.mrb[0].mxu0
      %v3329 = vadd.f32 0.0, %v3328
      %v3330 = vpop.f32.mrb[0].mxu0
      %v3331 = vpop.f32.mrb[0].mxu0
      %v3332 = vadd.f32 0.0, %v3331
      %v3333 = vpop.f32.mrb[0].mxu0
      %3334 = vdwg.mxu0
      %v3335 = vmax.f32 %v3305, 0.0
      %v3336 = vmax.f32 %v3308, 0.0
      %v3337 = vmax.f32 %v3313, 0.0
      %v3338 = vmax.f32 %v3316, 0.0
      %v3339 = vmax.f32 %v3321, 0.0
      %v3340 = vmax.f32 %v3324, 0.0
      %v3341 = vmax.f32 %v3329, 0.0
      %v3342 = vmax.f32 %v3332, 0.0
      %v3343 = vpack.c.bf16 %v3336, %v3335
      %v3344 = vpack.c.bf16 %v3338, %v3337
      %v3345 = vpack.c.bf16 %v3340, %v3339
      %v3346 = vpack.c.bf16 %v3342, %v3341
      %3347 = vmatprep.subr.bf16.mxu0 0
      %3348 = vmatpush1.bf16.msra.mxu0 %v3343
      %3349 = vmatprep.subr.bf16.mxu0 0
      %3350 = vmatpush1.bf16.msra.mxu0 %v3344
      %3351 = vmatprep.subr.bf16.mxu0 0
      %3352 = vmatpush1.bf16.msra.mxu0 %v3345
      %3353 = vmatprep.subr.bf16.mxu0 0
      %3354 = vmatpush1.bf16.msra.mxu0 %v3346
      %3355 = vmatprep.subr.bf16.mxu0 0
      %3356 = vmatpush1.bf16.msra.mxu0 0
      %3357 = vmatprep.subr.bf16.mxu0 0
      %3358 = vmatpush1.bf16.msra.mxu0 0
      %3359 = vmatprep.subr.bf16.mxu0 0
      %3360 = vmatpush1.bf16.msra.mxu0 0
      %3361 = vmatprep.subr.bf16.mxu0 0
      %3362 = vmatpush1.bf16.msra.mxu0 0
      %3363 = vmatprep.subr.bf16.mxu0 0
      %3364 = vmatpush1.bf16.msra.mxu0 0
      %3365 = vmatprep.subr.bf16.mxu0 0
      %3366 = vmatpush1.bf16.msra.mxu0 0
      %3367 = vmatprep.subr.bf16.mxu0 0
      %3368 = vmatpush1.bf16.msra.mxu0 0
      %3369 = vmatprep.subr.bf16.mxu0 0
      %3370 = vmatpush1.bf16.msra.mxu0 0
      %3371 = vmatprep.subr.bf16.mxu0 0
      %3372 = vmatpush1.bf16.msra.mxu0 0
      %3373 = vmatprep.subr.bf16.mxu0 0
      %3374 = vmatpush1.bf16.msra.mxu0 0
      %3375 = vmatprep.subr.bf16.mxu0 0
      %3376 = vmatpush1.bf16.msra.mxu0 0
      %3377 = vmatprep.subr.bf16.mxu0 0
      %3378 = vmatpush1.bf16.msra.mxu0 0
      %3379 = vmatprep.mubr.bf16.mxu0 0
      %3380 = vmatmul.mubr.bf16.gmra.mrb[0].mxu0 %v3081
      %v3381 = vpop.f32.mrb[0].mxu0
      %v3382 = vadd.f32 %v55, %v3381
      %v3383 = vpop.f32.mrb[0].mxu0
      %v3384 = vpop.f32.mrb[0].mxu0
      %v3385 = vadd.f32 %v60, %v3384
      %v3386 = vpop.f32.mrb[0].mxu0
      %3387 = vmatprep.mubr.bf16.mxu0 0
      %3388 = vmatmul.mubr.bf16.gmra.mrb[0].mxu0 %v3084
      %v3389 = vpop.f32.mrb[0].mxu0
      %v3390 = vadd.f32 %v65, %v3389
      %v3391 = vpop.f32.mrb[0].mxu0
      %v3392 = vpop.f32.mrb[0].mxu0
      %v3393 = vadd.f32 %v70, %v3392
      %v3394 = vpop.f32.mrb[0].mxu0
      %3395 = vmatprep.mubr.bf16.mxu0 0
      %3396 = vmatmul.mubr.bf16.gmra.mrb[0].mxu0 %v3087
      %v3397 = vpop.f32.mrb[0].mxu0
      %v3398 = vadd.f32 %v75, %v3397
      %v3399 = vpop.f32.mrb[0].mxu0
      %v3400 = vpop.f32.mrb[0].mxu0
      %v3401 = vadd.f32 %v80, %v3400
      %v3402 = vpop.f32.mrb[0].mxu0
      %3403 = vmatprep.mubr.bf16.mxu0 0
      %3404 = vmatmul.mubr.bf16.gmra.mrb[0].mxu0 %v3090
      %v3405 = vpop.f32.mrb[0].mxu0
      %v3406 = vadd.f32 %v85, %v3405
      %v3407 = vpop.f32.mrb[0].mxu0
      %v3408 = vpop.f32.mrb[0].mxu0
      %v3409 = vadd.f32 %v90, %v3408
      %v3410 = vpop.f32.mrb[0].mxu0
      %3411 = vmatprep.mubr.bf16.mxu0 0
      %3412 = vmatmul.mubr.bf16.gmra.mrb[0].mxu0 %v3093
      %v3413 = vpop.f32.mrb[0].mxu0
      %v3414 = vadd.f32 %v95, %v3413
      %v3415 = vpop.f32.mrb[0].mxu0
      %v3416 = vpop.f32.mrb[0].mxu0
      %v3417 = vadd.f32 %v100, %v3416
      %v3418 = vpop.f32.mrb[0].mxu0
      %3419 = vmatprep.mubr.bf16.mxu0 0
      %3420 = vmatmul.mubr.bf16.gmra.mrb[0].mxu0 %v3096
      %v3421 = vpop.f32.mrb[0].mxu0
      %v3422 = vadd.f32 %v105, %v3421
      %v3423 = vpop.f32.mrb[0].mxu0
      %v3424 = vpop.f32.mrb[0].mxu0
      %v3425 = vadd.f32 %v110, %v3424
      %v3426 = vpop.f32.mrb[0].mxu0
      %3427 = vmatprep.mubr.bf16.mxu0 0
      %3428 = vmatmul.mubr.bf16.gmra.mrb[0].mxu0 %v3099
      %v3429 = vpop.f32.mrb[0].mxu0
      %v3430 = vadd.f32 %v115, %v3429
      %v3431 = vpop.f32.mrb[0].mxu0
      %v3432 = vpop.f32.mrb[0].mxu0
      %v3433 = vadd.f32 %v120, %v3432
      %v3434 = vpop.f32.mrb[0].mxu0
      %3435 = vmatprep.mubr.bf16.mxu0 0
      %3436 = vmatmul.mubr.bf16.gmra.mrb[0].mxu0 %v3102
      %v3437 = vpop.f32.mrb[0].mxu0
      %v3438 = vadd.f32 %v125, %v3437
      %v3439 = vpop.f32.mrb[0].mxu0
      %v3440 = vpop.f32.mrb[0].mxu0
      %v3441 = vadd.f32 %v130, %v3440
      %v3442 = vpop.f32.mrb[0].mxu0
      %3443 = vdwg.mxu0
      %v3444 = vmax.f32 %v3382, 0.0
      %v3445 = vmax.f32 %v3385, 0.0
      %v3446 = vmax.f32 %v3390, 0.0
      %v3447 = vmax.f32 %v3393, 0.0
      %v3448 = vmax.f32 %v3398, 0.0
      %v3449 = vmax.f32 %v3401, 0.0
      %v3450 = vmax.f32 %v3406, 0.0
      %v3451 = vmax.f32 %v3409, 0.0
      %v3452 = vmax.f32 %v3414, 0.0
      %v3453 = vmax.f32 %v3417, 0.0
      %v3454 = vmax.f32 %v3422, 0.0
      %v3455 = vmax.f32 %v3425, 0.0
      %v3456 = vmax.f32 %v3430, 0.0
      %v3457 = vmax.f32 %v3433, 0.0
      %v3458 = vmax.f32 %v3438, 0.0
      %v3459 = vmax.f32 %v3441, 0.0
      %v3460 = vsel %vm2899, %v3444, 0.0
      %v3461 = vsel %vm2899, %v3445, 0.0
      %v3462 = vsel %vm2899, %v3446, 0.0
      %v3463 = vsel %vm2899, %v3447, 0.0
      %v3464 = vsel %vm2899, %v3448, 0.0
      %v3465 = vsel %vm2899, %v3449, 0.0
      %v3466 = vsel %vm2899, %v3450, 0.0
      %v3467 = vsel %vm2899, %v3451, 0.0
      %v3468 = vsel %vm2899, %v3452, 0.0
      %v3469 = vsel %vm2899, %v3453, 0.0
      %v3470 = vsel %vm2899, %v3454, 0.0
      %v3471 = vsel %vm2899, %v3455, 0.0
      %v3472 = vsel %vm2899, %v3456, 0.0
      %v3473 = vsel %vm2899, %v3457, 0.0
      %v3474 = vsel %vm2899, %v3458, 0.0
      %v3475 = vsel %vm2899, %v3459, 0.0
      %3476 = vmax.xlane.f32.xlu0 %v3460
      %v3477 = vpop.xlane.xlu0 %3476
      %3478 = vmax.xlane.f32.xlu0 %v3461
      %v3479 = vpop.xlane.xlu0 %3478
      %3480 = vmax.xlane.f32.xlu0 %v3462
      %v3481 = vpop.xlane.xlu0 %3480
      %3482 = vmax.xlane.f32.xlu0 %v3463
      %v3483 = vpop.xlane.xlu0 %3482
      %3484 = vmax.xlane.f32.xlu0 %v3464
      %v3485 = vpop.xlane.xlu0 %3484
      %3486 = vmax.xlane.f32.xlu0 %v3465
      %v3487 = vpop.xlane.xlu0 %3486
      %3488 = vmax.xlane.f32.xlu0 %v3466
      %v3489 = vpop.xlane.xlu0 %3488
      %3490 = vmax.xlane.f32.xlu0 %v3467
      %v3491 = vpop.xlane.xlu0 %3490
      %3492 = vmax.xlane.f32.xlu0 %v3468
      %v3493 = vpop.xlane.xlu0 %3492
      %3494 = vmax.xlane.f32.xlu0 %v3469
      %v3495 = vpop.xlane.xlu0 %3494
      %3496 = vmax.xlane.f32.xlu0 %v3470
      %v3497 = vpop.xlane.xlu0 %3496
      %3498 = vmax.xlane.f32.xlu0 %v3471
      %v3499 = vpop.xlane.xlu0 %3498
      %3500 = vmax.xlane.f32.xlu0 %v3472
      %v3501 = vpop.xlane.xlu0 %3500
      %3502 = vmax.xlane.f32.xlu0 %v3473
      %v3503 = vpop.xlane.xlu0 %3502
      %3504 = vmax.xlane.f32.xlu0 %v3474
      %v3505 = vpop.xlane.xlu0 %3504
      %3506 = vmax.xlane.f32.xlu0 %v3475
      %v3507 = vpop.xlane.xlu0 %3506
      %s3508 = scalar_lea.vmem %s0, 8
      %v3509 = vld [vmem:[%s3508] sm:$0xf]
      %v3511 = vsel %vm2942, %v3509, 0
      %3513 = vmatprep.subr.bf16.mxu0 0
      %3514 = vmatpush1.bf16.msra.mxu0 %v3511
      %3515 = vmatprep.subr.bf16.mxu0 0
      %3516 = vmatpush1.bf16.msra.mxu0 0
      %3517 = vmatprep.subr.bf16.mxu0 0
      %3518 = vmatpush1.bf16.msra.mxu0 0
      %3519 = vmatprep.subr.bf16.mxu0 0
      %3520 = vmatpush1.bf16.msra.mxu0 0
      %3521 = vmatprep.subr.bf16.mxu0 0
      %3522 = vmatpush1.bf16.msra.mxu0 0
      %3523 = vmatprep.subr.bf16.mxu0 0
      %3524 = vmatpush1.bf16.msra.mxu0 0
      %3525 = vmatprep.subr.bf16.mxu0 0
      %3526 = vmatpush1.bf16.msra.mxu0 0
      %3527 = vmatprep.subr.bf16.mxu0 0
      %3528 = vmatpush1.bf16.msra.mxu0 0
      %3529 = vmatprep.subr.bf16.mxu0 0
      %3530 = vmatpush1.bf16.msra.mxu0 0
      %3531 = vmatprep.subr.bf16.mxu0 0
      %3532 = vmatpush1.bf16.msra.mxu0 0
      %3533 = vmatprep.subr.bf16.mxu0 0
      %3534 = vmatpush1.bf16.msra.mxu0 0
      %3535 = vmatprep.subr.bf16.mxu0 0
      %3536 = vmatpush1.bf16.msra.mxu0 0
      %3537 = vmatprep.subr.bf16.mxu0 0
      %3538 = vmatpush1.bf16.msra.mxu0 0
      %3539 = vmatprep.subr.bf16.mxu0 0
      %3540 = vmatpush1.bf16.msra.mxu0 0
      %3541 = vmatprep.subr.bf16.mxu0 0
      %3542 = vmatpush1.bf16.msra.mxu0 0
      %3543 = vmatprep.subr.bf16.mxu0 0
      %3544 = vmatpush1.bf16.msra.mxu0 0
      %3545 = vmatprep.mubr.bf16.mxu0 0
      %3546 = vmatmul.mubr.bf16.gmra.mrb[0].mxu0 %v2931
      %v3547 = vpop.f32.mrb[0].mxu0
      %v3548 = vadd.f32 0.0, %v3547
      %v3549 = vpop.f32.mrb[0].mxu0
      %v3550 = vpop.f32.mrb[0].mxu0
      %v3551 = vadd.f32 0.0, %v3550
      %v3552 = vpop.f32.mrb[0].mxu0
      %3553 = vmatprep.mubr.bf16.mxu0 0
      %3554 = vmatmul.mubr.bf16.gmra.mrb[0].mxu0 %v2934
      %v3555 = vpop.f32.mrb[0].mxu0
      %v3556 = vadd.f32 0.0, %v3555
      %v3557 = vpop.f32.mrb[0].mxu0
      %v3558 = vpop.f32.mrb[0].mxu0
      %v3559 = vadd.f32 0.0, %v3558
      %v3560 = vpop.f32.mrb[0].mxu0
      %3561 = vmatprep.mubr.bf16.mxu0 0
      %3562 = vmatmul.mubr.bf16.gmra.mrb[0].mxu0 %v2937
      %v3563 = vpop.f32.mrb[0].mxu0
      %v3564 = vadd.f32 0.0, %v3563
      %v3565 = vpop.f32.mrb[0].mxu0
      %v3566 = vpop.f32.mrb[0].mxu0
      %v3567 = vadd.f32 0.0, %v3566
      %v3568 = vpop.f32.mrb[0].mxu0
      %3569 = vmatprep.mubr.bf16.mxu0 0
      %3570 = vmatmul.mubr.bf16.gmra.mrb[0].mxu0 %v2940
      %v3571 = vpop.f32.mrb[0].mxu0
      %v3572 = vadd.f32 0.0, %v3571
      %v3573 = vpop.f32.mrb[0].mxu0
      %v3574 = vpop.f32.mrb[0].mxu0
      %v3575 = vadd.f32 0.0, %v3574
      %v3576 = vpop.f32.mrb[0].mxu0
      %3577 = vdwg.mxu0
      %v3578 = vmax.f32 %v3548, 0.0
      %v3579 = vmax.f32 %v3551, 0.0
      %v3580 = vmax.f32 %v3556, 0.0
      %v3581 = vmax.f32 %v3559, 0.0
      %v3582 = vmax.f32 %v3564, 0.0
      %v3583 = vmax.f32 %v3567, 0.0
      %v3584 = vmax.f32 %v3572, 0.0
      %v3585 = vmax.f32 %v3575, 0.0
      %v3586 = vpack.c.bf16 %v3579, %v3578
      %v3587 = vpack.c.bf16 %v3581, %v3580
      %v3588 = vpack.c.bf16 %v3583, %v3582
      %v3589 = vpack.c.bf16 %v3585, %v3584
      %3590 = vmatprep.subr.bf16.mxu0 0
      %3591 = vmatpush1.bf16.msra.mxu0 %v3586
      %3592 = vmatprep.subr.bf16.mxu0 0
      %3593 = vmatpush1.bf16.msra.mxu0 %v3587
      %3594 = vmatprep.subr.bf16.mxu0 0
      %3595 = vmatpush1.bf16.msra.mxu0 %v3588
      %3596 = vmatprep.subr.bf16.mxu0 0
      %3597 = vmatpush1.bf16.msra.mxu0 %v3589
      %3598 = vmatprep.subr.bf16.mxu0 0
      %3599 = vmatpush1.bf16.msra.mxu0 0
      %3600 = vmatprep.subr.bf16.mxu0 0
      %3601 = vmatpush1.bf16.msra.mxu0 0
      %3602 = vmatprep.subr.bf16.mxu0 0
      %3603 = vmatpush1.bf16.msra.mxu0 0
      %3604 = vmatprep.subr.bf16.mxu0 0
      %3605 = vmatpush1.bf16.msra.mxu0 0
      %3606 = vmatprep.subr.bf16.mxu0 0
      %3607 = vmatpush1.bf16.msra.mxu0 0
      %3608 = vmatprep.subr.bf16.mxu0 0
      %3609 = vmatpush1.bf16.msra.mxu0 0
      %3610 = vmatprep.subr.bf16.mxu0 0
      %3611 = vmatpush1.bf16.msra.mxu0 0
      %3612 = vmatprep.subr.bf16.mxu0 0
      %3613 = vmatpush1.bf16.msra.mxu0 0
      %3614 = vmatprep.subr.bf16.mxu0 0
      %3615 = vmatpush1.bf16.msra.mxu0 0
      %3616 = vmatprep.subr.bf16.mxu0 0
      %3617 = vmatpush1.bf16.msra.mxu0 0
      %3618 = vmatprep.subr.bf16.mxu0 0
      %3619 = vmatpush1.bf16.msra.mxu0 0
      %3620 = vmatprep.subr.bf16.mxu0 0
      %3621 = vmatpush1.bf16.msra.mxu0 0
      %3622 = vmatprep.mubr.bf16.mxu0 0
      %3623 = vmatmul.mubr.bf16.gmra.mrb[0].mxu0 %v3081
      %v3624 = vpop.f32.mrb[0].mxu0
      %v3625 = vadd.f32 %v55, %v3624
      %v3626 = vpop.f32.mrb[0].mxu0
      %v3627 = vpop.f32.mrb[0].mxu0
      %v3628 = vadd.f32 %v60, %v3627
      %v3629 = vpop.f32.mrb[0].mxu0
      %3630 = vmatprep.mubr.bf16.mxu0 0
      %3631 = vmatmul.mubr.bf16.gmra.mrb[0].mxu0 %v3084
      %v3632 = vpop.f32.mrb[0].mxu0
      %v3633 = vadd.f32 %v65, %v3632
      %v3634 = vpop.f32.mrb[0].mxu0
      %v3635 = vpop.f32.mrb[0].mxu0
      %v3636 = vadd.f32 %v70, %v3635
      %v3637 = vpop.f32.mrb[0].mxu0
      %3638 = vmatprep.mubr.bf16.mxu0 0
      %3639 = vmatmul.mubr.bf16.gmra.mrb[0].mxu0 %v3087
      %v3640 = vpop.f32.mrb[0].mxu0
      %v3641 = vadd.f32 %v75, %v3640
      %v3642 = vpop.f32.mrb[0].mxu0
      %v3643 = vpop.f32.mrb[0].mxu0
      %v3644 = vadd.f32 %v80, %v3643
      %v3645 = vpop.f32.mrb[0].mxu0
      %3646 = vmatprep.mubr.bf16.mxu0 0
      %3647 = vmatmul.mubr.bf16.gmra.mrb[0].mxu0 %v3090
      %v3648 = vpop.f32.mrb[0].mxu0
      %v3649 = vadd.f32 %v85, %v3648
      %v3650 = vpop.f32.mrb[0].mxu0
      %v3651 = vpop.f32.mrb[0].mxu0
      %v3652 = vadd.f32 %v90, %v3651
      %v3653 = vpop.f32.mrb[0].mxu0
      %3654 = vmatprep.mubr.bf16.mxu0 0
      %3655 = vmatmul.mubr.bf16.gmra.mrb[0].mxu0 %v3093
      %v3656 = vpop.f32.mrb[0].mxu0
      %v3657 = vadd.f32 %v95, %v3656
      %v3658 = vpop.f32.mrb[0].mxu0
      %v3659 = vpop.f32.mrb[0].mxu0
      %v3660 = vadd.f32 %v100, %v3659
      %v3661 = vpop.f32.mrb[0].mxu0
      %3662 = vmatprep.mubr.bf16.mxu0 0
      %3663 = vmatmul.mubr.bf16.gmra.mrb[0].mxu0 %v3096
      %v3664 = vpop.f32.mrb[0].mxu0
      %v3665 = vadd.f32 %v105, %v3664
      %v3666 = vpop.f32.mrb[0].mxu0
      %v3667 = vpop.f32.mrb[0].mxu0
      %v3668 = vadd.f32 %v110, %v3667
      %v3669 = vpop.f32.mrb[0].mxu0
      %3670 = vmatprep.mubr.bf16.mxu0 0
      %3671 = vmatmul.mubr.bf16.gmra.mrb[0].mxu0 %v3099
      %v3672 = vpop.f32.mrb[0].mxu0
      %v3673 = vadd.f32 %v115, %v3672
      %v3674 = vpop.f32.mrb[0].mxu0
      %v3675 = vpop.f32.mrb[0].mxu0
      %v3676 = vadd.f32 %v120, %v3675
      %v3677 = vpop.f32.mrb[0].mxu0
      %3678 = vmatprep.mubr.bf16.mxu0 0
      %3679 = vmatmul.mubr.bf16.gmra.mrb[0].mxu0 %v3102
      %v3680 = vpop.f32.mrb[0].mxu0
      %v3681 = vadd.f32 %v125, %v3680
      %v3682 = vpop.f32.mrb[0].mxu0
      %v3683 = vpop.f32.mrb[0].mxu0
      %v3684 = vadd.f32 %v130, %v3683
      %v3685 = vpop.f32.mrb[0].mxu0
      %3686 = vdwg.mxu0
      %v3687 = vmax.f32 %v3625, 0.0
      %v3688 = vmax.f32 %v3628, 0.0
      %v3689 = vmax.f32 %v3633, 0.0
      %v3690 = vmax.f32 %v3636, 0.0
      %v3691 = vmax.f32 %v3641, 0.0
      %v3692 = vmax.f32 %v3644, 0.0
      %v3693 = vmax.f32 %v3649, 0.0
      %v3694 = vmax.f32 %v3652, 0.0
      %v3695 = vmax.f32 %v3657, 0.0
      %v3696 = vmax.f32 %v3660, 0.0
      %v3697 = vmax.f32 %v3665, 0.0
      %v3698 = vmax.f32 %v3668, 0.0
      %v3699 = vmax.f32 %v3673, 0.0
      %v3700 = vmax.f32 %v3676, 0.0
      %v3701 = vmax.f32 %v3681, 0.0
      %v3702 = vmax.f32 %v3684, 0.0
      %v3703 = vsel %vm2899, %v3687, 0.0
      %v3704 = vsel %vm2899, %v3688, 0.0
      %v3705 = vsel %vm2899, %v3689, 0.0
      %v3706 = vsel %vm2899, %v3690, 0.0
      %v3707 = vsel %vm2899, %v3691, 0.0
      %v3708 = vsel %vm2899, %v3692, 0.0
      %v3709 = vsel %vm2899, %v3693, 0.0
      %v3710 = vsel %vm2899, %v3694, 0.0
      %v3711 = vsel %vm2899, %v3695, 0.0
      %v3712 = vsel %vm2899, %v3696, 0.0
      %v3713 = vsel %vm2899, %v3697, 0.0
      %v3714 = vsel %vm2899, %v3698, 0.0
      %v3715 = vsel %vm2899, %v3699, 0.0
      %v3716 = vsel %vm2899, %v3700, 0.0
      %v3717 = vsel %vm2899, %v3701, 0.0
      %v3718 = vsel %vm2899, %v3702, 0.0
      %3719 = vmax.xlane.f32.xlu0 %v3703
      %v3720 = vpop.xlane.xlu0 %3719
      %3721 = vmax.xlane.f32.xlu0 %v3704
      %v3722 = vpop.xlane.xlu0 %3721
      %3723 = vmax.xlane.f32.xlu0 %v3705
      %v3724 = vpop.xlane.xlu0 %3723
      %3725 = vmax.xlane.f32.xlu0 %v3706
      %v3726 = vpop.xlane.xlu0 %3725
      %3727 = vmax.xlane.f32.xlu0 %v3707
      %v3728 = vpop.xlane.xlu0 %3727
      %3729 = vmax.xlane.f32.xlu0 %v3708
      %v3730 = vpop.xlane.xlu0 %3729
      %3731 = vmax.xlane.f32.xlu0 %v3709
      %v3732 = vpop.xlane.xlu0 %3731
      %3733 = vmax.xlane.f32.xlu0 %v3710
      %v3734 = vpop.xlane.xlu0 %3733
      %3735 = vmax.xlane.f32.xlu0 %v3711
      %v3736 = vpop.xlane.xlu0 %3735
      %3737 = vmax.xlane.f32.xlu0 %v3712
      %v3738 = vpop.xlane.xlu0 %3737
      %3739 = vmax.xlane.f32.xlu0 %v3713
      %v3740 = vpop.xlane.xlu0 %3739
      %3741 = vmax.xlane.f32.xlu0 %v3714
      %v3742 = vpop.xlane.xlu0 %3741
      %3743 = vmax.xlane.f32.xlu0 %v3715
      %v3744 = vpop.xlane.xlu0 %3743
      %3745 = vmax.xlane.f32.xlu0 %v3716
      %v3746 = vpop.xlane.xlu0 %3745
      %3747 = vmax.xlane.f32.xlu0 %v3717
      %v3748 = vpop.xlane.xlu0 %3747
      %3749 = vmax.xlane.f32.xlu0 %v3718
      %v3750 = vpop.xlane.xlu0 %3749
      %s3751 = scalar_lea.vmem %s0, 12
      %v3752 = vld [vmem:[%s3751] sm:$0xf]
      %v3754 = vsel %vm2942, %v3752, 0
      %3756 = vmatprep.subr.bf16.mxu0 0
      %3757 = vmatpush1.bf16.msra.mxu0 %v3754
      %3758 = vmatprep.subr.bf16.mxu0 0
      %3759 = vmatpush1.bf16.msra.mxu0 0
      %3760 = vmatprep.subr.bf16.mxu0 0
      %3761 = vmatpush1.bf16.msra.mxu0 0
      %3762 = vmatprep.subr.bf16.mxu0 0
      %3763 = vmatpush1.bf16.msra.mxu0 0
      %3764 = vmatprep.subr.bf16.mxu0 0
      %3765 = vmatpush1.bf16.msra.mxu0 0
      %3766 = vmatprep.subr.bf16.mxu0 0
      %3767 = vmatpush1.bf16.msra.mxu0 0
      %3768 = vmatprep.subr.bf16.mxu0 0
      %3769 = vmatpush1.bf16.msra.mxu0 0
      %3770 = vmatprep.subr.bf16.mxu0 0
      %3771 = vmatpush1.bf16.msra.mxu0 0
      %3772 = vmatprep.subr.bf16.mxu0 0
      %3773 = vmatpush1.bf16.msra.mxu0 0
      %3774 = vmatprep.subr.bf16.mxu0 0
      %3775 = vmatpush1.bf16.msra.mxu0 0
      %3776 = vmatprep.subr.bf16.mxu0 0
      %3777 = vmatpush1.bf16.msra.mxu0 0
      %3778 = vmatprep.subr.bf16.mxu0 0
      %3779 = vmatpush1.bf16.msra.mxu0 0
      %3780 = vmatprep.subr.bf16.mxu0 0
      %3781 = vmatpush1.bf16.msra.mxu0 0
      %3782 = vmatprep.subr.bf16.mxu0 0
      %3783 = vmatpush1.bf16.msra.mxu0 0
      %3784 = vmatprep.subr.bf16.mxu0 0
      %3785 = vmatpush1.bf16.msra.mxu0 0
      %3786 = vmatprep.subr.bf16.mxu0 0
      %3787 = vmatpush1.bf16.msra.mxu0 0
      %3788 = vmatprep.mubr.bf16.mxu0 0
      %3789 = vmatmul.mubr.bf16.gmra.mrb[0].mxu0 %v2931
      %v3790 = vpop.f32.mrb[0].mxu0
      %v3791 = vadd.f32 0.0, %v3790
      %v3792 = vpop.f32.mrb[0].mxu0
      %v3793 = vpop.f32.mrb[0].mxu0
      %v3794 = vadd.f32 0.0, %v3793
      %v3795 = vpop.f32.mrb[0].mxu0
      %3796 = vmatprep.mubr.bf16.mxu0 0
      %3797 = vmatmul.mubr.bf16.gmra.mrb[0].mxu0 %v2934
      %v3798 = vpop.f32.mrb[0].mxu0
      %v3799 = vadd.f32 0.0, %v3798
      %v3800 = vpop.f32.mrb[0].mxu0
      %v3801 = vpop.f32.mrb[0].mxu0
      %v3802 = vadd.f32 0.0, %v3801
      %v3803 = vpop.f32.mrb[0].mxu0
      %3804 = vmatprep.mubr.bf16.mxu0 0
      %3805 = vmatmul.mubr.bf16.gmra.mrb[0].mxu0 %v2937
      %v3806 = vpop.f32.mrb[0].mxu0
      %v3807 = vadd.f32 0.0, %v3806
      %v3808 = vpop.f32.mrb[0].mxu0
      %v3809 = vpop.f32.mrb[0].mxu0
      %v3810 = vadd.f32 0.0, %v3809
      %v3811 = vpop.f32.mrb[0].mxu0
      %3812 = vmatprep.mubr.bf16.mxu0 0
      %3813 = vmatmul.mubr.bf16.gmra.mrb[0].mxu0 %v2940
      %v3814 = vpop.f32.mrb[0].mxu0
      %v3815 = vadd.f32 0.0, %v3814
      %v3816 = vpop.f32.mrb[0].mxu0
      %v3817 = vpop.f32.mrb[0].mxu0
      %v3818 = vadd.f32 0.0, %v3817
      %v3819 = vpop.f32.mrb[0].mxu0
      %3820 = vdwg.mxu0
      %v3821 = vmax.f32 %v3791, 0.0
      %v3822 = vmax.f32 %v3794, 0.0
      %v3823 = vmax.f32 %v3799, 0.0
      %v3824 = vmax.f32 %v3802, 0.0
      %v3825 = vmax.f32 %v3807, 0.0
      %v3826 = vmax.f32 %v3810, 0.0
      %v3827 = vmax.f32 %v3815, 0.0
      %v3828 = vmax.f32 %v3818, 0.0
      %v3829 = vpack.c.bf16 %v3822, %v3821
      %v3830 = vpack.c.bf16 %v3824, %v3823
      %v3831 = vpack.c.bf16 %v3826, %v3825
      %v3832 = vpack.c.bf16 %v3828, %v3827
      %3833 = vmatprep.subr.bf16.mxu0 0
      %3834 = vmatpush1.bf16.msra.mxu0 %v3829
      %3835 = vmatprep.subr.bf16.mxu0 0
      %3836 = vmatpush1.bf16.msra.mxu0 %v3830
      %3837 = vmatprep.subr.bf16.mxu0 0
      %3838 = vmatpush1.bf16.msra.mxu0 %v3831
      %3839 = vmatprep.subr.bf16.mxu0 0
      %3840 = vmatpush1.bf16.msra.mxu0 %v3832
      %3841 = vmatprep.subr.bf16.mxu0 0
      %3842 = vmatpush1.bf16.msra.mxu0 0
      %3843 = vmatprep.subr.bf16.mxu0 0
      %3844 = vmatpush1.bf16.msra.mxu0 0
      %3845 = vmatprep.subr.bf16.mxu0 0
      %3846 = vmatpush1.bf16.msra.mxu0 0
      %3847 = vmatprep.subr.bf16.mxu0 0
      %3848 = vmatpush1.bf16.msra.mxu0 0
      %3849 = vmatprep.subr.bf16.mxu0 0
      %3850 = vmatpush1.bf16.msra.mxu0 0
      %3851 = vmatprep.subr.bf16.mxu0 0
      %3852 = vmatpush1.bf16.msra.mxu0 0
      %3853 = vmatprep.subr.bf16.mxu0 0
      %3854 = vmatpush1.bf16.msra.mxu0 0
      %3855 = vmatprep.subr.bf16.mxu0 0
      %3856 = vmatpush1.bf16.msra.mxu0 0
      %3857 = vmatprep.subr.bf16.mxu0 0
      %3858 = vmatpush1.bf16.msra.mxu0 0
      %3859 = vmatprep.subr.bf16.mxu0 0
      %3860 = vmatpush1.bf16.msra.mxu0 0
      %3861 = vmatprep.subr.bf16.mxu0 0
      %3862 = vmatpush1.bf16.msra.mxu0 0
      %3863 = vmatprep.subr.bf16.mxu0 0
      %3864 = vmatpush1.bf16.msra.mxu0 0
      %3865 = vmatprep.mubr.bf16.mxu0 0
      %3866 = vmatmul.mubr.bf16.gmra.mrb[0].mxu0 %v3081
      %v3867 = vpop.f32.mrb[0].mxu0
      %v3868 = vadd.f32 %v55, %v3867
      %v3869 = vpop.f32.mrb[0].mxu0
      %v3870 = vpop.f32.mrb[0].mxu0
      %v3871 = vadd.f32 %v60, %v3870
      %v3872 = vpop.f32.mrb[0].mxu0
      %3873 = vmatprep.mubr.bf16.mxu0 0
      %3874 = vmatmul.mubr.bf16.gmra.mrb[0].mxu0 %v3084
      %v3875 = vpop.f32.mrb[0].mxu0
      %v3876 = vadd.f32 %v65, %v3875
      %v3877 = vpop.f32.mrb[0].mxu0
      %v3878 = vpop.f32.mrb[0].mxu0
      %v3879 = vadd.f32 %v70, %v3878
      %v3880 = vpop.f32.mrb[0].mxu0
      %3881 = vmatprep.mubr.bf16.mxu0 0
      %3882 = vmatmul.mubr.bf16.gmra.mrb[0].mxu0 %v3087
      %v3883 = vpop.f32.mrb[0].mxu0
      %v3884 = vadd.f32 %v75, %v3883
      %v3885 = vpop.f32.mrb[0].mxu0
      %v3886 = vpop.f32.mrb[0].mxu0
      %v3887 = vadd.f32 %v80, %v3886
      %v3888 = vpop.f32.mrb[0].mxu0
      %3889 = vmatprep.mubr.bf16.mxu0 0
      %3890 = vmatmul.mubr.bf16.gmra.mrb[0].mxu0 %v3090
      %v3891 = vpop.f32.mrb[0].mxu0
      %v3892 = vadd.f32 %v85, %v3891
      %v3893 = vpop.f32.mrb[0].mxu0
      %v3894 = vpop.f32.mrb[0].mxu0
      %v3895 = vadd.f32 %v90, %v3894
      %v3896 = vpop.f32.mrb[0].mxu0
      %3897 = vmatprep.mubr.bf16.mxu0 0
      %3898 = vmatmul.mubr.bf16.gmra.mrb[0].mxu0 %v3093
      %v3899 = vpop.f32.mrb[0].mxu0
      %v3900 = vadd.f32 %v95, %v3899
      %v3901 = vpop.f32.mrb[0].mxu0
      %v3902 = vpop.f32.mrb[0].mxu0
      %v3903 = vadd.f32 %v100, %v3902
      %v3904 = vpop.f32.mrb[0].mxu0
      %3905 = vmatprep.mubr.bf16.mxu0 0
      %3906 = vmatmul.mubr.bf16.gmra.mrb[0].mxu0 %v3096
      %v3907 = vpop.f32.mrb[0].mxu0
      %v3908 = vadd.f32 %v105, %v3907
      %v3909 = vpop.f32.mrb[0].mxu0
      %v3910 = vpop.f32.mrb[0].mxu0
      %v3911 = vadd.f32 %v110, %v3910
      %v3912 = vpop.f32.mrb[0].mxu0
      %3913 = vmatprep.mubr.bf16.mxu0 0
      %3914 = vmatmul.mubr.bf16.gmra.mrb[0].mxu0 %v3099
      %v3915 = vpop.f32.mrb[0].mxu0
      %v3916 = vadd.f32 %v115, %v3915
      %v3917 = vpop.f32.mrb[0].mxu0
      %v3918 = vpop.f32.mrb[0].mxu0
      %v3919 = vadd.f32 %v120, %v3918
      %v3920 = vpop.f32.mrb[0].mxu0
      %3921 = vmatprep.mubr.bf16.mxu0 0
      %3922 = vmatmul.mubr.bf16.gmra.mrb[0].mxu0 %v3102
      %v3923 = vpop.f32.mrb[0].mxu0
      %v3924 = vadd.f32 %v125, %v3923
      %v3925 = vpop.f32.mrb[0].mxu0
      %v3926 = vpop.f32.mrb[0].mxu0
      %v3927 = vadd.f32 %v130, %v3926
      %v3928 = vpop.f32.mrb[0].mxu0
      %3929 = vdwg.mxu0
      %v3930 = vmax.f32 %v3868, 0.0
      %v3931 = vmax.f32 %v3871, 0.0
      %v3932 = vmax.f32 %v3876, 0.0
      %v3933 = vmax.f32 %v3879, 0.0
      %v3934 = vmax.f32 %v3884, 0.0
      %v3935 = vmax.f32 %v3887, 0.0
      %v3936 = vmax.f32 %v3892, 0.0
      %v3937 = vmax.f32 %v3895, 0.0
      %v3938 = vmax.f32 %v3900, 0.0
      %v3939 = vmax.f32 %v3903, 0.0
      %v3940 = vmax.f32 %v3908, 0.0
      %v3941 = vmax.f32 %v3911, 0.0
      %v3942 = vmax.f32 %v3916, 0.0
      %v3943 = vmax.f32 %v3919, 0.0
      %v3944 = vmax.f32 %v3924, 0.0
      %v3945 = vmax.f32 %v3927, 0.0
      %v3946 = vsel %vm2899, %v3930, 0.0
      %v3947 = vsel %vm2899, %v3931, 0.0
      %v3948 = vsel %vm2899, %v3932, 0.0
      %v3949 = vsel %vm2899, %v3933, 0.0
      %v3950 = vsel %vm2899, %v3934, 0.0
      %v3951 = vsel %vm2899, %v3935, 0.0
      %v3952 = vsel %vm2899, %v3936, 0.0
      %v3953 = vsel %vm2899, %v3937, 0.0
      %v3954 = vsel %vm2899, %v3938, 0.0
      %v3955 = vsel %vm2899, %v3939, 0.0
      %v3956 = vsel %vm2899, %v3940, 0.0
      %v3957 = vsel %vm2899, %v3941, 0.0
      %v3958 = vsel %vm2899, %v3942, 0.0
      %v3959 = vsel %vm2899, %v3943, 0.0
      %v3960 = vsel %vm2899, %v3944, 0.0
      %v3961 = vsel %vm2899, %v3945, 0.0
      %3962 = vmax.xlane.f32.xlu0 %v3946
      %v3963 = vpop.xlane.xlu0 %3962
      %3964 = vmax.xlane.f32.xlu0 %v3947
      %v3965 = vpop.xlane.xlu0 %3964
      %3966 = vmax.xlane.f32.xlu0 %v3948
      %v3967 = vpop.xlane.xlu0 %3966
      %3968 = vmax.xlane.f32.xlu0 %v3949
      %v3969 = vpop.xlane.xlu0 %3968
      %3970 = vmax.xlane.f32.xlu0 %v3950
      %v3971 = vpop.xlane.xlu0 %3970
      %3972 = vmax.xlane.f32.xlu0 %v3951
      %v3973 = vpop.xlane.xlu0 %3972
      %3974 = vmax.xlane.f32.xlu0 %v3952
      %v3975 = vpop.xlane.xlu0 %3974
      %3976 = vmax.xlane.f32.xlu0 %v3953
      %v3977 = vpop.xlane.xlu0 %3976
      %3978 = vmax.xlane.f32.xlu0 %v3954
      %v3979 = vpop.xlane.xlu0 %3978
      %3980 = vmax.xlane.f32.xlu0 %v3955
      %v3981 = vpop.xlane.xlu0 %3980
      %3982 = vmax.xlane.f32.xlu0 %v3956
      %v3983 = vpop.xlane.xlu0 %3982
      %3984 = vmax.xlane.f32.xlu0 %v3957
      %v3985 = vpop.xlane.xlu0 %3984
      %3986 = vmax.xlane.f32.xlu0 %v3958
      %v3987 = vpop.xlane.xlu0 %3986
      %3988 = vmax.xlane.f32.xlu0 %v3959
      %v3989 = vpop.xlane.xlu0 %3988
      %3990 = vmax.xlane.f32.xlu0 %v3960
      %v3991 = vpop.xlane.xlu0 %3990
      %3992 = vmax.xlane.f32.xlu0 %v3961
      %v3993 = vpop.xlane.xlu0 %3992
      %s3994 = scalar_lea.vmem %s0, 16
      %v3995 = vld [vmem:[%s3994] sm:$0xf]
      %v3997 = vsel %vm2942, %v3995, 0
      %3999 = vmatprep.subr.bf16.mxu0 0
      %4000 = vmatpush1.bf16.msra.mxu0 %v3997
      %4001 = vmatprep.subr.bf16.mxu0 0
      %4002 = vmatpush1.bf16.msra.mxu0 0
      %4003 = vmatprep.subr.bf16.mxu0 0
      %4004 = vmatpush1.bf16.msra.mxu0 0
      %4005 = vmatprep.subr.bf16.mxu0 0
      %4006 = vmatpush1.bf16.msra.mxu0 0
      %4007 = vmatprep.subr.bf16.mxu0 0
      %4008 = vmatpush1.bf16.msra.mxu0 0
      %4009 = vmatprep.subr.bf16.mxu0 0
      %4010 = vmatpush1.bf16.msra.mxu0 0
      %4011 = vmatprep.subr.bf16.mxu0 0
      %4012 = vmatpush1.bf16.msra.mxu0 0
      %4013 = vmatprep.subr.bf16.mxu0 0
      %4014 = vmatpush1.bf16.msra.mxu0 0
      %4015 = vmatprep.subr.bf16.mxu0 0
      %4016 = vmatpush1.bf16.msra.mxu0 0
      %4017 = vmatprep.subr.bf16.mxu0 0
      %4018 = vmatpush1.bf16.msra.mxu0 0
      %4019 = vmatprep.subr.bf16.mxu0 0
      %4020 = vmatpush1.bf16.msra.mxu0 0
      %4021 = vmatprep.subr.bf16.mxu0 0
      %4022 = vmatpush1.bf16.msra.mxu0 0
      %4023 = vmatprep.subr.bf16.mxu0 0
      %4024 = vmatpush1.bf16.msra.mxu0 0
      %4025 = vmatprep.subr.bf16.mxu0 0
      %4026 = vmatpush1.bf16.msra.mxu0 0
      %4027 = vmatprep.subr.bf16.mxu0 0
      %4028 = vmatpush1.bf16.msra.mxu0 0
      %4029 = vmatprep.subr.bf16.mxu0 0
      %4030 = vmatpush1.bf16.msra.mxu0 0
      %4031 = vmatprep.mubr.bf16.mxu0 0
      %4032 = vmatmul.mubr.bf16.gmra.mrb[0].mxu0 %v2931
      %v4033 = vpop.f32.mrb[0].mxu0
      %v4034 = vadd.f32 0.0, %v4033
      %v4035 = vpop.f32.mrb[0].mxu0
      %v4036 = vpop.f32.mrb[0].mxu0
      %v4037 = vadd.f32 0.0, %v4036
      %v4038 = vpop.f32.mrb[0].mxu0
      %4039 = vmatprep.mubr.bf16.mxu0 0
      %4040 = vmatmul.mubr.bf16.gmra.mrb[0].mxu0 %v2934
      %v4041 = vpop.f32.mrb[0].mxu0
      %v4042 = vadd.f32 0.0, %v4041
      %v4043 = vpop.f32.mrb[0].mxu0
      %v4044 = vpop.f32.mrb[0].mxu0
      %v4045 = vadd.f32 0.0, %v4044
      %v4046 = vpop.f32.mrb[0].mxu0
      %4047 = vmatprep.mubr.bf16.mxu0 0
      %4048 = vmatmul.mubr.bf16.gmra.mrb[0].mxu0 %v2937
      %v4049 = vpop.f32.mrb[0].mxu0
      %v4050 = vadd.f32 0.0, %v4049
      %v4051 = vpop.f32.mrb[0].mxu0
      %v4052 = vpop.f32.mrb[0].mxu0
      %v4053 = vadd.f32 0.0, %v4052
      %v4054 = vpop.f32.mrb[0].mxu0
      %4055 = vmatprep.mubr.bf16.mxu0 0
      %4056 = vmatmul.mubr.bf16.gmra.mrb[0].mxu0 %v2940
      %v4057 = vpop.f32.mrb[0].mxu0
      %v4058 = vadd.f32 0.0, %v4057
      %v4059 = vpop.f32.mrb[0].mxu0
      %v4060 = vpop.f32.mrb[0].mxu0
      %v4061 = vadd.f32 0.0, %v4060
      %v4062 = vpop.f32.mrb[0].mxu0
      %4063 = vdwg.mxu0
      %v4064 = vmax.f32 %v4034, 0.0
      %v4065 = vmax.f32 %v4037, 0.0
      %v4066 = vmax.f32 %v4042, 0.0
      %v4067 = vmax.f32 %v4045, 0.0
      %v4068 = vmax.f32 %v4050, 0.0
      %v4069 = vmax.f32 %v4053, 0.0
      %v4070 = vmax.f32 %v4058, 0.0
      %v4071 = vmax.f32 %v4061, 0.0
      %v4072 = vpack.c.bf16 %v4065, %v4064
      %v4073 = vpack.c.bf16 %v4067, %v4066
      %v4074 = vpack.c.bf16 %v4069, %v4068
      %v4075 = vpack.c.bf16 %v4071, %v4070
      %4076 = vmatprep.subr.bf16.mxu0 0
      %4077 = vmatpush1.bf16.msra.mxu0 %v4072
      %4078 = vmatprep.subr.bf16.mxu0 0
      %4079 = vmatpush1.bf16.msra.mxu0 %v4073
      %4080 = vmatprep.subr.bf16.mxu0 0
      %4081 = vmatpush1.bf16.msra.mxu0 %v4074
      %4082 = vmatprep.subr.bf16.mxu0 0
      %4083 = vmatpush1.bf16.msra.mxu0 %v4075
      %4084 = vmatprep.subr.bf16.mxu0 0
      %4085 = vmatpush1.bf16.msra.mxu0 0
      %4086 = vmatprep.subr.bf16.mxu0 0
      %4087 = vmatpush1.bf16.msra.mxu0 0
      %4088 = vmatprep.subr.bf16.mxu0 0
      %4089 = vmatpush1.bf16.msra.mxu0 0
      %4090 = vmatprep.subr.bf16.mxu0 0
      %4091 = vmatpush1.bf16.msra.mxu0 0
      %4092 = vmatprep.subr.bf16.mxu0 0
      %4093 = vmatpush1.bf16.msra.mxu0 0
      %4094 = vmatprep.subr.bf16.mxu0 0
      %4095 = vmatpush1.bf16.msra.mxu0 0
      %4096 = vmatprep.subr.bf16.mxu0 0
      %4097 = vmatpush1.bf16.msra.mxu0 0
      %4098 = vmatprep.subr.bf16.mxu0 0
      %4099 = vmatpush1.bf16.msra.mxu0 0
      %4100 = vmatprep.subr.bf16.mxu0 0
      %4101 = vmatpush1.bf16.msra.mxu0 0
      %4102 = vmatprep.subr.bf16.mxu0 0
      %4103 = vmatpush1.bf16.msra.mxu0 0
      %4104 = vmatprep.subr.bf16.mxu0 0
      %4105 = vmatpush1.bf16.msra.mxu0 0
      %4106 = vmatprep.subr.bf16.mxu0 0
      %4107 = vmatpush1.bf16.msra.mxu0 0
      %4108 = vmatprep.mubr.bf16.mxu0 0
      %4109 = vmatmul.mubr.bf16.gmra.mrb[0].mxu0 %v3081
      %v4110 = vpop.f32.mrb[0].mxu0
      %v4111 = vadd.f32 %v55, %v4110
      %v4112 = vpop.f32.mrb[0].mxu0
      %v4113 = vpop.f32.mrb[0].mxu0
      %v4114 = vadd.f32 %v60, %v4113
      %v4115 = vpop.f32.mrb[0].mxu0
      %4116 = vmatprep.mubr.bf16.mxu0 0
      %4117 = vmatmul.mubr.bf16.gmra.mrb[0].mxu0 %v3084
      %v4118 = vpop.f32.mrb[0].mxu0
      %v4119 = vadd.f32 %v65, %v4118
      %v4120 = vpop.f32.mrb[0].mxu0
      %v4121 = vpop.f32.mrb[0].mxu0
      %v4122 = vadd.f32 %v70, %v4121
      %v4123 = vpop.f32.mrb[0].mxu0
      %4124 = vmatprep.mubr.bf16.mxu0 0
      %4125 = vmatmul.mubr.bf16.gmra.mrb[0].mxu0 %v3087
      %v4126 = vpop.f32.mrb[0].mxu0
      %v4127 = vadd.f32 %v75, %v4126
      %v4128 = vpop.f32.mrb[0].mxu0
      %v4129 = vpop.f32.mrb[0].mxu0
      %v4130 = vadd.f32 %v80, %v4129
      %v4131 = vpop.f32.mrb[0].mxu0
      %4132 = vmatprep.mubr.bf16.mxu0 0
      %4133 = vmatmul.mubr.bf16.gmra.mrb[0].mxu0 %v3090
      %v4134 = vpop.f32.mrb[0].mxu0
      %v4135 = vadd.f32 %v85, %v4134
      %v4136 = vpop.f32.mrb[0].mxu0
      %v4137 = vpop.f32.mrb[0].mxu0
      %v4138 = vadd.f32 %v90, %v4137
      %v4139 = vpop.f32.mrb[0].mxu0
      %4140 = vmatprep.mubr.bf16.mxu0 0
      %4141 = vmatmul.mubr.bf16.gmra.mrb[0].mxu0 %v3093
      %v4142 = vpop.f32.mrb[0].mxu0
      %v4143 = vadd.f32 %v95, %v4142
      %v4144 = vpop.f32.mrb[0].mxu0
      %v4145 = vpop.f32.mrb[0].mxu0
      %v4146 = vadd.f32 %v100, %v4145
      %v4147 = vpop.f32.mrb[0].mxu0
      %4148 = vmatprep.mubr.bf16.mxu0 0
      %4149 = vmatmul.mubr.bf16.gmra.mrb[0].mxu0 %v3096
      %v4150 = vpop.f32.mrb[0].mxu0
      %v4151 = vadd.f32 %v105, %v4150
      %v4152 = vpop.f32.mrb[0].mxu0
      %v4153 = vpop.f32.mrb[0].mxu0
      %v4154 = vadd.f32 %v110, %v4153
      %v4155 = vpop.f32.mrb[0].mxu0
      %4156 = vmatprep.mubr.bf16.mxu0 0
      %4157 = vmatmul.mubr.bf16.gmra.mrb[0].mxu0 %v3099
      %v4158 = vpop.f32.mrb[0].mxu0
      %v4159 = vadd.f32 %v115, %v4158
      %v4160 = vpop.f32.mrb[0].mxu0
      %v4161 = vpop.f32.mrb[0].mxu0
      %v4162 = vadd.f32 %v120, %v4161
      %v4163 = vpop.f32.mrb[0].mxu0
      %4164 = vmatprep.mubr.bf16.mxu0 0
      %4165 = vmatmul.mubr.bf16.gmra.mrb[0].mxu0 %v3102
      %v4166 = vpop.f32.mrb[0].mxu0
      %v4167 = vadd.f32 %v125, %v4166
      %v4168 = vpop.f32.mrb[0].mxu0
      %v4169 = vpop.f32.mrb[0].mxu0
      %v4170 = vadd.f32 %v130, %v4169
      %v4171 = vpop.f32.mrb[0].mxu0
      %4172 = vdwg.mxu0
      %v4173 = vmax.f32 %v4111, 0.0
      %v4174 = vmax.f32 %v4114, 0.0
      %v4175 = vmax.f32 %v4119, 0.0
      %v4176 = vmax.f32 %v4122, 0.0
      %v4177 = vmax.f32 %v4127, 0.0
      %v4178 = vmax.f32 %v4130, 0.0
      %v4179 = vmax.f32 %v4135, 0.0
      %v4180 = vmax.f32 %v4138, 0.0
      %v4181 = vmax.f32 %v4143, 0.0
      %v4182 = vmax.f32 %v4146, 0.0
      %v4183 = vmax.f32 %v4151, 0.0
      %v4184 = vmax.f32 %v4154, 0.0
      %v4185 = vmax.f32 %v4159, 0.0
      %v4186 = vmax.f32 %v4162, 0.0
      %v4187 = vmax.f32 %v4167, 0.0
      %v4188 = vmax.f32 %v4170, 0.0
      %v4189 = vsel %vm2899, %v4173, 0.0
      %v4190 = vsel %vm2899, %v4174, 0.0
      %v4191 = vsel %vm2899, %v4175, 0.0
      %v4192 = vsel %vm2899, %v4176, 0.0
      %v4193 = vsel %vm2899, %v4177, 0.0
      %v4194 = vsel %vm2899, %v4178, 0.0
      %v4195 = vsel %vm2899, %v4179, 0.0
      %v4196 = vsel %vm2899, %v4180, 0.0
      %v4197 = vsel %vm2899, %v4181, 0.0
      %v4198 = vsel %vm2899, %v4182, 0.0
      %v4199 = vsel %vm2899, %v4183, 0.0
      %v4200 = vsel %vm2899, %v4184, 0.0
      %v4201 = vsel %vm2899, %v4185, 0.0
      %v4202 = vsel %vm2899, %v4186, 0.0
      %v4203 = vsel %vm2899, %v4187, 0.0
      %v4204 = vsel %vm2899, %v4188, 0.0
      %4205 = vmax.xlane.f32.xlu0 %v4189
      %v4206 = vpop.xlane.xlu0 %4205
      %4207 = vmax.xlane.f32.xlu0 %v4190
      %v4208 = vpop.xlane.xlu0 %4207
      %4209 = vmax.xlane.f32.xlu0 %v4191
      %v4210 = vpop.xlane.xlu0 %4209
      %4211 = vmax.xlane.f32.xlu0 %v4192
      %v4212 = vpop.xlane.xlu0 %4211
      %4213 = vmax.xlane.f32.xlu0 %v4193
      %v4214 = vpop.xlane.xlu0 %4213
      %4215 = vmax.xlane.f32.xlu0 %v4194
      %v4216 = vpop.xlane.xlu0 %4215
      %4217 = vmax.xlane.f32.xlu0 %v4195
      %v4218 = vpop.xlane.xlu0 %4217
      %4219 = vmax.xlane.f32.xlu0 %v4196
      %v4220 = vpop.xlane.xlu0 %4219
      %4221 = vmax.xlane.f32.xlu0 %v4197
      %v4222 = vpop.xlane.xlu0 %4221
      %4223 = vmax.xlane.f32.xlu0 %v4198
      %v4224 = vpop.xlane.xlu0 %4223
      %4225 = vmax.xlane.f32.xlu0 %v4199
      %v4226 = vpop.xlane.xlu0 %4225
      %4227 = vmax.xlane.f32.xlu0 %v4200
      %v4228 = vpop.xlane.xlu0 %4227
      %4229 = vmax.xlane.f32.xlu0 %v4201
      %v4230 = vpop.xlane.xlu0 %4229
      %4231 = vmax.xlane.f32.xlu0 %v4202
      %v4232 = vpop.xlane.xlu0 %4231
      %4233 = vmax.xlane.f32.xlu0 %v4203
      %v4234 = vpop.xlane.xlu0 %4233
      %4235 = vmax.xlane.f32.xlu0 %v4204
      %v4236 = vpop.xlane.xlu0 %4235
      %s4237 = scalar_lea.vmem %s0, 20
      %v4238 = vld [vmem:[%s4237] sm:$0xf]
      %v4240 = vsel %vm2942, %v4238, 0
      %4242 = vmatprep.subr.bf16.mxu0 0
      %4243 = vmatpush1.bf16.msra.mxu0 %v4240
      %4244 = vmatprep.subr.bf16.mxu0 0
      %4245 = vmatpush1.bf16.msra.mxu0 0
      %4246 = vmatprep.subr.bf16.mxu0 0
      %4247 = vmatpush1.bf16.msra.mxu0 0
      %4248 = vmatprep.subr.bf16.mxu0 0
      %4249 = vmatpush1.bf16.msra.mxu0 0
      %4250 = vmatprep.subr.bf16.mxu0 0
      %4251 = vmatpush1.bf16.msra.mxu0 0
      %4252 = vmatprep.subr.bf16.mxu0 0
      %4253 = vmatpush1.bf16.msra.mxu0 0
      %4254 = vmatprep.subr.bf16.mxu0 0
      %4255 = vmatpush1.bf16.msra.mxu0 0
      %4256 = vmatprep.subr.bf16.mxu0 0
      %4257 = vmatpush1.bf16.msra.mxu0 0
      %4258 = vmatprep.subr.bf16.mxu0 0
      %4259 = vmatpush1.bf16.msra.mxu0 0
      %4260 = vmatprep.subr.bf16.mxu0 0
      %4261 = vmatpush1.bf16.msra.mxu0 0
      %4262 = vmatprep.subr.bf16.mxu0 0
      %4263 = vmatpush1.bf16.msra.mxu0 0
      %4264 = vmatprep.subr.bf16.mxu0 0
      %4265 = vmatpush1.bf16.msra.mxu0 0
      %4266 = vmatprep.subr.bf16.mxu0 0
      %4267 = vmatpush1.bf16.msra.mxu0 0
      %4268 = vmatprep.subr.bf16.mxu0 0
      %4269 = vmatpush1.bf16.msra.mxu0 0
      %4270 = vmatprep.subr.bf16.mxu0 0
      %4271 = vmatpush1.bf16.msra.mxu0 0
      %4272 = vmatprep.subr.bf16.mxu0 0
      %4273 = vmatpush1.bf16.msra.mxu0 0
      %4274 = vmatprep.mubr.bf16.mxu0 0
      %4275 = vmatmul.mubr.bf16.gmra.mrb[0].mxu0 %v2931
      %v4276 = vpop.f32.mrb[0].mxu0
      %v4277 = vadd.f32 0.0, %v4276
      %v4278 = vpop.f32.mrb[0].mxu0
      %v4279 = vpop.f32.mrb[0].mxu0
      %v4280 = vadd.f32 0.0, %v4279
      %v4281 = vpop.f32.mrb[0].mxu0
      %4282 = vmatprep.mubr.bf16.mxu0 0
      %4283 = vmatmul.mubr.bf16.gmra.mrb[0].mxu0 %v2934
      %v4284 = vpop.f32.mrb[0].mxu0
      %v4285 = vadd.f32 0.0, %v4284
      %v4286 = vpop.f32.mrb[0].mxu0
      %v4287 = vpop.f32.mrb[0].mxu0
      %v4288 = vadd.f32 0.0, %v4287
      %v4289 = vpop.f32.mrb[0].mxu0
      %4290 = vmatprep.mubr.bf16.mxu0 0
      %4291 = vmatmul.mubr.bf16.gmra.mrb[0].mxu0 %v2937
      %v4292 = vpop.f32.mrb[0].mxu0
      %v4293 = vadd.f32 0.0, %v4292
      %v4294 = vpop.f32.mrb[0].mxu0
      %v4295 = vpop.f32.mrb[0].mxu0
      %v4296 = vadd.f32 0.0, %v4295
      %v4297 = vpop.f32.mrb[0].mxu0
      %4298 = vmatprep.mubr.bf16.mxu0 0
      %4299 = vmatmul.mubr.bf16.gmra.mrb[0].mxu0 %v2940
      %v4300 = vpop.f32.mrb[0].mxu0
      %v4301 = vadd.f32 0.0, %v4300
      %v4302 = vpop.f32.mrb[0].mxu0
      %v4303 = vpop.f32.mrb[0].mxu0
      %v4304 = vadd.f32 0.0, %v4303
      %v4305 = vpop.f32.mrb[0].mxu0
      %4306 = vdwg.mxu0
      %v4307 = vmax.f32 %v4277, 0.0
      %v4308 = vmax.f32 %v4280, 0.0
      %v4309 = vmax.f32 %v4285, 0.0
      %v4310 = vmax.f32 %v4288, 0.0
      %v4311 = vmax.f32 %v4293, 0.0
      %v4312 = vmax.f32 %v4296, 0.0
      %v4313 = vmax.f32 %v4301, 0.0
      %v4314 = vmax.f32 %v4304, 0.0
      %v4315 = vpack.c.bf16 %v4308, %v4307
      %v4316 = vpack.c.bf16 %v4310, %v4309
      %v4317 = vpack.c.bf16 %v4312, %v4311
      %v4318 = vpack.c.bf16 %v4314, %v4313
      %4319 = vmatprep.subr.bf16.mxu0 0
      %4320 = vmatpush1.bf16.msra.mxu0 %v4315
      %4321 = vmatprep.subr.bf16.mxu0 0
      %4322 = vmatpush1.bf16.msra.mxu0 %v4316
      %4323 = vmatprep.subr.bf16.mxu0 0
      %4324 = vmatpush1.bf16.msra.mxu0 %v4317
      %4325 = vmatprep.subr.bf16.mxu0 0
      %4326 = vmatpush1.bf16.msra.mxu0 %v4318
      %4327 = vmatprep.subr.bf16.mxu0 0
      %4328 = vmatpush1.bf16.msra.mxu0 0
      %4329 = vmatprep.subr.bf16.mxu0 0
      %4330 = vmatpush1.bf16.msra.mxu0 0
      %4331 = vmatprep.subr.bf16.mxu0 0
      %4332 = vmatpush1.bf16.msra.mxu0 0
      %4333 = vmatprep.subr.bf16.mxu0 0
      %4334 = vmatpush1.bf16.msra.mxu0 0
      %4335 = vmatprep.subr.bf16.mxu0 0
      %4336 = vmatpush1.bf16.msra.mxu0 0
      %4337 = vmatprep.subr.bf16.mxu0 0
      %4338 = vmatpush1.bf16.msra.mxu0 0
      %4339 = vmatprep.subr.bf16.mxu0 0
      %4340 = vmatpush1.bf16.msra.mxu0 0
      %4341 = vmatprep.subr.bf16.mxu0 0
      %4342 = vmatpush1.bf16.msra.mxu0 0
      %4343 = vmatprep.subr.bf16.mxu0 0
      %4344 = vmatpush1.bf16.msra.mxu0 0
      %4345 = vmatprep.subr.bf16.mxu0 0
      %4346 = vmatpush1.bf16.msra.mxu0 0
      %4347 = vmatprep.subr.bf16.mxu0 0
      %4348 = vmatpush1.bf16.msra.mxu0 0
      %4349 = vmatprep.subr.bf16.mxu0 0
      %4350 = vmatpush1.bf16.msra.mxu0 0
      %4351 = vmatprep.mubr.bf16.mxu0 0
      %4352 = vmatmul.mubr.bf16.gmra.mrb[0].mxu0 %v3081
      %v4353 = vpop.f32.mrb[0].mxu0
      %v4354 = vadd.f32 %v55, %v4353
      %v4355 = vpop.f32.mrb[0].mxu0
      %v4356 = vpop.f32.mrb[0].mxu0
      %v4357 = vadd.f32 %v60, %v4356
      %v4358 = vpop.f32.mrb[0].mxu0
      %4359 = vmatprep.mubr.bf16.mxu0 0
      %4360 = vmatmul.mubr.bf16.gmra.mrb[0].mxu0 %v3084
      %v4361 = vpop.f32.mrb[0].mxu0
      %v4362 = vadd.f32 %v65, %v4361
      %v4363 = vpop.f32.mrb[0].mxu0
      %v4364 = vpop.f32.mrb[0].mxu0
      %v4365 = vadd.f32 %v70, %v4364
      %v4366 = vpop.f32.mrb[0].mxu0
      %4367 = vmatprep.mubr.bf16.mxu0 0
      %4368 = vmatmul.mubr.bf16.gmra.mrb[0].mxu0 %v3087
      %v4369 = vpop.f32.mrb[0].mxu0
      %v4370 = vadd.f32 %v75, %v4369
      %v4371 = vpop.f32.mrb[0].mxu0
      %v4372 = vpop.f32.mrb[0].mxu0
      %v4373 = vadd.f32 %v80, %v4372
      %v4374 = vpop.f32.mrb[0].mxu0
      %4375 = vmatprep.mubr.bf16.mxu0 0
      %4376 = vmatmul.mubr.bf16.gmra.mrb[0].mxu0 %v3090
      %v4377 = vpop.f32.mrb[0].mxu0
      %v4378 = vadd.f32 %v85, %v4377
      %v4379 = vpop.f32.mrb[0].mxu0
      %v4380 = vpop.f32.mrb[0].mxu0
      %v4381 = vadd.f32 %v90, %v4380
      %v4382 = vpop.f32.mrb[0].mxu0
      %4383 = vmatprep.mubr.bf16.mxu0 0
      %4384 = vmatmul.mubr.bf16.gmra.mrb[0].mxu0 %v3093
      %v4385 = vpop.f32.mrb[0].mxu0
      %v4386 = vadd.f32 %v95, %v4385
      %v4387 = vpop.f32.mrb[0].mxu0
      %v4388 = vpop.f32.mrb[0].mxu0
      %v4389 = vadd.f32 %v100, %v4388
      %v4390 = vpop.f32.mrb[0].mxu0
      %4391 = vmatprep.mubr.bf16.mxu0 0
      %4392 = vmatmul.mubr.bf16.gmra.mrb[0].mxu0 %v3096
      %v4393 = vpop.f32.mrb[0].mxu0
      %v4394 = vadd.f32 %v105, %v4393
      %v4395 = vpop.f32.mrb[0].mxu0
      %v4396 = vpop.f32.mrb[0].mxu0
      %v4397 = vadd.f32 %v110, %v4396
      %v4398 = vpop.f32.mrb[0].mxu0
      %4399 = vmatprep.mubr.bf16.mxu0 0
      %4400 = vmatmul.mubr.bf16.gmra.mrb[0].mxu0 %v3099
      %v4401 = vpop.f32.mrb[0].mxu0
      %v4402 = vadd.f32 %v115, %v4401
      %v4403 = vpop.f32.mrb[0].mxu0
      %v4404 = vpop.f32.mrb[0].mxu0
      %v4405 = vadd.f32 %v120, %v4404
      %v4406 = vpop.f32.mrb[0].mxu0
      %4407 = vmatprep.mubr.bf16.mxu0 0
      %4408 = vmatmul.mubr.bf16.gmra.mrb[0].mxu0 %v3102
      %v4409 = vpop.f32.mrb[0].mxu0
      %v4410 = vadd.f32 %v125, %v4409
      %v4411 = vpop.f32.mrb[0].mxu0
      %v4412 = vpop.f32.mrb[0].mxu0
      %v4413 = vadd.f32 %v130, %v4412
      %v4414 = vpop.f32.mrb[0].mxu0
      %4415 = vdwg.mxu0
      %v4416 = vmax.f32 %v4354, 0.0
      %v4417 = vmax.f32 %v4357, 0.0
      %v4418 = vmax.f32 %v4362, 0.0
      %v4419 = vmax.f32 %v4365, 0.0
      %v4420 = vmax.f32 %v4370, 0.0
      %v4421 = vmax.f32 %v4373, 0.0
      %v4422 = vmax.f32 %v4378, 0.0
      %v4423 = vmax.f32 %v4381, 0.0
      %v4424 = vmax.f32 %v4386, 0.0
      %v4425 = vmax.f32 %v4389, 0.0
      %v4426 = vmax.f32 %v4394, 0.0
      %v4427 = vmax.f32 %v4397, 0.0
      %v4428 = vmax.f32 %v4402, 0.0
      %v4429 = vmax.f32 %v4405, 0.0
      %v4430 = vmax.f32 %v4410, 0.0
      %v4431 = vmax.f32 %v4413, 0.0
      %v4432 = vsel %vm2899, %v4416, 0.0
      %v4433 = vsel %vm2899, %v4417, 0.0
      %v4434 = vsel %vm2899, %v4418, 0.0
      %v4435 = vsel %vm2899, %v4419, 0.0
      %v4436 = vsel %vm2899, %v4420, 0.0
      %v4437 = vsel %vm2899, %v4421, 0.0
      %v4438 = vsel %vm2899, %v4422, 0.0
      %v4439 = vsel %vm2899, %v4423, 0.0
      %v4440 = vsel %vm2899, %v4424, 0.0
      %v4441 = vsel %vm2899, %v4425, 0.0
      %v4442 = vsel %vm2899, %v4426, 0.0
      %v4443 = vsel %vm2899, %v4427, 0.0
      %v4444 = vsel %vm2899, %v4428, 0.0
      %v4445 = vsel %vm2899, %v4429, 0.0
      %v4446 = vsel %vm2899, %v4430, 0.0
      %v4447 = vsel %vm2899, %v4431, 0.0
      %4448 = vmax.xlane.f32.xlu0 %v4432
      %v4449 = vpop.xlane.xlu0 %4448
      %4450 = vmax.xlane.f32.xlu0 %v4433
      %v4451 = vpop.xlane.xlu0 %4450
      %4452 = vmax.xlane.f32.xlu0 %v4434
      %v4453 = vpop.xlane.xlu0 %4452
      %4454 = vmax.xlane.f32.xlu0 %v4435
      %v4455 = vpop.xlane.xlu0 %4454
      %4456 = vmax.xlane.f32.xlu0 %v4436
      %v4457 = vpop.xlane.xlu0 %4456
      %4458 = vmax.xlane.f32.xlu0 %v4437
      %v4459 = vpop.xlane.xlu0 %4458
      %4460 = vmax.xlane.f32.xlu0 %v4438
      %v4461 = vpop.xlane.xlu0 %4460
      %4462 = vmax.xlane.f32.xlu0 %v4439
      %v4463 = vpop.xlane.xlu0 %4462
      %4464 = vmax.xlane.f32.xlu0 %v4440
      %v4465 = vpop.xlane.xlu0 %4464
      %4466 = vmax.xlane.f32.xlu0 %v4441
      %v4467 = vpop.xlane.xlu0 %4466
      %4468 = vmax.xlane.f32.xlu0 %v4442
      %v4469 = vpop.xlane.xlu0 %4468
      %4470 = vmax.xlane.f32.xlu0 %v4443
      %v4471 = vpop.xlane.xlu0 %4470
      %4472 = vmax.xlane.f32.xlu0 %v4444
      %v4473 = vpop.xlane.xlu0 %4472
      %4474 = vmax.xlane.f32.xlu0 %v4445
      %v4475 = vpop.xlane.xlu0 %4474
      %4476 = vmax.xlane.f32.xlu0 %v4446
      %v4477 = vpop.xlane.xlu0 %4476
      %4478 = vmax.xlane.f32.xlu0 %v4447
      %v4479 = vpop.xlane.xlu0 %4478
      %s4480 = scalar_lea.vmem %s0, 24
      %v4481 = vld [vmem:[%s4480] sm:$0xf]
      %v4483 = vsel %vm2942, %v4481, 0
      %4485 = vmatprep.subr.bf16.mxu0 0
      %4486 = vmatpush1.bf16.msra.mxu0 %v4483
      %4487 = vmatprep.subr.bf16.mxu0 0
      %4488 = vmatpush1.bf16.msra.mxu0 0
      %4489 = vmatprep.subr.bf16.mxu0 0
      %4490 = vmatpush1.bf16.msra.mxu0 0
      %4491 = vmatprep.subr.bf16.mxu0 0
      %4492 = vmatpush1.bf16.msra.mxu0 0
      %4493 = vmatprep.subr.bf16.mxu0 0
      %4494 = vmatpush1.bf16.msra.mxu0 0
      %4495 = vmatprep.subr.bf16.mxu0 0
      %4496 = vmatpush1.bf16.msra.mxu0 0
      %4497 = vmatprep.subr.bf16.mxu0 0
      %4498 = vmatpush1.bf16.msra.mxu0 0
      %4499 = vmatprep.subr.bf16.mxu0 0
      %4500 = vmatpush1.bf16.msra.mxu0 0
      %4501 = vmatprep.subr.bf16.mxu0 0
      %4502 = vmatpush1.bf16.msra.mxu0 0
      %4503 = vmatprep.subr.bf16.mxu0 0
      %4504 = vmatpush1.bf16.msra.mxu0 0
      %4505 = vmatprep.subr.bf16.mxu0 0
      %4506 = vmatpush1.bf16.msra.mxu0 0
      %4507 = vmatprep.subr.bf16.mxu0 0
      %4508 = vmatpush1.bf16.msra.mxu0 0
      %4509 = vmatprep.subr.bf16.mxu0 0
      %4510 = vmatpush1.bf16.msra.mxu0 0
      %4511 = vmatprep.subr.bf16.mxu0 0
      %4512 = vmatpush1.bf16.msra.mxu0 0
      %4513 = vmatprep.subr.bf16.mxu0 0
      %4514 = vmatpush1.bf16.msra.mxu0 0
      %4515 = vmatprep.subr.bf16.mxu0 0
      %4516 = vmatpush1.bf16.msra.mxu0 0
      %4517 = vmatprep.mubr.bf16.mxu0 0
      %4518 = vmatmul.mubr.bf16.gmra.mrb[0].mxu0 %v2931
      %v4519 = vpop.f32.mrb[0].mxu0
      %v4520 = vadd.f32 0.0, %v4519
      %v4521 = vpop.f32.mrb[0].mxu0
      %v4522 = vpop.f32.mrb[0].mxu0
      %v4523 = vadd.f32 0.0, %v4522
      %v4524 = vpop.f32.mrb[0].mxu0
      %4525 = vmatprep.mubr.bf16.mxu0 0
      %4526 = vmatmul.mubr.bf16.gmra.mrb[0].mxu0 %v2934
      %v4527 = vpop.f32.mrb[0].mxu0
      %v4528 = vadd.f32 0.0, %v4527
      %v4529 = vpop.f32.mrb[0].mxu0
      %v4530 = vpop.f32.mrb[0].mxu0
      %v4531 = vadd.f32 0.0, %v4530
      %v4532 = vpop.f32.mrb[0].mxu0
      %4533 = vmatprep.mubr.bf16.mxu0 0
      %4534 = vmatmul.mubr.bf16.gmra.mrb[0].mxu0 %v2937
      %v4535 = vpop.f32.mrb[0].mxu0
      %v4536 = vadd.f32 0.0, %v4535
      %v4537 = vpop.f32.mrb[0].mxu0
      %v4538 = vpop.f32.mrb[0].mxu0
      %v4539 = vadd.f32 0.0, %v4538
      %v4540 = vpop.f32.mrb[0].mxu0
      %4541 = vmatprep.mubr.bf16.mxu0 0
      %4542 = vmatmul.mubr.bf16.gmra.mrb[0].mxu0 %v2940
      %v4543 = vpop.f32.mrb[0].mxu0
      %v4544 = vadd.f32 0.0, %v4543
      %v4545 = vpop.f32.mrb[0].mxu0
      %v4546 = vpop.f32.mrb[0].mxu0
      %v4547 = vadd.f32 0.0, %v4546
      %v4548 = vpop.f32.mrb[0].mxu0
      %4549 = vdwg.mxu0
      %v4550 = vmax.f32 %v4520, 0.0
      %v4551 = vmax.f32 %v4523, 0.0
      %v4552 = vmax.f32 %v4528, 0.0
      %v4553 = vmax.f32 %v4531, 0.0
      %v4554 = vmax.f32 %v4536, 0.0
      %v4555 = vmax.f32 %v4539, 0.0
      %v4556 = vmax.f32 %v4544, 0.0
      %v4557 = vmax.f32 %v4547, 0.0
      %v4558 = vpack.c.bf16 %v4551, %v4550
      %v4559 = vpack.c.bf16 %v4553, %v4552
      %v4560 = vpack.c.bf16 %v4555, %v4554
      %v4561 = vpack.c.bf16 %v4557, %v4556
      %4562 = vmatprep.subr.bf16.mxu0 0
      %4563 = vmatpush1.bf16.msra.mxu0 %v4558
      %4564 = vmatprep.subr.bf16.mxu0 0
      %4565 = vmatpush1.bf16.msra.mxu0 %v4559
      %4566 = vmatprep.subr.bf16.mxu0 0
      %4567 = vmatpush1.bf16.msra.mxu0 %v4560
      %4568 = vmatprep.subr.bf16.mxu0 0
      %4569 = vmatpush1.bf16.msra.mxu0 %v4561
      %4570 = vmatprep.subr.bf16.mxu0 0
      %4571 = vmatpush1.bf16.msra.mxu0 0
      %4572 = vmatprep.subr.bf16.mxu0 0
      %4573 = vmatpush1.bf16.msra.mxu0 0
      %4574 = vmatprep.subr.bf16.mxu0 0
      %4575 = vmatpush1.bf16.msra.mxu0 0
      %4576 = vmatprep.subr.bf16.mxu0 0
      %4577 = vmatpush1.bf16.msra.mxu0 0
      %4578 = vmatprep.subr.bf16.mxu0 0
      %4579 = vmatpush1.bf16.msra.mxu0 0
      %4580 = vmatprep.subr.bf16.mxu0 0
      %4581 = vmatpush1.bf16.msra.mxu0 0
      %4582 = vmatprep.subr.bf16.mxu0 0
      %4583 = vmatpush1.bf16.msra.mxu0 0
      %4584 = vmatprep.subr.bf16.mxu0 0
      %4585 = vmatpush1.bf16.msra.mxu0 0
      %4586 = vmatprep.subr.bf16.mxu0 0
      %4587 = vmatpush1.bf16.msra.mxu0 0
      %4588 = vmatprep.subr.bf16.mxu0 0
      %4589 = vmatpush1.bf16.msra.mxu0 0
      %4590 = vmatprep.subr.bf16.mxu0 0
      %4591 = vmatpush1.bf16.msra.mxu0 0
      %4592 = vmatprep.subr.bf16.mxu0 0
      %4593 = vmatpush1.bf16.msra.mxu0 0
      %4594 = vmatprep.mubr.bf16.mxu0 0
      %4595 = vmatmul.mubr.bf16.gmra.mrb[0].mxu0 %v3081
      %v4596 = vpop.f32.mrb[0].mxu0
      %v4597 = vadd.f32 %v55, %v4596
      %v4598 = vpop.f32.mrb[0].mxu0
      %v4599 = vpop.f32.mrb[0].mxu0
      %v4600 = vadd.f32 %v60, %v4599
      %v4601 = vpop.f32.mrb[0].mxu0
      %4602 = vmatprep.mubr.bf16.mxu0 0
      %4603 = vmatmul.mubr.bf16.gmra.mrb[0].mxu0 %v3084
      %v4604 = vpop.f32.mrb[0].mxu0
      %v4605 = vadd.f32 %v65, %v4604
      %v4606 = vpop.f32.mrb[0].mxu0
      %v4607 = vpop.f32.mrb[0].mxu0
      %v4608 = vadd.f32 %v70, %v4607
      %v4609 = vpop.f32.mrb[0].mxu0
      %4610 = vmatprep.mubr.bf16.mxu0 0
      %4611 = vmatmul.mubr.bf16.gmra.mrb[0].mxu0 %v3087
      %v4612 = vpop.f32.mrb[0].mxu0
      %v4613 = vadd.f32 %v75, %v4612
      %v4614 = vpop.f32.mrb[0].mxu0
      %v4615 = vpop.f32.mrb[0].mxu0
      %v4616 = vadd.f32 %v80, %v4615
      %v4617 = vpop.f32.mrb[0].mxu0
      %4618 = vmatprep.mubr.bf16.mxu0 0
      %4619 = vmatmul.mubr.bf16.gmra.mrb[0].mxu0 %v3090
      %v4620 = vpop.f32.mrb[0].mxu0
      %v4621 = vadd.f32 %v85, %v4620
      %v4622 = vpop.f32.mrb[0].mxu0
      %v4623 = vpop.f32.mrb[0].mxu0
      %v4624 = vadd.f32 %v90, %v4623
      %v4625 = vpop.f32.mrb[0].mxu0
      %4626 = vmatprep.mubr.bf16.mxu0 0
      %4627 = vmatmul.mubr.bf16.gmra.mrb[0].mxu0 %v3093
      %v4628 = vpop.f32.mrb[0].mxu0
      %v4629 = vadd.f32 %v95, %v4628
      %v4630 = vpop.f32.mrb[0].mxu0
      %v4631 = vpop.f32.mrb[0].mxu0
      %v4632 = vadd.f32 %v100, %v4631
      %v4633 = vpop.f32.mrb[0].mxu0
      %4634 = vmatprep.mubr.bf16.mxu0 0
      %4635 = vmatmul.mubr.bf16.gmra.mrb[0].mxu0 %v3096
      %v4636 = vpop.f32.mrb[0].mxu0
      %v4637 = vadd.f32 %v105, %v4636
      %v4638 = vpop.f32.mrb[0].mxu0
      %v4639 = vpop.f32.mrb[0].mxu0
      %v4640 = vadd.f32 %v110, %v4639
      %v4641 = vpop.f32.mrb[0].mxu0
      %4642 = vmatprep.mubr.bf16.mxu0 0
      %4643 = vmatmul.mubr.bf16.gmra.mrb[0].mxu0 %v3099
      %v4644 = vpop.f32.mrb[0].mxu0
      %v4645 = vadd.f32 %v115, %v4644
      %v4646 = vpop.f32.mrb[0].mxu0
      %v4647 = vpop.f32.mrb[0].mxu0
      %v4648 = vadd.f32 %v120, %v4647
      %v4649 = vpop.f32.mrb[0].mxu0
      %4650 = vmatprep.mubr.bf16.mxu0 0
      %4651 = vmatmul.mubr.bf16.gmra.mrb[0].mxu0 %v3102
      %v4652 = vpop.f32.mrb[0].mxu0
      %v4653 = vadd.f32 %v125, %v4652
      %v4654 = vpop.f32.mrb[0].mxu0
      %v4655 = vpop.f32.mrb[0].mxu0
      %v4656 = vadd.f32 %v130, %v4655
      %v4657 = vpop.f32.mrb[0].mxu0
      %4658 = vdwg.mxu0
      %v4659 = vmax.f32 %v4597, 0.0
      %v4660 = vmax.f32 %v4600, 0.0
      %v4661 = vmax.f32 %v4605, 0.0
      %v4662 = vmax.f32 %v4608, 0.0
      %v4663 = vmax.f32 %v4613, 0.0
      %v4664 = vmax.f32 %v4616, 0.0
      %v4665 = vmax.f32 %v4621, 0.0
      %v4666 = vmax.f32 %v4624, 0.0
      %v4667 = vmax.f32 %v4629, 0.0
      %v4668 = vmax.f32 %v4632, 0.0
      %v4669 = vmax.f32 %v4637, 0.0
      %v4670 = vmax.f32 %v4640, 0.0
      %v4671 = vmax.f32 %v4645, 0.0
      %v4672 = vmax.f32 %v4648, 0.0
      %v4673 = vmax.f32 %v4653, 0.0
      %v4674 = vmax.f32 %v4656, 0.0
      %v4675 = vsel %vm2899, %v4659, 0.0
      %v4676 = vsel %vm2899, %v4660, 0.0
      %v4677 = vsel %vm2899, %v4661, 0.0
      %v4678 = vsel %vm2899, %v4662, 0.0
      %v4679 = vsel %vm2899, %v4663, 0.0
      %v4680 = vsel %vm2899, %v4664, 0.0
      %v4681 = vsel %vm2899, %v4665, 0.0
      %v4682 = vsel %vm2899, %v4666, 0.0
      %v4683 = vsel %vm2899, %v4667, 0.0
      %v4684 = vsel %vm2899, %v4668, 0.0
      %v4685 = vsel %vm2899, %v4669, 0.0
      %v4686 = vsel %vm2899, %v4670, 0.0
      %v4687 = vsel %vm2899, %v4671, 0.0
      %v4688 = vsel %vm2899, %v4672, 0.0
      %v4689 = vsel %vm2899, %v4673, 0.0
      %v4690 = vsel %vm2899, %v4674, 0.0
      %4691 = vmax.xlane.f32.xlu0 %v4675
      %v4692 = vpop.xlane.xlu0 %4691
      %4693 = vmax.xlane.f32.xlu0 %v4676
      %v4694 = vpop.xlane.xlu0 %4693
      %4695 = vmax.xlane.f32.xlu0 %v4677
      %v4696 = vpop.xlane.xlu0 %4695
      %4697 = vmax.xlane.f32.xlu0 %v4678
      %v4698 = vpop.xlane.xlu0 %4697
      %4699 = vmax.xlane.f32.xlu0 %v4679
      %v4700 = vpop.xlane.xlu0 %4699
      %4701 = vmax.xlane.f32.xlu0 %v4680
      %v4702 = vpop.xlane.xlu0 %4701
      %4703 = vmax.xlane.f32.xlu0 %v4681
      %v4704 = vpop.xlane.xlu0 %4703
      %4705 = vmax.xlane.f32.xlu0 %v4682
      %v4706 = vpop.xlane.xlu0 %4705
      %4707 = vmax.xlane.f32.xlu0 %v4683
      %v4708 = vpop.xlane.xlu0 %4707
      %4709 = vmax.xlane.f32.xlu0 %v4684
      %v4710 = vpop.xlane.xlu0 %4709
      %4711 = vmax.xlane.f32.xlu0 %v4685
      %v4712 = vpop.xlane.xlu0 %4711
      %4713 = vmax.xlane.f32.xlu0 %v4686
      %v4714 = vpop.xlane.xlu0 %4713
      %4715 = vmax.xlane.f32.xlu0 %v4687
      %v4716 = vpop.xlane.xlu0 %4715
      %4717 = vmax.xlane.f32.xlu0 %v4688
      %v4718 = vpop.xlane.xlu0 %4717
      %4719 = vmax.xlane.f32.xlu0 %v4689
      %v4720 = vpop.xlane.xlu0 %4719
      %4721 = vmax.xlane.f32.xlu0 %v4690
      %v4722 = vpop.xlane.xlu0 %4721
      %s4723 = scalar_lea.vmem %s0, 28
      %v4724 = vld [vmem:[%s4723] sm:$0xf]
      %v4726 = vsel %vm2942, %v4724, 0
      %4728 = vmatprep.subr.bf16.mxu0 0
      %4729 = vmatpush1.bf16.msra.mxu0 %v4726
      %4730 = vmatprep.subr.bf16.mxu0 0
      %4731 = vmatpush1.bf16.msra.mxu0 0
      %4732 = vmatprep.subr.bf16.mxu0 0
      %4733 = vmatpush1.bf16.msra.mxu0 0
      %4734 = vmatprep.subr.bf16.mxu0 0
      %4735 = vmatpush1.bf16.msra.mxu0 0
      %4736 = vmatprep.subr.bf16.mxu0 0
      %4737 = vmatpush1.bf16.msra.mxu0 0
      %4738 = vmatprep.subr.bf16.mxu0 0
      %4739 = vmatpush1.bf16.msra.mxu0 0
      %4740 = vmatprep.subr.bf16.mxu0 0
      %4741 = vmatpush1.bf16.msra.mxu0 0
      %4742 = vmatprep.subr.bf16.mxu0 0
      %4743 = vmatpush1.bf16.msra.mxu0 0
      %4744 = vmatprep.subr.bf16.mxu0 0
      %4745 = vmatpush1.bf16.msra.mxu0 0
      %4746 = vmatprep.subr.bf16.mxu0 0
      %4747 = vmatpush1.bf16.msra.mxu0 0
      %4748 = vmatprep.subr.bf16.mxu0 0
      %4749 = vmatpush1.bf16.msra.mxu0 0
      %4750 = vmatprep.subr.bf16.mxu0 0
      %4751 = vmatpush1.bf16.msra.mxu0 0
      %4752 = vmatprep.subr.bf16.mxu0 0
      %4753 = vmatpush1.bf16.msra.mxu0 0
      %4754 = vmatprep.subr.bf16.mxu0 0
      %4755 = vmatpush1.bf16.msra.mxu0 0
      %4756 = vmatprep.subr.bf16.mxu0 0
      %4757 = vmatpush1.bf16.msra.mxu0 0
      %4758 = vmatprep.subr.bf16.mxu0 0
      %4759 = vmatpush1.bf16.msra.mxu0 0
      %4760 = vmatprep.mubr.bf16.mxu0 0
      %4761 = vmatmul.mubr.bf16.gmra.mrb[0].mxu0 %v2931
      %v4762 = vpop.f32.mrb[0].mxu0
      %v4763 = vadd.f32 0.0, %v4762
      %v4764 = vpop.f32.mrb[0].mxu0
      %v4765 = vpop.f32.mrb[0].mxu0
      %v4766 = vadd.f32 0.0, %v4765
      %v4767 = vpop.f32.mrb[0].mxu0
      %4768 = vmatprep.mubr.bf16.mxu0 0
      %4769 = vmatmul.mubr.bf16.gmra.mrb[0].mxu0 %v2934
      %v4770 = vpop.f32.mrb[0].mxu0
      %v4771 = vadd.f32 0.0, %v4770
      %v4772 = vpop.f32.mrb[0].mxu0
      %v4773 = vpop.f32.mrb[0].mxu0
      %v4774 = vadd.f32 0.0, %v4773
      %v4775 = vpop.f32.mrb[0].mxu0
      %4776 = vmatprep.mubr.bf16.mxu0 0
      %4777 = vmatmul.mubr.bf16.gmra.mrb[0].mxu0 %v2937
      %v4778 = vpop.f32.mrb[0].mxu0
      %v4779 = vadd.f32 0.0, %v4778
      %v4780 = vpop.f32.mrb[0].mxu0
      %v4781 = vpop.f32.mrb[0].mxu0
      %v4782 = vadd.f32 0.0, %v4781
      %v4783 = vpop.f32.mrb[0].mxu0
      %4784 = vmatprep.mubr.bf16.mxu0 0
      %4785 = vmatmul.mubr.bf16.gmra.mrb[0].mxu0 %v2940
      %v4786 = vpop.f32.mrb[0].mxu0
      %v4787 = vadd.f32 0.0, %v4786
      %v4788 = vpop.f32.mrb[0].mxu0
      %v4789 = vpop.f32.mrb[0].mxu0
      %v4790 = vadd.f32 0.0, %v4789
      %v4791 = vpop.f32.mrb[0].mxu0
      %4792 = vdwg.mxu0
      %v4793 = vmax.f32 %v4763, 0.0
      %v4794 = vmax.f32 %v4766, 0.0
      %v4795 = vmax.f32 %v4771, 0.0
      %v4796 = vmax.f32 %v4774, 0.0
      %v4797 = vmax.f32 %v4779, 0.0
      %v4798 = vmax.f32 %v4782, 0.0
      %v4799 = vmax.f32 %v4787, 0.0
      %v4800 = vmax.f32 %v4790, 0.0
      %v4801 = vpack.c.bf16 %v4794, %v4793
      %v4802 = vpack.c.bf16 %v4796, %v4795
      %v4803 = vpack.c.bf16 %v4798, %v4797
      %v4804 = vpack.c.bf16 %v4800, %v4799
      %4805 = vmatprep.subr.bf16.mxu0 0
      %4806 = vmatpush1.bf16.msra.mxu0 %v4801
      %4807 = vmatprep.subr.bf16.mxu0 0
      %4808 = vmatpush1.bf16.msra.mxu0 %v4802
      %4809 = vmatprep.subr.bf16.mxu0 0
      %4810 = vmatpush1.bf16.msra.mxu0 %v4803
      %4811 = vmatprep.subr.bf16.mxu0 0
      %4812 = vmatpush1.bf16.msra.mxu0 %v4804
      %4813 = vmatprep.subr.bf16.mxu0 0
      %4814 = vmatpush1.bf16.msra.mxu0 0
      %4815 = vmatprep.subr.bf16.mxu0 0
      %4816 = vmatpush1.bf16.msra.mxu0 0
      %4817 = vmatprep.subr.bf16.mxu0 0
      %4818 = vmatpush1.bf16.msra.mxu0 0
      %4819 = vmatprep.subr.bf16.mxu0 0
      %4820 = vmatpush1.bf16.msra.mxu0 0
      %4821 = vmatprep.subr.bf16.mxu0 0
      %4822 = vmatpush1.bf16.msra.mxu0 0
      %4823 = vmatprep.subr.bf16.mxu0 0
      %4824 = vmatpush1.bf16.msra.mxu0 0
      %4825 = vmatprep.subr.bf16.mxu0 0
      %4826 = vmatpush1.bf16.msra.mxu0 0
      %4827 = vmatprep.subr.bf16.mxu0 0
      %4828 = vmatpush1.bf16.msra.mxu0 0
      %4829 = vmatprep.subr.bf16.mxu0 0
      %4830 = vmatpush1.bf16.msra.mxu0 0
      %4831 = vmatprep.subr.bf16.mxu0 0
      %4832 = vmatpush1.bf16.msra.mxu0 0
      %4833 = vmatprep.subr.bf16.mxu0 0
      %4834 = vmatpush1.bf16.msra.mxu0 0
      %4835 = vmatprep.subr.bf16.mxu0 0
      %4836 = vmatpush1.bf16.msra.mxu0 0
      %4837 = vmatprep.mubr.bf16.mxu0 0
      %4838 = vmatmul.mubr.bf16.gmra.mrb[0].mxu0 %v3081
      %v4839 = vpop.f32.mrb[0].mxu0
      %v4840 = vadd.f32 %v55, %v4839
      %v4841 = vpop.f32.mrb[0].mxu0
      %v4842 = vpop.f32.mrb[0].mxu0
      %v4843 = vadd.f32 %v60, %v4842
      %v4844 = vpop.f32.mrb[0].mxu0
      %4845 = vmatprep.mubr.bf16.mxu0 0
      %4846 = vmatmul.mubr.bf16.gmra.mrb[0].mxu0 %v3084
      %v4847 = vpop.f32.mrb[0].mxu0
      %v4848 = vadd.f32 %v65, %v4847
      %v4849 = vpop.f32.mrb[0].mxu0
      %v4850 = vpop.f32.mrb[0].mxu0
      %v4851 = vadd.f32 %v70, %v4850
      %v4852 = vpop.f32.mrb[0].mxu0
      %4853 = vmatprep.mubr.bf16.mxu0 0
      %4854 = vmatmul.mubr.bf16.gmra.mrb[0].mxu0 %v3087
      %v4855 = vpop.f32.mrb[0].mxu0
      %v4856 = vadd.f32 %v75, %v4855
      %v4857 = vpop.f32.mrb[0].mxu0
      %v4858 = vpop.f32.mrb[0].mxu0
      %v4859 = vadd.f32 %v80, %v4858
      %v4860 = vpop.f32.mrb[0].mxu0
      %4861 = vmatprep.mubr.bf16.mxu0 0
      %4862 = vmatmul.mubr.bf16.gmra.mrb[0].mxu0 %v3090
      %v4863 = vpop.f32.mrb[0].mxu0
      %v4864 = vadd.f32 %v85, %v4863
      %v4865 = vpop.f32.mrb[0].mxu0
      %v4866 = vpop.f32.mrb[0].mxu0
      %v4867 = vadd.f32 %v90, %v4866
      %v4868 = vpop.f32.mrb[0].mxu0
      %4869 = vmatprep.mubr.bf16.mxu0 0
      %4870 = vmatmul.mubr.bf16.gmra.mrb[0].mxu0 %v3093
      %v4871 = vpop.f32.mrb[0].mxu0
      %v4872 = vadd.f32 %v95, %v4871
      %v4873 = vpop.f32.mrb[0].mxu0
      %v4874 = vpop.f32.mrb[0].mxu0
      %v4875 = vadd.f32 %v100, %v4874
      %v4876 = vpop.f32.mrb[0].mxu0
      %4877 = vmatprep.mubr.bf16.mxu0 0
      %4878 = vmatmul.mubr.bf16.gmra.mrb[0].mxu0 %v3096
      %v4879 = vpop.f32.mrb[0].mxu0
      %v4880 = vadd.f32 %v105, %v4879
      %v4881 = vpop.f32.mrb[0].mxu0
      %v4882 = vpop.f32.mrb[0].mxu0
      %v4883 = vadd.f32 %v110, %v4882
      %v4884 = vpop.f32.mrb[0].mxu0
      %4885 = vmatprep.mubr.bf16.mxu0 0
      %4886 = vmatmul.mubr.bf16.gmra.mrb[0].mxu0 %v3099
      %v4887 = vpop.f32.mrb[0].mxu0
      %v4888 = vadd.f32 %v115, %v4887
      %v4889 = vpop.f32.mrb[0].mxu0
      %v4890 = vpop.f32.mrb[0].mxu0
      %v4891 = vadd.f32 %v120, %v4890
      %v4892 = vpop.f32.mrb[0].mxu0
      %4893 = vmatprep.mubr.bf16.mxu0 0
      %4894 = vmatmul.mubr.bf16.gmra.mrb[0].mxu0 %v3102
      %v4895 = vpop.f32.mrb[0].mxu0
      %v4896 = vadd.f32 %v125, %v4895
      %v4897 = vpop.f32.mrb[0].mxu0
      %v4898 = vpop.f32.mrb[0].mxu0
      %v4899 = vadd.f32 %v130, %v4898
      %v4900 = vpop.f32.mrb[0].mxu0
      %4901 = vdwg.mxu0
      %v4902 = vmax.f32 %v4840, 0.0
      %v4903 = vmax.f32 %v4843, 0.0
      %v4904 = vmax.f32 %v4848, 0.0
      %v4905 = vmax.f32 %v4851, 0.0
      %v4906 = vmax.f32 %v4856, 0.0
      %v4907 = vmax.f32 %v4859, 0.0
      %v4908 = vmax.f32 %v4864, 0.0
      %v4909 = vmax.f32 %v4867, 0.0
      %v4910 = vmax.f32 %v4872, 0.0
      %v4911 = vmax.f32 %v4875, 0.0
      %v4912 = vmax.f32 %v4880, 0.0
      %v4913 = vmax.f32 %v4883, 0.0
      %v4914 = vmax.f32 %v4888, 0.0
      %v4915 = vmax.f32 %v4891, 0.0
      %v4916 = vmax.f32 %v4896, 0.0
      %v4917 = vmax.f32 %v4899, 0.0
      %v4918 = vsel %vm2899, %v4902, 0.0
      %v4919 = vsel %vm2899, %v4903, 0.0
      %v4920 = vsel %vm2899, %v4904, 0.0
      %v4921 = vsel %vm2899, %v4905, 0.0
      %v4922 = vsel %vm2899, %v4906, 0.0
      %v4923 = vsel %vm2899, %v4907, 0.0
      %v4924 = vsel %vm2899, %v4908, 0.0
      %v4925 = vsel %vm2899, %v4909, 0.0
      %v4926 = vsel %vm2899, %v4910, 0.0
      %v4927 = vsel %vm2899, %v4911, 0.0
      %v4928 = vsel %vm2899, %v4912, 0.0
      %v4929 = vsel %vm2899, %v4913, 0.0
      %v4930 = vsel %vm2899, %v4914, 0.0
      %v4931 = vsel %vm2899, %v4915, 0.0
      %v4932 = vsel %vm2899, %v4916, 0.0
      %v4933 = vsel %vm2899, %v4917, 0.0
      %4934 = vmax.xlane.f32.xlu0 %v4918
      %v4935 = vpop.xlane.xlu0 %4934
      %4936 = vmax.xlane.f32.xlu0 %v4919
      %v4937 = vpop.xlane.xlu0 %4936
      %4938 = vmax.xlane.f32.xlu0 %v4920
      %v4939 = vpop.xlane.xlu0 %4938
      %4940 = vmax.xlane.f32.xlu0 %v4921
      %v4941 = vpop.xlane.xlu0 %4940
      %4942 = vmax.xlane.f32.xlu0 %v4922
      %v4943 = vpop.xlane.xlu0 %4942
      %4944 = vmax.xlane.f32.xlu0 %v4923
      %v4945 = vpop.xlane.xlu0 %4944
      %4946 = vmax.xlane.f32.xlu0 %v4924
      %v4947 = vpop.xlane.xlu0 %4946
      %4948 = vmax.xlane.f32.xlu0 %v4925
      %v4949 = vpop.xlane.xlu0 %4948
      %4950 = vmax.xlane.f32.xlu0 %v4926
      %v4951 = vpop.xlane.xlu0 %4950
      %4952 = vmax.xlane.f32.xlu0 %v4927
      %v4953 = vpop.xlane.xlu0 %4952
      %4954 = vmax.xlane.f32.xlu0 %v4928
      %v4955 = vpop.xlane.xlu0 %4954
      %4956 = vmax.xlane.f32.xlu0 %v4929
      %v4957 = vpop.xlane.xlu0 %4956
      %4958 = vmax.xlane.f32.xlu0 %v4930
      %v4959 = vpop.xlane.xlu0 %4958
      %4960 = vmax.xlane.f32.xlu0 %v4931
      %v4961 = vpop.xlane.xlu0 %4960
      %4962 = vmax.xlane.f32.xlu0 %v4932
      %v4963 = vpop.xlane.xlu0 %4962
      %4964 = vmax.xlane.f32.xlu0 %v4933
      %v4965 = vpop.xlane.xlu0 %4964
      %v4982 = vlaneseq
      %v4983 = vshrl.u32 %v4982, 7
      %v4984 = vsub.s32 %v2895, %v4983
      %v4985 = vrot.slane %v3234, %v4984
      %v4986 = vadd.s32 %v2895, 4294967288
      %v4987 = vlaneseq
      %v4988 = vshrl.u32 %v4987, 7
      %v4989 = vsub.s32 %v4986, %v4988
      %v4990 = vrot.slane %v3236, %v4989
      %vm4991 = vcmask 130112
      %v4992 = vsel %vm4991, %v4990, %v4985
      %v4993 = vadd.s32 %v2895, 4294967280
      %v4994 = vlaneseq
      %v4995 = vshrl.u32 %v4994, 7
      %v4996 = vsub.s32 %v4993, %v4995
      %v4997 = vrot.slane %v3238, %v4996
      %vm4998 = vcmask 195712
      %v4999 = vsel %vm4998, %v4997, %v4992
      %v5000 = vadd.s32 %v2895, 4294967272
      %v5001 = vlaneseq
      %v5002 = vshrl.u32 %v5001, 7
      %v5003 = vsub.s32 %v5000, %v5002
      %v5004 = vrot.slane %v3240, %v5003
      %vm5005 = vcmask 261312
      %v5006 = vsel %vm5005, %v5004, %v4999
      %v5007 = vadd.s32 %v2895, 4294967264
      %v5008 = vlaneseq
      %v5009 = vshrl.u32 %v5008, 7
      %v5010 = vsub.s32 %v5007, %v5009
      %v5011 = vrot.slane %v3242, %v5010
      %vm5012 = vcmask 326912
      %v5013 = vsel %vm5012, %v5011, %v5006
      %v5014 = vadd.s32 %v2895, 4294967256
      %v5015 = vlaneseq
      %v5016 = vshrl.u32 %v5015, 7
      %v5017 = vsub.s32 %v5014, %v5016
      %v5018 = vrot.slane %v3244, %v5017
      %vm5019 = vcmask 392512
      %v5020 = vsel %vm5019, %v5018, %v5013
      %v5021 = vadd.s32 %v2895, 4294967248
      %v5022 = vlaneseq
      %v5023 = vshrl.u32 %v5022, 7
      %v5024 = vsub.s32 %v5021, %v5023
      %v5025 = vrot.slane %v3246, %v5024
      %vm5026 = vcmask 458112
      %v5027 = vsel %vm5026, %v5025, %v5020
      %v5028 = vadd.s32 %v2895, 4294967240
      %v5029 = vlaneseq
      %v5030 = vshrl.u32 %v5029, 7
      %v5031 = vsub.s32 %v5028, %v5030
      %v5032 = vrot.slane %v3248, %v5031
      %vm5033 = vcmask 523712
      %v5034 = vsel %vm5033, %v5032, %v5027
      %v5035 = vadd.s32 %v2895, 4294967232
      %v5036 = vlaneseq
      %v5037 = vshrl.u32 %v5036, 7
      %v5038 = vsub.s32 %v5035, %v5037
      %v5039 = vrot.slane %v3250, %v5038
      %vm5040 = vcmask 589312
      %v5041 = vsel %vm5040, %v5039, %v5034
      %v5042 = vadd.s32 %v2895, 4294967224
      %v5043 = vlaneseq
      %v5044 = vshrl.u32 %v5043, 7
      %v5045 = vsub.s32 %v5042, %v5044
      %v5046 = vrot.slane %v3252, %v5045
      %vm5047 = vcmask 654912
      %v5048 = vsel %vm5047, %v5046, %v5041
      %v5049 = vadd.s32 %v2895, 4294967216
      %v5050 = vlaneseq
      %v5051 = vshrl.u32 %v5050, 7
      %v5052 = vsub.s32 %v5049, %v5051
      %v5053 = vrot.slane %v3254, %v5052
      %vm5054 = vcmask 720512
      %v5055 = vsel %vm5054, %v5053, %v5048
      %v5056 = vadd.s32 %v2895, 4294967208
      %v5057 = vlaneseq
      %v5058 = vshrl.u32 %v5057, 7
      %v5059 = vsub.s32 %v5056, %v5058
      %v5060 = vrot.slane %v3256, %v5059
      %vm5061 = vcmask 786112
      %v5062 = vsel %vm5061, %v5060, %v5055
      %v5063 = vadd.s32 %v2895, 4294967200
      %v5064 = vlaneseq
      %v5065 = vshrl.u32 %v5064, 7
      %v5066 = vsub.s32 %v5063, %v5065
      %v5067 = vrot.slane %v3258, %v5066
      %vm5068 = vcmask 851712
      %v5069 = vsel %vm5068, %v5067, %v5062
      %v5070 = vadd.s32 %v2895, 4294967192
      %v5071 = vlaneseq
      %v5072 = vshrl.u32 %v5071, 7
      %v5073 = vsub.s32 %v5070, %v5072
      %v5074 = vrot.slane %v3260, %v5073
      %vm5075 = vcmask 917312
      %v5076 = vsel %vm5075, %v5074, %v5069
      %v5077 = vadd.s32 %v2895, 4294967184
      %v5078 = vlaneseq
      %v5079 = vshrl.u32 %v5078, 7
      %v5080 = vsub.s32 %v5077, %v5079
      %v5081 = vrot.slane %v3262, %v5080
      %vm5082 = vcmask 982912
      %v5083 = vsel %vm5082, %v5081, %v5076
      %v5084 = vadd.s32 %v2895, 4294967176
      %v5085 = vlaneseq
      %v5086 = vshrl.u32 %v5085, 7
      %v5087 = vsub.s32 %v5084, %v5086
      %v5088 = vrot.slane %v3264, %v5087
      %vm5089 = vcmask 1048512
      %v5090 = vsel %vm5089, %v5088, %v5083
      %v5108 = vlaneseq
      %v5109 = vshrl.u32 %v5108, 7
      %v5110 = vsub.s32 %v2895, %v5109
      %v5111 = vrot.slane %v3477, %v5110
      %v5112 = vlaneseq
      %v5113 = vshrl.u32 %v5112, 7
      %v5114 = vsub.s32 %v4986, %v5113
      %v5115 = vrot.slane %v3479, %v5114
      %v5116 = vsel %vm4991, %v5115, %v5111
      %v5117 = vlaneseq
      %v5118 = vshrl.u32 %v5117, 7
      %v5119 = vsub.s32 %v4993, %v5118
      %v5120 = vrot.slane %v3481, %v5119
      %v5121 = vsel %vm4998, %v5120, %v5116
      %v5122 = vlaneseq
      %v5123 = vshrl.u32 %v5122, 7
      %v5124 = vsub.s32 %v5000, %v5123
      %v5125 = vrot.slane %v3483, %v5124
      %v5126 = vsel %vm5005, %v5125, %v5121
      %v5127 = vlaneseq
      %v5128 = vshrl.u32 %v5127, 7
      %v5129 = vsub.s32 %v5007, %v5128
      %v5130 = vrot.slane %v3485, %v5129
      %v5131 = vsel %vm5012, %v5130, %v5126
      %v5132 = vlaneseq
      %v5133 = vshrl.u32 %v5132, 7
      %v5134 = vsub.s32 %v5014, %v5133
      %v5135 = vrot.slane %v3487, %v5134
      %v5136 = vsel %vm5019, %v5135, %v5131
      %v5137 = vlaneseq
      %v5138 = vshrl.u32 %v5137, 7
      %v5139 = vsub.s32 %v5021, %v5138
      %v5140 = vrot.slane %v3489, %v5139
      %v5141 = vsel %vm5026, %v5140, %v5136
      %v5142 = vlaneseq
      %v5143 = vshrl.u32 %v5142, 7
      %v5144 = vsub.s32 %v5028, %v5143
      %v5145 = vrot.slane %v3491, %v5144
      %v5146 = vsel %vm5033, %v5145, %v5141
      %v5147 = vlaneseq
      %v5148 = vshrl.u32 %v5147, 7
      %v5149 = vsub.s32 %v5035, %v5148
      %v5150 = vrot.slane %v3493, %v5149
      %v5151 = vsel %vm5040, %v5150, %v5146
      %v5152 = vlaneseq
      %v5153 = vshrl.u32 %v5152, 7
      %v5154 = vsub.s32 %v5042, %v5153
      %v5155 = vrot.slane %v3495, %v5154
      %v5156 = vsel %vm5047, %v5155, %v5151
      %v5157 = vlaneseq
      %v5158 = vshrl.u32 %v5157, 7
      %v5159 = vsub.s32 %v5049, %v5158
      %v5160 = vrot.slane %v3497, %v5159
      %v5161 = vsel %vm5054, %v5160, %v5156
      %v5162 = vlaneseq
      %v5163 = vshrl.u32 %v5162, 7
      %v5164 = vsub.s32 %v5056, %v5163
      %v5165 = vrot.slane %v3499, %v5164
      %v5166 = vsel %vm5061, %v5165, %v5161
      %v5167 = vlaneseq
      %v5168 = vshrl.u32 %v5167, 7
      %v5169 = vsub.s32 %v5063, %v5168
      %v5170 = vrot.slane %v3501, %v5169
      %v5171 = vsel %vm5068, %v5170, %v5166
      %v5172 = vlaneseq
      %v5173 = vshrl.u32 %v5172, 7
      %v5174 = vsub.s32 %v5070, %v5173
      %v5175 = vrot.slane %v3503, %v5174
      %v5176 = vsel %vm5075, %v5175, %v5171
      %v5177 = vlaneseq
      %v5178 = vshrl.u32 %v5177, 7
      %v5179 = vsub.s32 %v5077, %v5178
      %v5180 = vrot.slane %v3505, %v5179
      %v5181 = vsel %vm5082, %v5180, %v5176
      %v5182 = vlaneseq
      %v5183 = vshrl.u32 %v5182, 7
      %v5184 = vsub.s32 %v5084, %v5183
      %v5185 = vrot.slane %v3507, %v5184
      %v5186 = vsel %vm5089, %v5185, %v5181
      %v5204 = vlaneseq
      %v5205 = vshrl.u32 %v5204, 7
      %v5206 = vsub.s32 %v2895, %v5205
      %v5207 = vrot.slane %v3720, %v5206
      %v5208 = vlaneseq
      %v5209 = vshrl.u32 %v5208, 7
      %v5210 = vsub.s32 %v4986, %v5209
      %v5211 = vrot.slane %v3722, %v5210
      %v5212 = vsel %vm4991, %v5211, %v5207
      %v5213 = vlaneseq
      %v5214 = vshrl.u32 %v5213, 7
      %v5215 = vsub.s32 %v4993, %v5214
      %v5216 = vrot.slane %v3724, %v5215
      %v5217 = vsel %vm4998, %v5216, %v5212
      %v5218 = vlaneseq
      %v5219 = vshrl.u32 %v5218, 7
      %v5220 = vsub.s32 %v5000, %v5219
      %v5221 = vrot.slane %v3726, %v5220
      %v5222 = vsel %vm5005, %v5221, %v5217
      %v5223 = vlaneseq
      %v5224 = vshrl.u32 %v5223, 7
      %v5225 = vsub.s32 %v5007, %v5224
      %v5226 = vrot.slane %v3728, %v5225
      %v5227 = vsel %vm5012, %v5226, %v5222
      %v5228 = vlaneseq
      %v5229 = vshrl.u32 %v5228, 7
      %v5230 = vsub.s32 %v5014, %v5229
      %v5231 = vrot.slane %v3730, %v5230
      %v5232 = vsel %vm5019, %v5231, %v5227
      %v5233 = vlaneseq
      %v5234 = vshrl.u32 %v5233, 7
      %v5235 = vsub.s32 %v5021, %v5234
      %v5236 = vrot.slane %v3732, %v5235
      %v5237 = vsel %vm5026, %v5236, %v5232
      %v5238 = vlaneseq
      %v5239 = vshrl.u32 %v5238, 7
      %v5240 = vsub.s32 %v5028, %v5239
      %v5241 = vrot.slane %v3734, %v5240
      %v5242 = vsel %vm5033, %v5241, %v5237
      %v5243 = vlaneseq
      %v5244 = vshrl.u32 %v5243, 7
      %v5245 = vsub.s32 %v5035, %v5244
      %v5246 = vrot.slane %v3736, %v5245
      %v5247 = vsel %vm5040, %v5246, %v5242
      %v5248 = vlaneseq
      %v5249 = vshrl.u32 %v5248, 7
      %v5250 = vsub.s32 %v5042, %v5249
      %v5251 = vrot.slane %v3738, %v5250
      %v5252 = vsel %vm5047, %v5251, %v5247
      %v5253 = vlaneseq
      %v5254 = vshrl.u32 %v5253, 7
      %v5255 = vsub.s32 %v5049, %v5254
      %v5256 = vrot.slane %v3740, %v5255
      %v5257 = vsel %vm5054, %v5256, %v5252
      %v5258 = vlaneseq
      %v5259 = vshrl.u32 %v5258, 7
      %v5260 = vsub.s32 %v5056, %v5259
      %v5261 = vrot.slane %v3742, %v5260
      %v5262 = vsel %vm5061, %v5261, %v5257
      %v5263 = vlaneseq
      %v5264 = vshrl.u32 %v5263, 7
      %v5265 = vsub.s32 %v5063, %v5264
      %v5266 = vrot.slane %v3744, %v5265
      %v5267 = vsel %vm5068, %v5266, %v5262
      %v5268 = vlaneseq
      %v5269 = vshrl.u32 %v5268, 7
      %v5270 = vsub.s32 %v5070, %v5269
      %v5271 = vrot.slane %v3746, %v5270
      %v5272 = vsel %vm5075, %v5271, %v5267
      %v5273 = vlaneseq
      %v5274 = vshrl.u32 %v5273, 7
      %v5275 = vsub.s32 %v5077, %v5274
      %v5276 = vrot.slane %v3748, %v5275
      %v5277 = vsel %vm5082, %v5276, %v5272
      %v5278 = vlaneseq
      %v5279 = vshrl.u32 %v5278, 7
      %v5280 = vsub.s32 %v5084, %v5279
      %v5281 = vrot.slane %v3750, %v5280
      %v5282 = vsel %vm5089, %v5281, %v5277
      %v5300 = vlaneseq
      %v5301 = vshrl.u32 %v5300, 7
      %v5302 = vsub.s32 %v2895, %v5301
      %v5303 = vrot.slane %v3963, %v5302
      %v5304 = vlaneseq
      %v5305 = vshrl.u32 %v5304, 7
      %v5306 = vsub.s32 %v4986, %v5305
      %v5307 = vrot.slane %v3965, %v5306
      %v5308 = vsel %vm4991, %v5307, %v5303
      %v5309 = vlaneseq
      %v5310 = vshrl.u32 %v5309, 7
      %v5311 = vsub.s32 %v4993, %v5310
      %v5312 = vrot.slane %v3967, %v5311
      %v5313 = vsel %vm4998, %v5312, %v5308
      %v5314 = vlaneseq
      %v5315 = vshrl.u32 %v5314, 7
      %v5316 = vsub.s32 %v5000, %v5315
      %v5317 = vrot.slane %v3969, %v5316
      %v5318 = vsel %vm5005, %v5317, %v5313
      %v5319 = vlaneseq
      %v5320 = vshrl.u32 %v5319, 7
      %v5321 = vsub.s32 %v5007, %v5320
      %v5322 = vrot.slane %v3971, %v5321
      %v5323 = vsel %vm5012, %v5322, %v5318
      %v5324 = vlaneseq
      %v5325 = vshrl.u32 %v5324, 7
      %v5326 = vsub.s32 %v5014, %v5325
      %v5327 = vrot.slane %v3973, %v5326
      %v5328 = vsel %vm5019, %v5327, %v5323
      %v5329 = vlaneseq
      %v5330 = vshrl.u32 %v5329, 7
      %v5331 = vsub.s32 %v5021, %v5330
      %v5332 = vrot.slane %v3975, %v5331
      %v5333 = vsel %vm5026, %v5332, %v5328
      %v5334 = vlaneseq
      %v5335 = vshrl.u32 %v5334, 7
      %v5336 = vsub.s32 %v5028, %v5335
      %v5337 = vrot.slane %v3977, %v5336
      %v5338 = vsel %vm5033, %v5337, %v5333
      %v5339 = vlaneseq
      %v5340 = vshrl.u32 %v5339, 7
      %v5341 = vsub.s32 %v5035, %v5340
      %v5342 = vrot.slane %v3979, %v5341
      %v5343 = vsel %vm5040, %v5342, %v5338
      %v5344 = vlaneseq
      %v5345 = vshrl.u32 %v5344, 7
      %v5346 = vsub.s32 %v5042, %v5345
      %v5347 = vrot.slane %v3981, %v5346
      %v5348 = vsel %vm5047, %v5347, %v5343
      %v5349 = vlaneseq
      %v5350 = vshrl.u32 %v5349, 7
      %v5351 = vsub.s32 %v5049, %v5350
      %v5352 = vrot.slane %v3983, %v5351
      %v5353 = vsel %vm5054, %v5352, %v5348
      %v5354 = vlaneseq
      %v5355 = vshrl.u32 %v5354, 7
      %v5356 = vsub.s32 %v5056, %v5355
      %v5357 = vrot.slane %v3985, %v5356
      %v5358 = vsel %vm5061, %v5357, %v5353
      %v5359 = vlaneseq
      %v5360 = vshrl.u32 %v5359, 7
      %v5361 = vsub.s32 %v5063, %v5360
      %v5362 = vrot.slane %v3987, %v5361
      %v5363 = vsel %vm5068, %v5362, %v5358
      %v5364 = vlaneseq
      %v5365 = vshrl.u32 %v5364, 7
      %v5366 = vsub.s32 %v5070, %v5365
      %v5367 = vrot.slane %v3989, %v5366
      %v5368 = vsel %vm5075, %v5367, %v5363
      %v5369 = vlaneseq
      %v5370 = vshrl.u32 %v5369, 7
      %v5371 = vsub.s32 %v5077, %v5370
      %v5372 = vrot.slane %v3991, %v5371
      %v5373 = vsel %vm5082, %v5372, %v5368
      %v5374 = vlaneseq
      %v5375 = vshrl.u32 %v5374, 7
      %v5376 = vsub.s32 %v5084, %v5375
      %v5377 = vrot.slane %v3993, %v5376
      %v5378 = vsel %vm5089, %v5377, %v5373
      %v5396 = vlaneseq
      %v5397 = vshrl.u32 %v5396, 7
      %v5398 = vsub.s32 %v2895, %v5397
      %v5399 = vrot.slane %v4206, %v5398
      %v5400 = vlaneseq
      %v5401 = vshrl.u32 %v5400, 7
      %v5402 = vsub.s32 %v4986, %v5401
      %v5403 = vrot.slane %v4208, %v5402
      %v5404 = vsel %vm4991, %v5403, %v5399
      %v5405 = vlaneseq
      %v5406 = vshrl.u32 %v5405, 7
      %v5407 = vsub.s32 %v4993, %v5406
      %v5408 = vrot.slane %v4210, %v5407
      %v5409 = vsel %vm4998, %v5408, %v5404
      %v5410 = vlaneseq
      %v5411 = vshrl.u32 %v5410, 7
      %v5412 = vsub.s32 %v5000, %v5411
      %v5413 = vrot.slane %v4212, %v5412
      %v5414 = vsel %vm5005, %v5413, %v5409
      %v5415 = vlaneseq
      %v5416 = vshrl.u32 %v5415, 7
      %v5417 = vsub.s32 %v5007, %v5416
      %v5418 = vrot.slane %v4214, %v5417
      %v5419 = vsel %vm5012, %v5418, %v5414
      %v5420 = vlaneseq
      %v5421 = vshrl.u32 %v5420, 7
      %v5422 = vsub.s32 %v5014, %v5421
      %v5423 = vrot.slane %v4216, %v5422
      %v5424 = vsel %vm5019, %v5423, %v5419
      %v5425 = vlaneseq
      %v5426 = vshrl.u32 %v5425, 7
      %v5427 = vsub.s32 %v5021, %v5426
      %v5428 = vrot.slane %v4218, %v5427
      %v5429 = vsel %vm5026, %v5428, %v5424
      %v5430 = vlaneseq
      %v5431 = vshrl.u32 %v5430, 7
      %v5432 = vsub.s32 %v5028, %v5431
      %v5433 = vrot.slane %v4220, %v5432
      %v5434 = vsel %vm5033, %v5433, %v5429
      %v5435 = vlaneseq
      %v5436 = vshrl.u32 %v5435, 7
      %v5437 = vsub.s32 %v5035, %v5436
      %v5438 = vrot.slane %v4222, %v5437
      %v5439 = vsel %vm5040, %v5438, %v5434
      %v5440 = vlaneseq
      %v5441 = vshrl.u32 %v5440, 7
      %v5442 = vsub.s32 %v5042, %v5441
      %v5443 = vrot.slane %v4224, %v5442
      %v5444 = vsel %vm5047, %v5443, %v5439
      %v5445 = vlaneseq
      %v5446 = vshrl.u32 %v5445, 7
      %v5447 = vsub.s32 %v5049, %v5446
      %v5448 = vrot.slane %v4226, %v5447
      %v5449 = vsel %vm5054, %v5448, %v5444
      %v5450 = vlaneseq
      %v5451 = vshrl.u32 %v5450, 7
      %v5452 = vsub.s32 %v5056, %v5451
      %v5453 = vrot.slane %v4228, %v5452
      %v5454 = vsel %vm5061, %v5453, %v5449
      %v5455 = vlaneseq
      %v5456 = vshrl.u32 %v5455, 7
      %v5457 = vsub.s32 %v5063, %v5456
      %v5458 = vrot.slane %v4230, %v5457
      %v5459 = vsel %vm5068, %v5458, %v5454
      %v5460 = vlaneseq
      %v5461 = vshrl.u32 %v5460, 7
      %v5462 = vsub.s32 %v5070, %v5461
      %v5463 = vrot.slane %v4232, %v5462
      %v5464 = vsel %vm5075, %v5463, %v5459
      %v5465 = vlaneseq
      %v5466 = vshrl.u32 %v5465, 7
      %v5467 = vsub.s32 %v5077, %v5466
      %v5468 = vrot.slane %v4234, %v5467
      %v5469 = vsel %vm5082, %v5468, %v5464
      %v5470 = vlaneseq
      %v5471 = vshrl.u32 %v5470, 7
      %v5472 = vsub.s32 %v5084, %v5471
      %v5473 = vrot.slane %v4236, %v5472
      %v5474 = vsel %vm5089, %v5473, %v5469
      %v5492 = vlaneseq
      %v5493 = vshrl.u32 %v5492, 7
      %v5494 = vsub.s32 %v2895, %v5493
      %v5495 = vrot.slane %v4449, %v5494
      %v5496 = vlaneseq
      %v5497 = vshrl.u32 %v5496, 7
      %v5498 = vsub.s32 %v4986, %v5497
      %v5499 = vrot.slane %v4451, %v5498
      %v5500 = vsel %vm4991, %v5499, %v5495
      %v5501 = vlaneseq
      %v5502 = vshrl.u32 %v5501, 7
      %v5503 = vsub.s32 %v4993, %v5502
      %v5504 = vrot.slane %v4453, %v5503
      %v5505 = vsel %vm4998, %v5504, %v5500
      %v5506 = vlaneseq
      %v5507 = vshrl.u32 %v5506, 7
      %v5508 = vsub.s32 %v5000, %v5507
      %v5509 = vrot.slane %v4455, %v5508
      %v5510 = vsel %vm5005, %v5509, %v5505
      %v5511 = vlaneseq
      %v5512 = vshrl.u32 %v5511, 7
      %v5513 = vsub.s32 %v5007, %v5512
      %v5514 = vrot.slane %v4457, %v5513
      %v5515 = vsel %vm5012, %v5514, %v5510
      %v5516 = vlaneseq
      %v5517 = vshrl.u32 %v5516, 7
      %v5518 = vsub.s32 %v5014, %v5517
      %v5519 = vrot.slane %v4459, %v5518
      %v5520 = vsel %vm5019, %v5519, %v5515
      %v5521 = vlaneseq
      %v5522 = vshrl.u32 %v5521, 7
      %v5523 = vsub.s32 %v5021, %v5522
      %v5524 = vrot.slane %v4461, %v5523
      %v5525 = vsel %vm5026, %v5524, %v5520
      %v5526 = vlaneseq
      %v5527 = vshrl.u32 %v5526, 7
      %v5528 = vsub.s32 %v5028, %v5527
      %v5529 = vrot.slane %v4463, %v5528
      %v5530 = vsel %vm5033, %v5529, %v5525
      %v5531 = vlaneseq
      %v5532 = vshrl.u32 %v5531, 7
      %v5533 = vsub.s32 %v5035, %v5532
      %v5534 = vrot.slane %v4465, %v5533
      %v5535 = vsel %vm5040, %v5534, %v5530
      %v5536 = vlaneseq
      %v5537 = vshrl.u32 %v5536, 7
      %v5538 = vsub.s32 %v5042, %v5537
      %v5539 = vrot.slane %v4467, %v5538
      %v5540 = vsel %vm5047, %v5539, %v5535
      %v5541 = vlaneseq
      %v5542 = vshrl.u32 %v5541, 7
      %v5543 = vsub.s32 %v5049, %v5542
      %v5544 = vrot.slane %v4469, %v5543
      %v5545 = vsel %vm5054, %v5544, %v5540
      %v5546 = vlaneseq
      %v5547 = vshrl.u32 %v5546, 7
      %v5548 = vsub.s32 %v5056, %v5547
      %v5549 = vrot.slane %v4471, %v5548
      %v5550 = vsel %vm5061, %v5549, %v5545
      %v5551 = vlaneseq
      %v5552 = vshrl.u32 %v5551, 7
      %v5553 = vsub.s32 %v5063, %v5552
      %v5554 = vrot.slane %v4473, %v5553
      %v5555 = vsel %vm5068, %v5554, %v5550
      %v5556 = vlaneseq
      %v5557 = vshrl.u32 %v5556, 7
      %v5558 = vsub.s32 %v5070, %v5557
      %v5559 = vrot.slane %v4475, %v5558
      %v5560 = vsel %vm5075, %v5559, %v5555
      %v5561 = vlaneseq
      %v5562 = vshrl.u32 %v5561, 7
      %v5563 = vsub.s32 %v5077, %v5562
      %v5564 = vrot.slane %v4477, %v5563
      %v5565 = vsel %vm5082, %v5564, %v5560
      %v5566 = vlaneseq
      %v5567 = vshrl.u32 %v5566, 7
      %v5568 = vsub.s32 %v5084, %v5567
      %v5569 = vrot.slane %v4479, %v5568
      %v5570 = vsel %vm5089, %v5569, %v5565
      %v5588 = vlaneseq
      %v5589 = vshrl.u32 %v5588, 7
      %v5590 = vsub.s32 %v2895, %v5589
      %v5591 = vrot.slane %v4692, %v5590
      %v5592 = vlaneseq
      %v5593 = vshrl.u32 %v5592, 7
      %v5594 = vsub.s32 %v4986, %v5593
      %v5595 = vrot.slane %v4694, %v5594
      %v5596 = vsel %vm4991, %v5595, %v5591
      %v5597 = vlaneseq
      %v5598 = vshrl.u32 %v5597, 7
      %v5599 = vsub.s32 %v4993, %v5598
      %v5600 = vrot.slane %v4696, %v5599
      %v5601 = vsel %vm4998, %v5600, %v5596
      %v5602 = vlaneseq
      %v5603 = vshrl.u32 %v5602, 7
      %v5604 = vsub.s32 %v5000, %v5603
      %v5605 = vrot.slane %v4698, %v5604
      %v5606 = vsel %vm5005, %v5605, %v5601
      %v5607 = vlaneseq
      %v5608 = vshrl.u32 %v5607, 7
      %v5609 = vsub.s32 %v5007, %v5608
      %v5610 = vrot.slane %v4700, %v5609
      %v5611 = vsel %vm5012, %v5610, %v5606
      %v5612 = vlaneseq
      %v5613 = vshrl.u32 %v5612, 7
      %v5614 = vsub.s32 %v5014, %v5613
      %v5615 = vrot.slane %v4702, %v5614
      %v5616 = vsel %vm5019, %v5615, %v5611
      %v5617 = vlaneseq
      %v5618 = vshrl.u32 %v5617, 7
      %v5619 = vsub.s32 %v5021, %v5618
      %v5620 = vrot.slane %v4704, %v5619
      %v5621 = vsel %vm5026, %v5620, %v5616
      %v5622 = vlaneseq
      %v5623 = vshrl.u32 %v5622, 7
      %v5624 = vsub.s32 %v5028, %v5623
      %v5625 = vrot.slane %v4706, %v5624
      %v5626 = vsel %vm5033, %v5625, %v5621
      %v5627 = vlaneseq
      %v5628 = vshrl.u32 %v5627, 7
      %v5629 = vsub.s32 %v5035, %v5628
      %v5630 = vrot.slane %v4708, %v5629
      %v5631 = vsel %vm5040, %v5630, %v5626
      %v5632 = vlaneseq
      %v5633 = vshrl.u32 %v5632, 7
      %v5634 = vsub.s32 %v5042, %v5633
      %v5635 = vrot.slane %v4710, %v5634
      %v5636 = vsel %vm5047, %v5635, %v5631
      %v5637 = vlaneseq
      %v5638 = vshrl.u32 %v5637, 7
      %v5639 = vsub.s32 %v5049, %v5638
      %v5640 = vrot.slane %v4712, %v5639
      %v5641 = vsel %vm5054, %v5640, %v5636
      %v5642 = vlaneseq
      %v5643 = vshrl.u32 %v5642, 7
      %v5644 = vsub.s32 %v5056, %v5643
      %v5645 = vrot.slane %v4714, %v5644
      %v5646 = vsel %vm5061, %v5645, %v5641
      %v5647 = vlaneseq
      %v5648 = vshrl.u32 %v5647, 7
      %v5649 = vsub.s32 %v5063, %v5648
      %v5650 = vrot.slane %v4716, %v5649
      %v5651 = vsel %vm5068, %v5650, %v5646
      %v5652 = vlaneseq
      %v5653 = vshrl.u32 %v5652, 7
      %v5654 = vsub.s32 %v5070, %v5653
      %v5655 = vrot.slane %v4718, %v5654
      %v5656 = vsel %vm5075, %v5655, %v5651
      %v5657 = vlaneseq
      %v5658 = vshrl.u32 %v5657, 7
      %v5659 = vsub.s32 %v5077, %v5658
      %v5660 = vrot.slane %v4720, %v5659
      %v5661 = vsel %vm5082, %v5660, %v5656
      %v5662 = vlaneseq
      %v5663 = vshrl.u32 %v5662, 7
      %v5664 = vsub.s32 %v5084, %v5663
      %v5665 = vrot.slane %v4722, %v5664
      %v5666 = vsel %vm5089, %v5665, %v5661
      %v5684 = vlaneseq
      %v5685 = vshrl.u32 %v5684, 7
      %v5686 = vsub.s32 %v2895, %v5685
      %v5687 = vrot.slane %v4935, %v5686
      %v5688 = vlaneseq
      %v5689 = vshrl.u32 %v5688, 7
      %v5690 = vsub.s32 %v4986, %v5689
      %v5691 = vrot.slane %v4937, %v5690
      %v5692 = vsel %vm4991, %v5691, %v5687
      %v5693 = vlaneseq
      %v5694 = vshrl.u32 %v5693, 7
      %v5695 = vsub.s32 %v4993, %v5694
      %v5696 = vrot.slane %v4939, %v5695
      %v5697 = vsel %vm4998, %v5696, %v5692
      %v5698 = vlaneseq
      %v5699 = vshrl.u32 %v5698, 7
      %v5700 = vsub.s32 %v5000, %v5699
      %v5701 = vrot.slane %v4941, %v5700
      %v5702 = vsel %vm5005, %v5701, %v5697
      %v5703 = vlaneseq
      %v5704 = vshrl.u32 %v5703, 7
      %v5705 = vsub.s32 %v5007, %v5704
      %v5706 = vrot.slane %v4943, %v5705
      %v5707 = vsel %vm5012, %v5706, %v5702
      %v5708 = vlaneseq
      %v5709 = vshrl.u32 %v5708, 7
      %v5710 = vsub.s32 %v5014, %v5709
      %v5711 = vrot.slane %v4945, %v5710
      %v5712 = vsel %vm5019, %v5711, %v5707
      %v5713 = vlaneseq
      %v5714 = vshrl.u32 %v5713, 7
      %v5715 = vsub.s32 %v5021, %v5714
      %v5716 = vrot.slane %v4947, %v5715
      %v5717 = vsel %vm5026, %v5716, %v5712
      %v5718 = vlaneseq
      %v5719 = vshrl.u32 %v5718, 7
      %v5720 = vsub.s32 %v5028, %v5719
      %v5721 = vrot.slane %v4949, %v5720
      %v5722 = vsel %vm5033, %v5721, %v5717
      %v5723 = vlaneseq
      %v5724 = vshrl.u32 %v5723, 7
      %v5725 = vsub.s32 %v5035, %v5724
      %v5726 = vrot.slane %v4951, %v5725
      %v5727 = vsel %vm5040, %v5726, %v5722
      %v5728 = vlaneseq
      %v5729 = vshrl.u32 %v5728, 7
      %v5730 = vsub.s32 %v5042, %v5729
      %v5731 = vrot.slane %v4953, %v5730
      %v5732 = vsel %vm5047, %v5731, %v5727
      %v5733 = vlaneseq
      %v5734 = vshrl.u32 %v5733, 7
      %v5735 = vsub.s32 %v5049, %v5734
      %v5736 = vrot.slane %v4955, %v5735
      %v5737 = vsel %vm5054, %v5736, %v5732
      %v5738 = vlaneseq
      %v5739 = vshrl.u32 %v5738, 7
      %v5740 = vsub.s32 %v5056, %v5739
      %v5741 = vrot.slane %v4957, %v5740
      %v5742 = vsel %vm5061, %v5741, %v5737
      %v5743 = vlaneseq
      %v5744 = vshrl.u32 %v5743, 7
      %v5745 = vsub.s32 %v5063, %v5744
      %v5746 = vrot.slane %v4959, %v5745
      %v5747 = vsel %vm5068, %v5746, %v5742
      %v5748 = vlaneseq
      %v5749 = vshrl.u32 %v5748, 7
      %v5750 = vsub.s32 %v5070, %v5749
      %v5751 = vrot.slane %v4961, %v5750
      %v5752 = vsel %vm5075, %v5751, %v5747
      %v5753 = vlaneseq
      %v5754 = vshrl.u32 %v5753, 7
      %v5755 = vsub.s32 %v5077, %v5754
      %v5756 = vrot.slane %v4963, %v5755
      %v5757 = vsel %vm5082, %v5756, %v5752
      %v5758 = vlaneseq
      %v5759 = vshrl.u32 %v5758, 7
      %v5760 = vsub.s32 %v5084, %v5759
      %v5761 = vrot.slane %v4965, %v5760
      %v5762 = vsel %vm5089, %v5761, %v5757
      %vm5764 = vcmask 1040384
      %v5765 = vsel %vm5764, %v5090, %v5186
      %vm5766 = vcmask 1041408
      %v5767 = vsel %vm5766, %v5765, %v5282
      %vm5768 = vcmask 1042432
      %v5769 = vsel %vm5768, %v5767, %v5378
      %v5770 = vsel %vm2942, %v5769, %v5474
      %vm5771 = vcmask 1044480
      %v5772 = vsel %vm5771, %v5770, %v5570
      %vm5773 = vcmask 1045504
      %v5774 = vsel %vm5773, %v5772, %v5666
      %vm5775 = vcmask 1046528
      %v5776 = vsel %vm5775, %v5774, %v5762
      %v5777 = vmax.f32 %v2893, %v5776
      %5778 = vst [vmem:[#allocation2] sm:$0xff] %v5777
      %v5779 = vld [vmem:[#allocation2] sm:$0xff]
      %v5780 = vld [vmem:[%s4] sm:$0xff]
      %v5781 = vld [vmem:[%s4 + $0x8] sm:$0xff]
      %v5782 = vld [vmem:[%s4 + $0x10] sm:$0xff]
      %v5783 = vld [vmem:[%s4 + $0x18] sm:$0xff]
      %v5784 = vld [vmem:[%s4 + $0x20] sm:$0xff]
      %v5785 = vld [vmem:[%s4 + $0x28] sm:$0xff]
      %v5786 = vld [vmem:[%s4 + $0x30] sm:$0xff]
      %v5787 = vld [vmem:[%s4 + $0x38] sm:$0xff]
      %v5788 = vld [vmem:[%s4 + $0x40] sm:$0xff]
      %v5789 = vld [vmem:[%s4 + $0x48] sm:$0xff]
      %v5790 = vld [vmem:[%s4 + $0x50] sm:$0xff]
      %v5791 = vld [vmem:[%s4 + $0x58] sm:$0xff]
      %v5792 = vld [vmem:[%s4 + $0x60] sm:$0xff]
      %v5793 = vld [vmem:[%s4 + $0x68] sm:$0xff]
      %v5794 = vld [vmem:[%s4 + $0x70] sm:$0xff]
      %v5795 = vld [vmem:[%s4 + $0x78] sm:$0xff]
      %v5796 = vld [vmem:[%s5] sm:$0x1]
      %v5798 = vlaneseq
      %v5799 = vshrl.u32 %v5798, 7
      %v5800 = vsub.s32 0, %v5799
      %v5801 = vrot.slane %v5796, %v5800
      %5803 = vmatprep.subr.mxu0 0.0
      %5804 = vmatpush1.msra.mxu0 %v5780
      %5805 = vmatprep.subr.mxu0 0.0
      %5806 = vmatpush1.msra.mxu0 %v5781
      %5807 = vmatprep.subr.mxu0 0.0
      %5808 = vmatpush1.msra.mxu0 %v5782
      %5809 = vmatprep.subr.mxu0 0.0
      %5810 = vmatpush1.msra.mxu0 %v5783
      %5811 = vmatprep.subr.mxu0 0.0
      %5812 = vmatpush1.msra.mxu0 %v5784
      %5813 = vmatprep.subr.mxu0 0.0
      %5814 = vmatpush1.msra.mxu0 %v5785
      %5815 = vmatprep.subr.mxu0 0.0
      %5816 = vmatpush1.msra.mxu0 %v5786
      %5817 = vmatprep.subr.mxu0 0.0
      %5818 = vmatpush1.msra.mxu0 %v5787
      %5819 = vmatprep.subr.mxu0 0.0
      %5820 = vmatpush1.msra.mxu0 %v5788
      %5821 = vmatprep.subr.mxu0 0.0
      %5822 = vmatpush1.msra.mxu0 %v5789
      %5823 = vmatprep.subr.mxu0 0.0
      %5824 = vmatpush1.msra.mxu0 %v5790
      %5825 = vmatprep.subr.mxu0 0.0
      %5826 = vmatpush1.msra.mxu0 %v5791
      %5827 = vmatprep.subr.mxu0 0.0
      %5828 = vmatpush1.msra.mxu0 %v5792
      %5829 = vmatprep.subr.mxu0 0.0
      %5830 = vmatpush1.msra.mxu0 %v5793
      %5831 = vmatprep.subr.mxu0 0.0
      %5832 = vmatpush1.msra.mxu0 %v5794
      %5833 = vmatprep.subr.mxu0 0.0
      %5834 = vmatpush1.msra.mxu0 %v5795
      %5835 = vmatprep.subr.mxu0 0.0
      %5836 = vmatpush1.msra.mxu0 0.0
      %5837 = vmatprep.subr.mxu0 0.0
      %5838 = vmatpush1.msra.mxu0 0.0
      %5839 = vmatprep.subr.mxu0 0.0
      %5840 = vmatpush1.msra.mxu0 0.0
      %5841 = vmatprep.subr.mxu0 0.0
      %5842 = vmatpush1.msra.mxu0 0.0
      %5843 = vmatprep.subr.mxu0 0.0
      %5844 = vmatpush1.msra.mxu0 0.0
      %5845 = vmatprep.subr.mxu0 0.0
      %5846 = vmatpush1.msra.mxu0 0.0
      %5847 = vmatprep.subr.mxu0 0.0
      %5848 = vmatpush1.msra.mxu0 0.0
      %5849 = vmatprep.subr.mxu0 0.0
      %5850 = vmatpush1.msra.mxu0 0.0
      %5851 = vmatprep.subr.mxu0 0.0
      %5852 = vmatpush1.msra.mxu0 0.0
      %5853 = vmatprep.subr.mxu0 0.0
      %5854 = vmatpush1.msra.mxu0 0.0
      %5855 = vmatprep.subr.mxu0 0.0
      %5856 = vmatpush1.msra.mxu0 0.0
      %5857 = vmatprep.subr.mxu0 0.0
      %5858 = vmatpush1.msra.mxu0 0.0
      %5859 = vmatprep.subr.mxu0 0.0
      %5860 = vmatpush1.msra.mxu0 0.0
      %5861 = vmatprep.subr.mxu0 0.0
      %5862 = vmatpush1.msra.mxu0 0.0
      %5863 = vmatprep.subr.mxu0 0.0
      %5864 = vmatpush1.msra.mxu0 0.0
      %5865 = vmatprep.subr.mxu0 0.0
      %5866 = vmatpush1.msra.mxu0 0.0
      %5867 = vmatprep.mubr.f32.mxu0 0.0
      %5868 = vmatmul.mubr.f32.gmra.mrb[0].mxu0 %v5779
      %v5869 = vpop.f32.mrb[0].mxu0
      %v5870 = vadd.f32 %v5801, %v5869
      %v5871 = vpop.f32.mrb[0].mxu0
      %5872 = vdwg.mxu0
      %v5873 = vmax.f32 %v5870, 0.0
      %v5874 = vld [vmem:[%s6] sm:$0xff]
      %v5875 = vld [vmem:[%s6 + $0x8] sm:$0xff]
      %v5876 = vld [vmem:[%s6 + $0x10] sm:$0xff]
      %v5877 = vld [vmem:[%s6 + $0x18] sm:$0xff]
      %v5878 = vld [vmem:[%s6 + $0x20] sm:$0xff]
      %v5879 = vld [vmem:[%s6 + $0x28] sm:$0xff]
      %v5880 = vld [vmem:[%s6 + $0x30] sm:$0xff]
      %v5881 = vld [vmem:[%s6 + $0x38] sm:$0xff]
      %v5882 = vld [vmem:[%s7] sm:$0x1]
      %v5884 = vlaneseq
      %v5885 = vshrl.u32 %v5884, 7
      %v5886 = vsub.s32 0, %v5885
      %v5887 = vrot.slane %v5882, %v5886
      %v5890 = vsel %vm3079, %v5873, 0
      %5892 = vmatprep.subr.mxu0 0.0
      %5893 = vmatpush1.msra.mxu0 %v5874
      %5894 = vmatprep.subr.mxu0 0.0
      %5895 = vmatpush1.msra.mxu0 %v5875
      %5896 = vmatprep.subr.mxu0 0.0
      %5897 = vmatpush1.msra.mxu0 %v5876
      %5898 = vmatprep.subr.mxu0 0.0
      %5899 = vmatpush1.msra.mxu0 %v5877
      %5900 = vmatprep.subr.mxu0 0.0
      %5901 = vmatpush1.msra.mxu0 %v5878
      %5902 = vmatprep.subr.mxu0 0.0
      %5903 = vmatpush1.msra.mxu0 %v5879
      %5904 = vmatprep.subr.mxu0 0.0
      %5905 = vmatpush1.msra.mxu0 %v5880
      %5906 = vmatprep.subr.mxu0 0.0
      %5907 = vmatpush1.msra.mxu0 %v5881
      %5908 = vmatprep.subr.mxu0 0.0
      %5909 = vmatpush1.msra.mxu0 0.0
      %5910 = vmatprep.subr.mxu0 0.0
      %5911 = vmatpush1.msra.mxu0 0.0
      %5912 = vmatprep.subr.mxu0 0.0
      %5913 = vmatpush1.msra.mxu0 0.0
      %5914 = vmatprep.subr.mxu0 0.0
      %5915 = vmatpush1.msra.mxu0 0.0
      %5916 = vmatprep.subr.mxu0 0.0
      %5917 = vmatpush1.msra.mxu0 0.0
      %5918 = vmatprep.subr.mxu0 0.0
      %5919 = vmatpush1.msra.mxu0 0.0
      %5920 = vmatprep.subr.mxu0 0.0
      %5921 = vmatpush1.msra.mxu0 0.0
      %5922 = vmatprep.subr.mxu0 0.0
      %5923 = vmatpush1.msra.mxu0 0.0
      %5924 = vmatprep.subr.mxu0 0.0
      %5925 = vmatpush1.msra.mxu0 0.0
      %5926 = vmatprep.subr.mxu0 0.0
      %5927 = vmatpush1.msra.mxu0 0.0
      %5928 = vmatprep.subr.mxu0 0.0
      %5929 = vmatpush1.msra.mxu0 0.0
      %5930 = vmatprep.subr.mxu0 0.0
      %5931 = vmatpush1.msra.mxu0 0.0
      %5932 = vmatprep.subr.mxu0 0.0
      %5933 = vmatpush1.msra.mxu0 0.0
      %5934 = vmatprep.subr.mxu0 0.0
      %5935 = vmatpush1.msra.mxu0 0.0
      %5936 = vmatprep.subr.mxu0 0.0
      %5937 = vmatpush1.msra.mxu0 0.0
      %5938 = vmatprep.subr.mxu0 0.0
      %5939 = vmatpush1.msra.mxu0 0.0
      %5940 = vmatprep.subr.mxu0 0.0
      %5941 = vmatpush1.msra.mxu0 0.0
      %5942 = vmatprep.subr.mxu0 0.0
      %5943 = vmatpush1.msra.mxu0 0.0
      %5944 = vmatprep.subr.mxu0 0.0
      %5945 = vmatpush1.msra.mxu0 0.0
      %5946 = vmatprep.subr.mxu0 0.0
      %5947 = vmatpush1.msra.mxu0 0.0
      %5948 = vmatprep.subr.mxu0 0.0
      %5949 = vmatpush1.msra.mxu0 0.0
      %5950 = vmatprep.subr.mxu0 0.0
      %5951 = vmatpush1.msra.mxu0 0.0
      %5952 = vmatprep.subr.mxu0 0.0
      %5953 = vmatpush1.msra.mxu0 0.0
      %5954 = vmatprep.subr.mxu0 0.0
      %5955 = vmatpush1.msra.mxu0 0.0
      %5956 = vmatprep.mubr.f32.mxu0 0.0
      %5957 = vmatmul.mubr.f32.gmra.mrb[0].mxu0 %v5890
      %v5958 = vpop.f32.mrb[0].mxu0
      %v5959 = vadd.f32 %v5887, %v5958
      %v5960 = vpop.f32.mrb[0].mxu0
      %5961 = vdwg.mxu0
      %v5962 = vmul.f32 %v5959, %v5959
      %5963 = vadd.xlane.f32.xlu0 %v5962
      %v5964 = vpop.xlane.xlu0 %5963
      %v5965 = vrsqrt.pop %v5964
      %v5966 = vmul.f32 %v5964, %v5965
      %vm5967 = vcmp.eq.f32.partialorder %v5964, inf
      %v5968 = vsel %vm5967, %v5964, %v5966
      %vm5969 = vcmp.eq.f32.partialorder %v5964, 0.0
      %v5970 = vand.u32 %v5964, 2147483648
      %v5971 = vsel %vm5969, %v5970, %v5968
      %v5972 = vmax.f32 %v5971, 1e-12
      %v5973 = vrcp.pop %v5972
      %v5974 = vmul.f32 %v5959, %v5973
      %5975 = vst [vmem:[#allocation3] sm:$0xff] %v5974
    $region45: #{tpu_custom_call.1} parent=1 // pred_fallthru
      _
    // Predicated region
    $region46: #{tpu_custom_call.1} parent=1 // pred_check
      _
    $region47: #{tpu_custom_call.1} parent=1 // pred_check_branch
      %5977 = sbr.rel (0) target = $region49
    $region48: #{tpu_custom_call.1} parent=1 // pred_region
      %s5979 = ssub.s32 128, 128
      %5980 = vsyncadd [#allocation4], %s5979
      %s5982 = sshll.u32 [#allocation3], 4
      %s5983 = int_to_ptr.vmem [resolvable:$true] %s5982
      %5985 = dma.vmem_to_hbm [thread:$0]  %s5983, 128, %s8, [#allocation4]
    $region49: #{tpu_custom_call.1} parent=1 // pred_fallthru
      _
    // Predicated region
    $region50: #{tpu_custom_call.1} parent=1 // pred_check
      _
    $region51: #{tpu_custom_call.1} parent=1 // pred_check_branch
      %5987 = sbr.rel (0) target = $region53
    $region52: #{tpu_custom_call.1} parent=1 // pred_region
      %5988 = dma.done [#allocation4], 128
    $region53: #{tpu_custom_call.1} parent=1 // pred_fallthru
      _
    %5989 = vsyncpa [#allocation4], 1

</llo_original>
